<compile_context>
chip_gen: v6e
topology: v6e:2x2x1
jax: 0.10.0
libtpu: 0.0.40
codegen_flags: <defaults>
</compile_context>

<pallas_src>
import functools
import math

import jax
import jax.numpy as jnp
from jax.experimental import pallas as pl
from jax.experimental.pallas import tpu as pltpu

_NEG_INF = -1e30  # finite mask value so the online softmax never produces NaN


def _flash_causal_kernel(q_ref, k_ref, v_ref, o_ref, m_sc, l_sc, acc_sc, *,
                         scale, tq, tk, compute_dtype, bf16_exp):
    qi = pl.program_id(1)

    # Running softmax statistics live in VMEM scratch only for the duration of
    # this (bh, qi) invocation — no cross-grid-step carry needed anymore.
    m_sc[...] = jnp.full_like(m_sc, _NEG_INF)
    l_sc[...] = jnp.zeros_like(l_sc)
    acc_sc[...] = jnp.zeros_like(acc_sc)

    # Hoisted out of the k loop: scale q once (scale applied in f32, then cast
    # to the MXU compute dtype).  (tq, D)
    q = (q_ref[0].astype(jnp.float32) * scale).astype(compute_dtype)

    def _load_kv(j):
        off = pl.multiple_of(j * tk, tk)
        k_tile = k_ref[0, pl.ds(off, tk), :].astype(compute_dtype)   # (tk, D)
        v_tile = v_ref[0, pl.ds(off, tk), :].astype(compute_dtype)   # (tk, D)
        return k_tile, v_tile

    def _step(k_tile, v_tile, tri_mask):
        # QK^T: contract on the last dim of both operands (no K transpose).
        s = jax.lax.dot_general(
            q, k_tile, dimension_numbers=(((1,), (1,)), ((), ())),
            preferred_element_type=jnp.float32)                      # (tq, tk)
        if tri_mask is not None:
            s = jnp.where(tri_mask, s, _NEG_INF)

        m_prev = m_sc[...]                                           # (tq, 1)
        m_new = jnp.maximum(m_prev, s.max(axis=-1, keepdims=True))
        alpha = jnp.exp(m_prev - m_new)
        if bf16_exp:
            # v6e/v7x only (bf16 EUP path): halves the transcendental cost and
            # drops the separate p cast before the PV matmul.  Sums stay f32.
            p = jnp.exp((s - m_new).astype(jnp.bfloat16))
            l_sc[...] = alpha * l_sc[...] + p.sum(axis=-1, keepdims=True,
                                                  dtype=jnp.float32)
            pv = jnp.dot(p, v_tile, preferred_element_type=jnp.float32)
        else:
            p = jnp.exp(s - m_new)                                   # f32
            l_sc[...] = alpha * l_sc[...] + p.sum(axis=-1, keepdims=True)
            pv = jnp.dot(p.astype(compute_dtype), v_tile,
                         preferred_element_type=jnp.float32)
        acc_sc[...] = alpha * acc_sc[...] + pv
        m_sc[...] = m_new

    # Fully-unmasked tiles strictly below the diagonal: j = 0 .. qi-1.
    # (Dynamic trip count; zero iterations for the first q block.)
    def _body(j, carry):
        k_tile, v_tile = _load_kv(j)
        _step(k_tile, v_tile, None)
        return carry

    jax.lax.fori_loop(0, qi, _body, 0)

    # Diagonal tile (always present).  With tq == tk its rows and cols cover the
    # same index range, so the mask is a within-tile lower triangle, built once.
    row = jax.lax.broadcasted_iota(jnp.int32, (tq, tk), 0)
    col = jax.lax.broadcasted_iota(jnp.int32, (tq, tk), 1)
    k_tile, v_tile = _load_kv(qi)
    _step(k_tile, v_tile, row >= col)

    o_ref[0] = (acc_sc[...] * pl.reciprocal(l_sc[...], approx=True)
                ).astype(o_ref.dtype)


def scaled_dot_product_attention_causal(q, k, v, *, block_q=256, block_k=256,
                                        compute_dtype=jnp.bfloat16,
                                        bf16_exp=False):
    """Causal SDPA forward. q, k, v: (B, H, S, D).

    compute_dtype: operand dtype fed to the MXU (accumulation is always f32).
      f32 MXU operands are a slow multi-pass path on every TPU generation, so
      f32 callers are cast to bf16 by default; production should feed bf16.
    bf16_exp: run the big softmax exp in bf16 (v6e/v7x EUP only; keep False on
      v5e, whose EUP has no bf16 path).
    """
    B, H, S, D = q.shape
    assert k.shape == (B, H, S, D) and v.shape == (B, H, S, D)

    tq = min(block_q, S)
    tk = min(block_k, S)
    # The in-kernel causal loop assumes square tiles (the (j == qi) tile is the
    # only tile straddling the causal boundary).
    assert tq == tk, "block_q must equal block_k"
    assert S % tq == 0, "sequence length must be a multiple of the block size"
    # TODO(synk): ragged-tail handling (S % block != 0) is not implemented.

    scale = 1.0 / math.sqrt(D)
    BH = B * H
    q3 = q.reshape(BH, S, D)
    k3 = k.reshape(BH, S, D)
    v3 = v.reshape(BH, S, D)

    kernel = functools.partial(_flash_causal_kernel, scale=scale, tq=tq, tk=tk,
                               compute_dtype=compute_dtype, bf16_exp=bf16_exp)

    # K/V blocks cover the whole sequence and their block index only changes
    # with bh, so Pallas DMAs them once per head (not once per q-block).
    # TODO(synk): for very long S on v7x (64 MiB VMEM), chunk K/V into
    # fixed-size row chunks or use pipeline_mode=pl.Buffered(1) on these specs.
    itemsize = q3.dtype.itemsize
    est_vmem = (2 * 2 * S * D * itemsize            # K + V, double-buffered
                + 2 * 2 * 2 * tq * D * itemsize     # q + out blocks, double-buffered
                + (tq * D + 2 * tq) * 4)            # f32 scratch (acc, m, l)
    vmem_limit = int(max(32 * 1024 * 1024, min(128 * 1024 * 1024, 2 * est_vmem)))

    out3 = pl.pallas_call(
        kernel,
        out_shape=jax.ShapeDtypeStruct((BH, S, D), q.dtype),
        grid_spec=pltpu.PrefetchScalarGridSpec(
            num_scalar_prefetch=0,
            grid=(BH, S // tq),
            in_specs=[
                pl.BlockSpec((1, tq, D), lambda bh, qi: (bh, qi, 0)),
                pl.BlockSpec((1, S, D), lambda bh, qi: (bh, 0, 0)),
                pl.BlockSpec((1, S, D), lambda bh, qi: (bh, 0, 0)),
            ],
            out_specs=pl.BlockSpec((1, tq, D), lambda bh, qi: (bh, qi, 0)),
            scratch_shapes=[
                pltpu.VMEM((tq, 1), jnp.float32),   # running max m
                pltpu.VMEM((tq, 1), jnp.float32),   # running denom l
                pltpu.VMEM((tq, D), jnp.float32),   # output accumulator
            ],
        ),
        compiler_params=pltpu.CompilerParams(
            # Both grid axes are independent (no cross-step reduction anymore);
            # on v7x they shard across the two TensorCores.
            dimension_semantics=("parallel", "parallel"),
            vmem_limit_bytes=vmem_limit),
    )(q3, k3, v3)

    return out3.reshape(B, H, S, D)


def _reference_sdpa_causal(q, k, v):
    """f32 reference for F.scaled_dot_product_attention(..., is_causal=True)."""
    B, H, S, D = q.shape
    scale = 1.0 / math.sqrt(D)
    qf, kf, vf = (x.astype(jnp.float32) for x in (q, k, v))
    s = jnp.einsum("bhqd,bhkd->bhqk", qf, kf) * scale
    mask = jnp.tril(jnp.ones((S, S), dtype=bool))
    s = jnp.where(mask[None, None], s, -jnp.inf)
    p = jax.nn.softmax(s, axis=-1)
    return jnp.einsum("bhqk,bhkd->bhqd", p, vf)


if __name__ == "__main__":
    # Small shapes consistent with attention: batch=2, heads=4, seq=512, head_dim=128.
    # S=512 with 256-wide tiles exercises both the unmasked k-tile loop and the
    # masked diagonal tile; bf16 inputs are the production path.
    B, H, S, D = 2, 4, 512, 128
    key = jax.random.PRNGKey(0)
    kq, kk, kv = jax.random.split(key, 3)
    q = jax.random.normal(kq, (B, H, S, D), dtype=jnp.float32).astype(jnp.bfloat16)
    k = jax.random.normal(kk, (B, H, S, D), dtype=jnp.float32).astype(jnp.bfloat16)
    v = jax.random.normal(kv, (B, H, S, D), dtype=jnp.float32).astype(jnp.bfloat16)

    out = scaled_dot_product_attention_causal(q, k, v)
    out = jax.block_until_ready(out)
    assert out.shape == (B, H, S, D) and out.dtype == q.dtype

    ref = _reference_sdpa_causal(q, k, v)  # f32 reference from the bf16 inputs
    err = float(jnp.max(jnp.abs(out.astype(jnp.float32) - ref)))
    # bf16 MXU operands + bf16 output rounding + approx reciprocal in finalize.
    assert jnp.allclose(out.astype(jnp.float32), ref, atol=5e-2, rtol=5e-2), err

    print("KERNEL_OK")
</pallas_src>

<mosaic_0001>
module attributes {stable_mosaic.version = 11 : i64} {
  func.func @_flash_causal_kernel(%arg0: i32, %arg1: i32, %arg2: memref<1x256x128xbf16, #tpu.memory_space<vmem>>, %arg3: memref<1x512x128xbf16, #tpu.memory_space<vmem>>, %arg4: memref<1x512x128xbf16, #tpu.memory_space<vmem>>, %arg5: memref<1x256x128xbf16, #tpu.memory_space<vmem>>, %arg6: memref<256x1xf32, #tpu.memory_space<vmem>>, %arg7: memref<256x1xf32, #tpu.memory_space<vmem>>, %arg8: memref<256x128xf32, #tpu.memory_space<vmem>>) attributes {dimension_semantics = [#tpu.dimension_semantics<parallel>, #tpu.dimension_semantics<parallel>], iteration_bounds = array<i64: 8, 2>, scalar_prefetch = 0 : i64, scratch_operands = 3 : i64, tpu.core_type = #tpu.core_type<tc>, window_params = [{transform_indices = @transform_0, window_bounds = array<i64: 1, 256, 128>}, {transform_indices = @transform_1, window_bounds = array<i64: 1, 512, 128>}, {transform_indices = @transform_2, window_bounds = array<i64: 1, 512, 128>}, {transform_indices = @transform_3, window_bounds = array<i64: 1, 256, 128>}]} {
    %cst = arith.constant -1.000000e+30 : f32
    %0 = vector.broadcast %cst : f32 to vector<256x1xf32>
    %c0 = arith.constant 0 : index
    %c0_0 = arith.constant 0 : index
    %1 = vector.load %arg6[%c0, %c0_0] : memref<256x1xf32, #tpu.memory_space<vmem>>, vector<256x1xf32>
    tpu.vector_store %arg6[%c0, %c0_0], %0 {strides = array<i32>} : memref<256x1xf32, #tpu.memory_space<vmem>>, vector<256x1xf32>,
    %cst_1 = arith.constant 0.000000e+00 : f32
    %2 = vector.broadcast %cst_1 : f32 to vector<256x1xf32>
    %c0_2 = arith.constant 0 : index
    %c0_3 = arith.constant 0 : index
    %3 = vector.load %arg7[%c0_2, %c0_3] : memref<256x1xf32, #tpu.memory_space<vmem>>, vector<256x1xf32>
    tpu.vector_store %arg7[%c0_2, %c0_3], %2 {strides = array<i32>} : memref<256x1xf32, #tpu.memory_space<vmem>>, vector<256x1xf32>,
    %cst_4 = arith.constant 0.000000e+00 : f32
    %4 = vector.broadcast %cst_4 : f32 to vector<256x128xf32>
    %c0_5 = arith.constant 0 : index
    %c0_6 = arith.constant 0 : index
    %5 = vector.load %arg8[%c0_5, %c0_6] : memref<256x128xf32, #tpu.memory_space<vmem>>, vector<256x128xf32>
    tpu.vector_store %arg8[%c0_5, %c0_6], %4 {strides = array<i32>} : memref<256x128xf32, #tpu.memory_space<vmem>>, vector<256x128xf32>,
    %c0_7 = arith.constant 0 : index
    %c0_8 = arith.constant 0 : index
    %c0_9 = arith.constant 0 : index
    %6 = vector.load %arg2[%c0_7, %c0_8, %c0_9] : memref<1x256x128xbf16, #tpu.memory_space<vmem>>, vector<1x256x128xbf16>
    %7 = vector.shape_cast %6 : vector<1x256x128xbf16> to vector<256x128xbf16>
    %8 = arith.extf %7 : vector<256x128xbf16> to vector<256x128xf32>
    %cst_10 = arith.constant 0.0883883461 : f32
    %9 = vector.broadcast %cst_10 : f32 to vector<256x128xf32>
    %10 = arith.mulf %8, %9 : vector<256x128xf32>
    %11 = arith.truncf %10 : vector<256x128xf32> to vector<256x128xbf16>
    %c0_i32 = arith.constant 0 : i32
    %c0_i32_11 = arith.constant 0 : i32
    %12 = arith.subi %arg1, %c0_i32_11 : i32
    %13 = arith.addi %c0_i32_11, %12 : i32
    %c1_i32 = arith.constant 1 : i32
    scf.for %arg9 = %c0_i32_11 to %13 step %c1_i32  : i32 {
      %c256_i32_40 = arith.constant 256 : i32
      %60 = arith.muli %arg9, %c256_i32_40 : i32
      %61 = tpu.assume_multiple %60, 256 : i32
      %c0_41 = arith.constant 0 : index
      %62 = arith.index_cast %61 : i32 to index
      %c0_42 = arith.constant 0 : index
      %63 = vector.load %arg3[%c0_41, %62, %c0_42] : memref<1x512x128xbf16, #tpu.memory_space<vmem>>, vector<1x256x128xbf16>
      %64 = vector.shape_cast %63 : vector<1x256x128xbf16> to vector<256x128xbf16>
      %c0_43 = arith.constant 0 : index
      %65 = arith.index_cast %61 : i32 to index
      %c0_44 = arith.constant 0 : index
      %66 = vector.load %arg4[%c0_43, %65, %c0_44] : memref<1x512x128xbf16, #tpu.memory_space<vmem>>, vector<1x256x128xbf16>
      %67 = vector.shape_cast %66 : vector<1x256x128xbf16> to vector<256x128xbf16>
      %cst_45 = arith.constant dense<0.000000e+00> : vector<256x256xf32>
      %68 = tpu.matmul %11, %64, %cst_45 {dimension_numbers = #tpu.dot_dimension_numbers<[1], [1], [0], [0], [0, 0, 1, 0], [], []>} : vector<256x128xbf16>, vector<256x128xbf16>, vector<256x256xf32> -> vector<256x256xf32>
      %c0_46 = arith.constant 0 : index
      %c0_47 = arith.constant 0 : index
      %69 = vector.load %arg6[%c0_46, %c0_47] : memref<256x1xf32, #tpu.memory_space<vmem>>, vector<256x1xf32>
      %cst_48 = arith.constant dense<0xFF800000> : vector<256xf32>
      %70 = vector.multi_reduction <maximumf>, %68, %cst_48 [1] : vector<256x256xf32> to vector<256xf32>
      %71 = vector.shape_cast %70 : vector<256xf32> to vector<256x1xf32>
      %72 = arith.maximumf %69, %71 : vector<256x1xf32>
      %73 = arith.subf %69, %72 : vector<256x1xf32>
      %74 = math.exp %73 : vector<256x1xf32>
      %75 = vector.broadcast %72 : vector<256x1xf32> to vector<256x256xf32>
      %76 = arith.subf %68, %75 : vector<256x256xf32>
      %77 = math.exp %76 : vector<256x256xf32>
      %c0_49 = arith.constant 0 : index
      %c0_50 = arith.constant 0 : index
      %78 = vector.load %arg7[%c0_49, %c0_50] : memref<256x1xf32, #tpu.memory_space<vmem>>, vector<256x1xf32>
      %79 = arith.mulf %74, %78 : vector<256x1xf32>
      %cst_51 = arith.constant dense<0.000000e+00> : vector<256xf32>
      %80 = vector.multi_reduction <add>, %77, %cst_51 [1] : vector<256x256xf32> to vector<256xf32>
      %81 = vector.shape_cast %80 : vector<256xf32> to vector<256x1xf32>
      %82 = arith.addf %79, %81 : vector<256x1xf32>
      %c0_52 = arith.constant 0 : index
      %c0_53 = arith.constant 0 : index
      %83 = vector.load %arg7[%c0_52, %c0_53] : memref<256x1xf32, #tpu.memory_space<vmem>>, vector<256x1xf32>
      tpu.vector_store %arg7[%c0_52, %c0_53], %82 {strides = array<i32>} : memref<256x1xf32, #tpu.memory_space<vmem>>, vector<256x1xf32>,
      %84 = arith.truncf %77 : vector<256x256xf32> to vector<256x256xbf16>
      %cst_54 = arith.constant dense<0.000000e+00> : vector<256x128xf32>
      %85 = tpu.matmul %84, %67, %cst_54 {dimension_numbers = #tpu.dot_dimension_numbers<[1], [0], [0], [1], [0, 0, 1, 1], [], []>} : vector<256x256xbf16>, vector<256x128xbf16>, vector<256x128xf32> -> vector<256x128xf32>
      %c0_55 = arith.constant 0 : index
      %c0_56 = arith.constant 0 : index
      %86 = vector.load %arg8[%c0_55, %c0_56] : memref<256x128xf32, #tpu.memory_space<vmem>>, vector<256x128xf32>
      %87 = vector.broadcast %74 : vector<256x1xf32> to vector<256x128xf32>
      %88 = arith.mulf %87, %86 : vector<256x128xf32>
      %89 = arith.addf %88, %85 : vector<256x128xf32>
      %c0_57 = arith.constant 0 : index
      %c0_58 = arith.constant 0 : index
      %90 = vector.load %arg8[%c0_57, %c0_58] : memref<256x128xf32, #tpu.memory_space<vmem>>, vector<256x128xf32>
      tpu.vector_store %arg8[%c0_57, %c0_58], %89 {strides = array<i32>} : memref<256x128xf32, #tpu.memory_space<vmem>>, vector<256x128xf32>,
      %c0_59 = arith.constant 0 : index
      %c0_60 = arith.constant 0 : index
      %91 = vector.load %arg6[%c0_59, %c0_60] : memref<256x1xf32, #tpu.memory_space<vmem>>, vector<256x1xf32>
      tpu.vector_store %arg6[%c0_59, %c0_60], %72 {strides = array<i32>} : memref<256x1xf32, #tpu.memory_space<vmem>>, vector<256x1xf32>,
    }
    %14 = tpu.iota {dimensions = array<i32: 0>} : vector<256x256xi32>
    %15 = tpu.iota {dimensions = array<i32: 1>} : vector<256x256xi32>
    %c256_i32 = arith.constant 256 : i32
    %16 = arith.muli %arg1, %c256_i32 : i32
    %17 = tpu.assume_multiple %16, 256 : i32
    %c0_12 = arith.constant 0 : index
    %18 = arith.index_cast %17 : i32 to index
    %c0_13 = arith.constant 0 : index
    %19 = vector.load %arg3[%c0_12, %18, %c0_13] : memref<1x512x128xbf16, #tpu.memory_space<vmem>>, vector<1x256x128xbf16>
    %20 = vector.shape_cast %19 : vector<1x256x128xbf16> to vector<256x128xbf16>
    %c0_14 = arith.constant 0 : index
    %21 = arith.index_cast %17 : i32 to index
    %c0_15 = arith.constant 0 : index
    %22 = vector.load %arg4[%c0_14, %21, %c0_15] : memref<1x512x128xbf16, #tpu.memory_space<vmem>>, vector<1x256x128xbf16>
    %23 = vector.shape_cast %22 : vector<1x256x128xbf16> to vector<256x128xbf16>
    %24 = arith.cmpi sge, %14, %15 : vector<256x256xi32>
    %cst_16 = arith.constant dense<0.000000e+00> : vector<256x256xf32>
    %25 = tpu.matmul %11, %20, %cst_16 {dimension_numbers = #tpu.dot_dimension_numbers<[1], [1], [0], [0], [0, 0, 1, 0], [], []>} : vector<256x128xbf16>, vector<256x128xbf16>, vector<256x256xf32> -> vector<256x256xf32>
    %cst_17 = arith.constant -1.000000e+30 : f32
    %26 = vector.broadcast %cst_17 : f32 to vector<256x256xf32>
    %27 = arith.select %24, %25, %26 : vector<256x256xi1>, vector<256x256xf32>
    %c0_18 = arith.constant 0 : index
    %c0_19 = arith.constant 0 : index
    %28 = vector.load %arg6[%c0_18, %c0_19] : memref<256x1xf32, #tpu.memory_space<vmem>>, vector<256x1xf32>
    %cst_20 = arith.constant dense<0xFF800000> : vector<256xf32>
    %29 = vector.multi_reduction <maximumf>, %27, %cst_20 [1] : vector<256x256xf32> to vector<256xf32>
    %30 = vector.shape_cast %29 : vector<256xf32> to vector<256x1xf32>
    %31 = arith.maximumf %28, %30 : vector<256x1xf32>
    %32 = arith.subf %28, %31 : vector<256x1xf32>
    %33 = math.exp %32 : vector<256x1xf32>
    %34 = vector.broadcast %31 : vector<256x1xf32> to vector<256x256xf32>
    %35 = arith.subf %27, %34 : vector<256x256xf32>
    %36 = math.exp %35 : vector<256x256xf32>
    %c0_21 = arith.constant 0 : index
    %c0_22 = arith.constant 0 : index
    %37 = vector.load %arg7[%c0_21, %c0_22] : memref<256x1xf32, #tpu.memory_space<vmem>>, vector<256x1xf32>
    %38 = arith.mulf %33, %37 : vector<256x1xf32>
    %cst_23 = arith.constant dense<0.000000e+00> : vector<256xf32>
    %39 = vector.multi_reduction <add>, %36, %cst_23 [1] : vector<256x256xf32> to vector<256xf32>
    %40 = vector.shape_cast %39 : vector<256xf32> to vector<256x1xf32>
    %41 = arith.addf %38, %40 : vector<256x1xf32>
    %c0_24 = arith.constant 0 : index
    %c0_25 = arith.constant 0 : index
    %42 = vector.load %arg7[%c0_24, %c0_25] : memref<256x1xf32, #tpu.memory_space<vmem>>, vector<256x1xf32>
    tpu.vector_store %arg7[%c0_24, %c0_25], %41 {strides = array<i32>} : memref<256x1xf32, #tpu.memory_space<vmem>>, vector<256x1xf32>,
    %43 = arith.truncf %36 : vector<256x256xf32> to vector<256x256xbf16>
    %cst_26 = arith.constant dense<0.000000e+00> : vector<256x128xf32>
    %44 = tpu.matmul %43, %23, %cst_26 {dimension_numbers = #tpu.dot_dimension_numbers<[1], [0], [0], [1], [0, 0, 1, 1], [], []>} : vector<256x256xbf16>, vector<256x128xbf16>, vector<256x128xf32> -> vector<256x128xf32>
    %c0_27 = arith.constant 0 : index
    %c0_28 = arith.constant 0 : index
    %45 = vector.load %arg8[%c0_27, %c0_28] : memref<256x128xf32, #tpu.memory_space<vmem>>, vector<256x128xf32>
    %46 = vector.broadcast %33 : vector<256x1xf32> to vector<256x128xf32>
    %47 = arith.mulf %46, %45 : vector<256x128xf32>
    %48 = arith.addf %47, %44 : vector<256x128xf32>
    %c0_29 = arith.constant 0 : index
    %c0_30 = arith.constant 0 : index
    %49 = vector.load %arg8[%c0_29, %c0_30] : memref<256x128xf32, #tpu.memory_space<vmem>>, vector<256x128xf32>
    tpu.vector_store %arg8[%c0_29, %c0_30], %48 {strides = array<i32>} : memref<256x128xf32, #tpu.memory_space<vmem>>, vector<256x128xf32>,
    %c0_31 = arith.constant 0 : index
    %c0_32 = arith.constant 0 : index
    %50 = vector.load %arg6[%c0_31, %c0_32] : memref<256x1xf32, #tpu.memory_space<vmem>>, vector<256x1xf32>
    tpu.vector_store %arg6[%c0_31, %c0_32], %31 {strides = array<i32>} : memref<256x1xf32, #tpu.memory_space<vmem>>, vector<256x1xf32>,
    %c0_33 = arith.constant 0 : index
    %c0_34 = arith.constant 0 : index
    %51 = vector.load %arg8[%c0_33, %c0_34] : memref<256x128xf32, #tpu.memory_space<vmem>>, vector<256x128xf32>
    %c0_35 = arith.constant 0 : index
    %c0_36 = arith.constant 0 : index
    %52 = vector.load %arg7[%c0_35, %c0_36] : memref<256x1xf32, #tpu.memory_space<vmem>>, vector<256x1xf32>
    %53 = tpu.reciprocal %52 {approx = true} : vector<256x1xf32> -> vector<256x1xf32>
    %54 = vector.broadcast %53 : vector<256x1xf32> to vector<256x128xf32>
    %55 = arith.mulf %51, %54 : vector<256x128xf32>
    %56 = arith.truncf %55 : vector<256x128xf32> to vector<256x128xbf16>
    %c0_37 = arith.constant 0 : index
    %c0_38 = arith.constant 0 : index
    %c0_39 = arith.constant 0 : index
    %57 = vector.load %arg5[%c0_37, %c0_38, %c0_39] : memref<1x256x128xbf16, #tpu.memory_space<vmem>>, vector<1x256x128xbf16>
    %58 = vector.shape_cast %57 : vector<1x256x128xbf16> to vector<256x128xbf16>
    %59 = vector.shape_cast %56 : vector<256x128xbf16> to vector<1x256x128xbf16>
    tpu.vector_store %arg5[%c0_37, %c0_38, %c0_39], %59 {strides = array<i32>} : memref<1x256x128xbf16, #tpu.memory_space<vmem>>, vector<1x256x128xbf16>,
    return
  }
  func.func @transform_0(%arg0: i32, %arg1: i32) -> (i32, i32, i32) {
    %c0_i32 = arith.constant 0 : i32
    %c0_i32_0 = arith.constant 0 : i32
    return %arg0, %arg1, %c0_i32 : i32, i32, i32
  }
  func.func @transform_1(%arg0: i32, %arg1: i32) -> (i32, i32, i32) {
    %c0_i32 = arith.constant 0 : i32
    %c0_i32_0 = arith.constant 0 : i32
    %c0_i32_1 = arith.constant 0 : i32
    return %arg0, %c0_i32, %c0_i32_0 : i32, i32, i32
  }
  func.func @transform_2(%arg0: i32, %arg1: i32) -> (i32, i32, i32) {
    %c0_i32 = arith.constant 0 : i32
    %c0_i32_0 = arith.constant 0 : i32
    %c0_i32_1 = arith.constant 0 : i32
    return %arg0, %c0_i32, %c0_i32_0 : i32, i32, i32
  }
  func.func @transform_3(%arg0: i32, %arg1: i32) -> (i32, i32, i32) {
    %c0_i32 = arith.constant 0 : i32
    %c0_i32_0 = arith.constant 0 : i32
    return %arg0, %arg1, %c0_i32 : i32, i32, i32
  }
}

</mosaic_0001>

<llo_original>
// kernel: tpu_custom_call.1
$region0: #{tpu_custom_call.1}
  #allocation0 [shape = 'u32[]', space=smem, size = 0x4, offset = 0x4, fixed_abs, tag = 'smem constant byte address 0x4 - core index']
  #allocation1 [shape = 'u32[144,128]{1,0:T(1,128)}', space=vmem, size = 0x12000, scoped, tag = 'internal scratch']
  #allocation2 [shape = 'f32[256,1]{1,0:T(8,128)}', space=vmem, size = 0x20000, scoped, tag = 'scratch operand']
  #allocation3 [shape = 'f32[256,1]{1,0:T(8,128)}', space=vmem, size = 0x20000, scoped, tag = 'scratch operand']
  #allocation4 [shape = 'f32[256,128]{1,0:T(8,128)}', space=vmem, size = 0x20000, scoped, tag = 'scratch operand']
  %s0 = inlined_call_operand.hbm [shape: bf16[8,512,128], index: 0, kind: input, shape index: {}]
  %s1 = inlined_call_operand.hbm [shape: bf16[8,512,128], index: 1, kind: input, shape index: {}]
  %s2 = inlined_call_operand.hbm [shape: bf16[8,512,128], index: 2, kind: input, shape index: {}]
  %s3 = inlined_call_operand.hbm [shape: bf16[8,512,128], index: 3, kind: output, shape index: {}]
  %s4 = sld [smem:[#allocation0]]
  $region64: #{tpu_custom_call.1} parent=0
    _
  %s6 = ssub.s32 1, %s4
  %s7 = scalar_select 0, %s6, %s4
  $region1: #{tpu_custom_call.1} parent=0
    #allocation5 [shape = 'u8[131072]{0}', space=vmem, size = 0x20000, scoped, tag = 'input window, operand 0']
    #allocation6 [shape = 's32[2]{0}', space=sflag, size = 0x8, scoped, tag = 'scoped memory for tpu_custom_call.1']
    #allocation7 [shape = 's32[2]{0}', space=sflag, size = 0x8, scoped, tag = 'scoped memory for tpu_custom_call.1']
    #allocation8 [shape = 'u8[262144]{0}', space=vmem, size = 0x40000, scoped, tag = 'input window, operand 1']
    #allocation9 [shape = 's32[2]{0}', space=sflag, size = 0x8, scoped, tag = 'scoped memory for tpu_custom_call.1']
    #allocation10 [shape = 'u8[262144]{0}', space=vmem, size = 0x40000, scoped, tag = 'input window, operand 2']
    #allocation11 [shape = 'u8[131072]{0}', space=vmem, size = 0x20000, scoped, tag = 'output window, operand 0']
    %8 = vsyncpa [#allocation6], 0
    %s9 = scalar_lea.sflag [#allocation6], 1
    %10 = vsyncpa %s9, 0
    %11 = vsyncpa [#allocation9], 0
    %s12 = scalar_lea.sflag [#allocation9], 1
    %13 = vsyncpa %s12, 0
    %14 = vsyncpa [#allocation7], 0
    %s15 = scalar_lea.sflag [#allocation7], 1
    %16 = vsyncpa %s15, 0
    loop: start=0, step=1, limit=18
    $region2: #{tpu_custom_call.1} parent=1 // loop_pre_header
      _
    $region3: #{tpu_custom_call.1} parent=1 // loop_header
      %s18 = sphi 0, %s22
      %p19 = scmp.ge.s32.totalorder %s18, 18
      %s25 = sphi 0, %s37
      %s26 = sphi 0, %s33
      %s27 = sphi 0, %s25
      %s28 = sphi 0, %s26
      %s29 = sphi 0, %s27
      %s30 = sphi 0, %s28
      %s42 = sphi 0, %s44
      %s45 = sphi 0, %s42
      %s46 = sphi 0, %s45
      %s62 = sphi 0, %s46
      %s68 = sphi 0, %s70
      %s71 = sphi 0, %s68
      %s72 = sphi 0, %s71
      %s88 = sphi 0, %s72
      %s94 = sphi 0, %s96
      %s97 = sphi 0, %s94
      %s98 = sphi 0, %s97
      %s114 = sphi 0, %s98
      %s122 = sphi 0, %s124
      %s125 = sphi 0, %s122
      %s126 = sphi 0, %s125
      %s142 = sphi 0, %s126
    $region4: #{tpu_custom_call.1} parent=1 // loop_header_branch
      %21 = sbr.rel (%p19) target = $region8
    $region5: #{tpu_custom_call.1} parent=1 // loop_body
      %s23 = ssub.s32 %s18, 1
      %s24 = ssub.s32 %s18, 2
      %s31 = sadd.s32 1, %s26
      %p32 = scmp.ge.s32.totalorder %s31, 2
      %s33 = scalar_select %p32, 0, %s31
      %s34 = sadd.s32 1, %s25
      %s35 = scalar_select %p32, %s34, %s25
      %p36 = scmp.ge.s32.totalorder %s35, 8
      %s37 = scalar_select %p36, 0, %s35
      %s38 = ssub.s32 %s25, %s37
      %s39 = ssub.s32 %s26, %s33
      %s40 = sor.u32 %s38, %s39
      %p41 = scmp.eq.s32.totalorder %s40, 0
      %s43 = sadd.s32 %s42, 1
      %s44 = scalar_select %p41, %s42, %s43
      %p47 = pneg %p41
      %p48 = scmp.eq.s32.totalorder %s18, 15
      %p49 = por %p47, %p48
      %p50 = scmp.ne.s32.totalorder %s42, %s45
      %p51 = scmp.eq.s32.totalorder %s18, 0
      %p52 = por %p50, %p51
      %p53 = scmp.ne.s32.totalorder %s42, %s45
      %p54 = scmp.eq.s32.totalorder %s23, 15
      %p55 = por %p53, %p54
      %p56 = scmp.ne.s32.totalorder %s45, %s46
      %p57 = scmp.eq.s32.totalorder %s23, 0
      %p58 = por %p56, %p57
      %p59 = scmp.ne.s32.totalorder %s45, %s46
      %p60 = scmp.eq.s32.totalorder %s24, 15
      %p61 = por %p59, %p60
      %p63 = scmp.ne.s32.totalorder %s46, %s62
      %p64 = scmp.eq.s32.totalorder %s24, 0
      %p65 = por %p63, %p64
      %s66 = ssub.s32 %s25, %s37
      %p67 = scmp.eq.s32.totalorder %s66, 0
      %s69 = sadd.s32 %s68, 1
      %s70 = scalar_select %p67, %s68, %s69
      %p73 = pneg %p67
      %p74 = scmp.eq.s32.totalorder %s18, 15
      %p75 = por %p73, %p74
      %p76 = scmp.ne.s32.totalorder %s68, %s71
      %p77 = scmp.eq.s32.totalorder %s18, 0
      %p78 = por %p76, %p77
      %p79 = scmp.ne.s32.totalorder %s68, %s71
      %p80 = scmp.eq.s32.totalorder %s23, 15
      %p81 = por %p79, %p80
      %p82 = scmp.ne.s32.totalorder %s71, %s72
      %p83 = scmp.eq.s32.totalorder %s23, 0
      %p84 = por %p82, %p83
      %p85 = scmp.ne.s32.totalorder %s71, %s72
      %p86 = scmp.eq.s32.totalorder %s24, 15
      %p87 = por %p85, %p86
      %p89 = scmp.ne.s32.totalorder %s72, %s88
      %p90 = scmp.eq.s32.totalorder %s24, 0
      %p91 = por %p89, %p90
      %s92 = ssub.s32 %s25, %s37
      %p93 = scmp.eq.s32.totalorder %s92, 0
      %s95 = sadd.s32 %s94, 1
      %s96 = scalar_select %p93, %s94, %s95
      %p99 = pneg %p93
      %p100 = scmp.eq.s32.totalorder %s18, 15
      %p101 = por %p99, %p100
      %p102 = scmp.ne.s32.totalorder %s94, %s97
      %p103 = scmp.eq.s32.totalorder %s18, 0
      %p104 = por %p102, %p103
      %p105 = scmp.ne.s32.totalorder %s94, %s97
      %p106 = scmp.eq.s32.totalorder %s23, 15
      %p107 = por %p105, %p106
      %p108 = scmp.ne.s32.totalorder %s97, %s98
      %p109 = scmp.eq.s32.totalorder %s23, 0
      %p110 = por %p108, %p109
      %p111 = scmp.ne.s32.totalorder %s97, %s98
      %p112 = scmp.eq.s32.totalorder %s24, 15
      %p113 = por %p111, %p112
      %p115 = scmp.ne.s32.totalorder %s98, %s114
      %p116 = scmp.eq.s32.totalorder %s24, 0
      %p117 = por %p115, %p116
      %s118 = ssub.s32 %s25, %s37
      %s119 = ssub.s32 %s26, %s33
      %s120 = sor.u32 %s118, %s119
      %p121 = scmp.eq.s32.totalorder %s120, 0
      %s123 = sadd.s32 %s122, 1
      %s124 = scalar_select %p121, %s122, %s123
      %p127 = pneg %p121
      %p128 = scmp.eq.s32.totalorder %s18, 15
      %p129 = por %p127, %p128
      %p130 = scmp.ne.s32.totalorder %s122, %s125
      %p131 = scmp.eq.s32.totalorder %s18, 0
      %p132 = por %p130, %p131
      %p133 = scmp.ne.s32.totalorder %s122, %s125
      %p134 = scmp.eq.s32.totalorder %s23, 15
      %p135 = por %p133, %p134
      %p136 = scmp.ne.s32.totalorder %s125, %s126
      %p137 = scmp.eq.s32.totalorder %s23, 0
      %p138 = por %p136, %p137
      %p139 = scmp.ne.s32.totalorder %s125, %s126
      %p140 = scmp.eq.s32.totalorder %s24, 15
      %p141 = por %p139, %p140
      %p143 = scmp.ne.s32.totalorder %s126, %s142
      %p144 = scmp.eq.s32.totalorder %s24, 0
      %p145 = por %p143, %p144
      %p146 = scmp.le.s32.totalorder 1, %s18
      %p147 = scmp.lt.s32.totalorder %s18, 17
      %p148 = pnand %p146, %p147
      %p149 = pneg %p148
      // Predicated region
      $region9: #{tpu_custom_call.1} parent=5 // pred_check
        _
      $region10: #{tpu_custom_call.1} parent=5 // pred_check_branch
        %151 = sbr.rel (%p148) target = $region12
      $region11: #{tpu_custom_call.1} parent=5 // pred_region
        %s152 = ssub.s32 %s18, 1
      $region12: #{tpu_custom_call.1} parent=5 // pred_fallthru
        _
      %p153 = scmp.lt.s32.totalorder %s18, 16
      // Predicated region
      $region13: #{tpu_custom_call.1} parent=5 // pred_check
        %p154 = pneg %p153
      $region14: #{tpu_custom_call.1} parent=5 // pred_check_branch
        %156 = sbr.rel (%p154) target = $region16
      $region15: #{tpu_custom_call.1} parent=5 // pred_region
        // Predicated region
        $region17: #{tpu_custom_call.1} parent=15 // pred_check
          %p157 = pneg %p52
        $region18: #{tpu_custom_call.1} parent=15 // pred_check_branch
          %159 = sbr.rel (%p157) target = $region20
        $region19: #{tpu_custom_call.1} parent=15 // pred_region
          %s160 = sand.u32 %s42, 1
          %s161 = scalar_lea.sflag [#allocation6], %s160
          %s162 = sand.u32 %s42, 1
          %s163 = smul.addr %s162, 128
          %s164 = scalar_lea.vmem [#allocation5], %s163
          %s165 = smul.u32 32, %s26
          %s167 = ssub.s32 2048, 2048
          %168 = vsyncadd %s161, %s167
          %s169 = smul.addr %s25, 64
          %s170 = sadd.s32 %s165, %s169
          %s171 = smul.addr %s170, 64
          %s172 = scalar_lea.hbm %s0, %s171
          %s173 = sshll.u32 %s164, 4
          %s174 = int_to_ptr.vmem [resolvable:$true] %s173
          %179 = dma.hbm_to_vmem [thread:$0]  %s172, 2048, %s174, %s161, 64, 64, 4
        $region20: #{tpu_custom_call.1} parent=15 // pred_fallthru
          _
        // Predicated region
        $region21: #{tpu_custom_call.1} parent=15 // pred_check
          %p180 = pneg %p78
        $region22: #{tpu_custom_call.1} parent=15 // pred_check_branch
          %182 = sbr.rel (%p180) target = $region24
        $region23: #{tpu_custom_call.1} parent=15 // pred_region
          %s183 = sand.u32 %s18, 1
          %s184 = scalar_lea.sflag [#allocation9], %s183
          %s185 = sand.u32 %s68, 1
          %s186 = smul.addr %s185, 256
          %s187 = scalar_lea.vmem [#allocation8], %s186
          %s189 = ssub.s32 4096, 4096
          %190 = vsyncadd %s184, %s189
          %s191 = smul.addr %s25, 64
          %s192 = smul.addr %s191, 64
          %s193 = scalar_lea.hbm %s1, %s192
          %s194 = sshll.u32 %s187, 4
          %s195 = int_to_ptr.vmem [resolvable:$true] %s194
          %200 = dma.hbm_to_vmem [thread:$0]  %s193, 4096, %s195, %s184, 64, 64, 4
        $region24: #{tpu_custom_call.1} parent=15 // pred_fallthru
          _
        // Predicated region
        $region25: #{tpu_custom_call.1} parent=15 // pred_check
          %p201 = pneg %p104
        $region26: #{tpu_custom_call.1} parent=15 // pred_check_branch
          %203 = sbr.rel (%p201) target = $region28
        $region27: #{tpu_custom_call.1} parent=15 // pred_region
          %s204 = sand.u32 %s18, 1
          %s205 = scalar_lea.sflag [#allocation9], %s204
          %s206 = sand.u32 %s94, 1
          %s207 = smul.addr %s206, 256
          %s208 = scalar_lea.vmem [#allocation10], %s207
          %s210 = ssub.s32 4096, 4096
          %211 = vsyncadd %s205, %s210
          %s212 = smul.addr %s25, 64
          %s213 = smul.addr %s212, 64
          %s214 = scalar_lea.hbm %s2, %s213
          %s215 = sshll.u32 %s208, 4
          %s216 = int_to_ptr.vmem [resolvable:$true] %s215
          %221 = dma.hbm_to_vmem [thread:$0]  %s214, 4096, %s216, %s205, 64, 64, 4
        $region28: #{tpu_custom_call.1} parent=15 // pred_fallthru
          _
      $region16: #{tpu_custom_call.1} parent=5 // pred_fallthru
        _
      %p222 = scmp.le.s32.totalorder 1, %s18
      %p223 = scmp.lt.s32.totalorder %s18, 17
      %p224 = pnand %p222, %p223
      %p225 = pneg %p224
      // Predicated region
      $region29: #{tpu_custom_call.1} parent=5 // pred_check
        _
      $region30: #{tpu_custom_call.1} parent=5 // pred_check_branch
        %227 = sbr.rel (%p224) target = $region32
      $region31: #{tpu_custom_call.1} parent=5 // pred_region
        %s228 = ssub.s32 %s18, 1
        %s229 = sand.u32 %s45, 1
        %s230 = scalar_lea.sflag [#allocation6], %s229
        %s231 = sand.u32 %s45, 1
        %s232 = smul.addr %s231, 128
        %s233 = scalar_lea.vmem [#allocation5], %s232
        // Predicated region
        $region33: #{tpu_custom_call.1} parent=31 // pred_check
          %p234 = pneg %p58
        $region34: #{tpu_custom_call.1} parent=31 // pred_check_branch
          %236 = sbr.rel (%p234) target = $region36
        $region35: #{tpu_custom_call.1} parent=31 // pred_region
          %237 = dma.done %s230, 2048
        $region36: #{tpu_custom_call.1} parent=31 // pred_fallthru
          _
        %s238 = sand.u32 %s23, 1
        %s239 = scalar_lea.sflag [#allocation9], %s238
        %s240 = sand.u32 %s71, 1
        %s241 = smul.addr %s240, 256
        %s242 = scalar_lea.vmem [#allocation8], %s241
        // Predicated region
        $region37: #{tpu_custom_call.1} parent=31 // pred_check
          %p243 = pneg %p84
        $region38: #{tpu_custom_call.1} parent=31 // pred_check_branch
          %245 = sbr.rel (%p243) target = $region40
        $region39: #{tpu_custom_call.1} parent=31 // pred_region
          %246 = dma.done %s239, 4096
        $region40: #{tpu_custom_call.1} parent=31 // pred_fallthru
          _
        %s247 = sand.u32 %s23, 1
        %s248 = scalar_lea.sflag [#allocation9], %s247
        %s249 = sand.u32 %s97, 1
        %s250 = smul.addr %s249, 256
        %s251 = scalar_lea.vmem [#allocation10], %s250
        // Predicated region
        $region41: #{tpu_custom_call.1} parent=31 // pred_check
          %p252 = pneg %p110
        $region42: #{tpu_custom_call.1} parent=31 // pred_check_branch
          %254 = sbr.rel (%p252) target = $region44
        $region43: #{tpu_custom_call.1} parent=31 // pred_region
          %255 = dma.done %s248, 4096
        $region44: #{tpu_custom_call.1} parent=31 // pred_fallthru
          _
        %s256 = sand.u32 %s45, 1
        %s257 = scalar_lea.sflag [#allocation6], %s256
        %s258 = sand.u32 %s45, 1
        %s259 = smul.addr %s258, 128
        %s260 = scalar_lea.vmem [#allocation5], %s259
        %p261 = pneg %p58
        %p262 = pneg %p55
        %s263 = sand.u32 %s23, 1
        %s264 = scalar_lea.sflag [#allocation9], %s263
        %s265 = sand.u32 %s71, 1
        %s266 = smul.addr %s265, 256
        %s267 = scalar_lea.vmem [#allocation8], %s266
        %p268 = pneg %p84
        %p269 = pneg %p81
        %s270 = sand.u32 %s23, 1
        %s271 = scalar_lea.sflag [#allocation9], %s270
        %s272 = sand.u32 %s97, 1
        %s273 = smul.addr %s272, 256
        %s274 = scalar_lea.vmem [#allocation10], %s273
        %p275 = pneg %p110
        %p276 = pneg %p107
        %p277 = pneg %p138
        %p278 = pneg %p135
        %s279 = sand.u32 %s125, 1
        %s280 = scalar_lea.sflag [#allocation7], %s279
        %s281 = sand.u32 %s125, 1
        %s282 = smul.addr %s281, 128
        %s283 = scalar_lea.vmem [#allocation11], %s282
        %s284 = smul.u32 32, %s28
        %s285 = smul.u32 32, %s28
        %vm287 = vcmask 7168
        %288 = vst.msk [vmem:[#allocation2] sm:$0xff] %vm287, -1e+30
        %289 = vst.msk [vmem:[#allocation2 + $0x8] sm:$0xff] %vm287, -1e+30
        %290 = vst.msk [vmem:[#allocation2 + $0x10] sm:$0xff] %vm287, -1e+30
        %291 = vst.msk [vmem:[#allocation2 + $0x18] sm:$0xff] %vm287, -1e+30
        %292 = vst.msk [vmem:[#allocation2 + $0x20] sm:$0xff] %vm287, -1e+30
        %293 = vst.msk [vmem:[#allocation2 + $0x28] sm:$0xff] %vm287, -1e+30
        %294 = vst.msk [vmem:[#allocation2 + $0x30] sm:$0xff] %vm287, -1e+30
        %295 = vst.msk [vmem:[#allocation2 + $0x38] sm:$0xff] %vm287, -1e+30
        %296 = vst.msk [vmem:[#allocation2 + $0x40] sm:$0xff] %vm287, -1e+30
        %297 = vst.msk [vmem:[#allocation2 + $0x48] sm:$0xff] %vm287, -1e+30
        %298 = vst.msk [vmem:[#allocation2 + $0x50] sm:$0xff] %vm287, -1e+30
        %299 = vst.msk [vmem:[#allocation2 + $0x58] sm:$0xff] %vm287, -1e+30
        %300 = vst.msk [vmem:[#allocation2 + $0x60] sm:$0xff] %vm287, -1e+30
        %301 = vst.msk [vmem:[#allocation2 + $0x68] sm:$0xff] %vm287, -1e+30
        %302 = vst.msk [vmem:[#allocation2 + $0x70] sm:$0xff] %vm287, -1e+30
        %303 = vst.msk [vmem:[#allocation2 + $0x78] sm:$0xff] %vm287, -1e+30
        %304 = vst.msk [vmem:[#allocation2 + $0x80] sm:$0xff] %vm287, -1e+30
        %305 = vst.msk [vmem:[#allocation2 + $0x88] sm:$0xff] %vm287, -1e+30
        %306 = vst.msk [vmem:[#allocation2 + $0x90] sm:$0xff] %vm287, -1e+30
        %307 = vst.msk [vmem:[#allocation2 + $0x98] sm:$0xff] %vm287, -1e+30
        %308 = vst.msk [vmem:[#allocation2 + $0xa0] sm:$0xff] %vm287, -1e+30
        %309 = vst.msk [vmem:[#allocation2 + $0xa8] sm:$0xff] %vm287, -1e+30
        %310 = vst.msk [vmem:[#allocation2 + $0xb0] sm:$0xff] %vm287, -1e+30
        %311 = vst.msk [vmem:[#allocation2 + $0xb8] sm:$0xff] %vm287, -1e+30
        %312 = vst.msk [vmem:[#allocation2 + $0xc0] sm:$0xff] %vm287, -1e+30
        %313 = vst.msk [vmem:[#allocation2 + $0xc8] sm:$0xff] %vm287, -1e+30
        %314 = vst.msk [vmem:[#allocation2 + $0xd0] sm:$0xff] %vm287, -1e+30
        %315 = vst.msk [vmem:[#allocation2 + $0xd8] sm:$0xff] %vm287, -1e+30
        %316 = vst.msk [vmem:[#allocation2 + $0xe0] sm:$0xff] %vm287, -1e+30
        %317 = vst.msk [vmem:[#allocation2 + $0xe8] sm:$0xff] %vm287, -1e+30
        %318 = vst.msk [vmem:[#allocation2 + $0xf0] sm:$0xff] %vm287, -1e+30
        %319 = vst.msk [vmem:[#allocation2 + $0xf8] sm:$0xff] %vm287, -1e+30
        %320 = vst.msk [vmem:[#allocation3] sm:$0xff] %vm287, 0.0
        %321 = vst.msk [vmem:[#allocation3 + $0x8] sm:$0xff] %vm287, 0.0
        %322 = vst.msk [vmem:[#allocation3 + $0x10] sm:$0xff] %vm287, 0.0
        %323 = vst.msk [vmem:[#allocation3 + $0x18] sm:$0xff] %vm287, 0.0
        %324 = vst.msk [vmem:[#allocation3 + $0x20] sm:$0xff] %vm287, 0.0
        %325 = vst.msk [vmem:[#allocation3 + $0x28] sm:$0xff] %vm287, 0.0
        %326 = vst.msk [vmem:[#allocation3 + $0x30] sm:$0xff] %vm287, 0.0
        %327 = vst.msk [vmem:[#allocation3 + $0x38] sm:$0xff] %vm287, 0.0
        %328 = vst.msk [vmem:[#allocation3 + $0x40] sm:$0xff] %vm287, 0.0
        %329 = vst.msk [vmem:[#allocation3 + $0x48] sm:$0xff] %vm287, 0.0
        %330 = vst.msk [vmem:[#allocation3 + $0x50] sm:$0xff] %vm287, 0.0
        %331 = vst.msk [vmem:[#allocation3 + $0x58] sm:$0xff] %vm287, 0.0
        %332 = vst.msk [vmem:[#allocation3 + $0x60] sm:$0xff] %vm287, 0.0
        %333 = vst.msk [vmem:[#allocation3 + $0x68] sm:$0xff] %vm287, 0.0
        %334 = vst.msk [vmem:[#allocation3 + $0x70] sm:$0xff] %vm287, 0.0
        %335 = vst.msk [vmem:[#allocation3 + $0x78] sm:$0xff] %vm287, 0.0
        %336 = vst.msk [vmem:[#allocation3 + $0x80] sm:$0xff] %vm287, 0.0
        %337 = vst.msk [vmem:[#allocation3 + $0x88] sm:$0xff] %vm287, 0.0
        %338 = vst.msk [vmem:[#allocation3 + $0x90] sm:$0xff] %vm287, 0.0
        %339 = vst.msk [vmem:[#allocation3 + $0x98] sm:$0xff] %vm287, 0.0
        %340 = vst.msk [vmem:[#allocation3 + $0xa0] sm:$0xff] %vm287, 0.0
        %341 = vst.msk [vmem:[#allocation3 + $0xa8] sm:$0xff] %vm287, 0.0
        %342 = vst.msk [vmem:[#allocation3 + $0xb0] sm:$0xff] %vm287, 0.0
        %343 = vst.msk [vmem:[#allocation3 + $0xb8] sm:$0xff] %vm287, 0.0
        %344 = vst.msk [vmem:[#allocation3 + $0xc0] sm:$0xff] %vm287, 0.0
        %345 = vst.msk [vmem:[#allocation3 + $0xc8] sm:$0xff] %vm287, 0.0
        %346 = vst.msk [vmem:[#allocation3 + $0xd0] sm:$0xff] %vm287, 0.0
        %347 = vst.msk [vmem:[#allocation3 + $0xd8] sm:$0xff] %vm287, 0.0
        %348 = vst.msk [vmem:[#allocation3 + $0xe0] sm:$0xff] %vm287, 0.0
        %349 = vst.msk [vmem:[#allocation3 + $0xe8] sm:$0xff] %vm287, 0.0
        %350 = vst.msk [vmem:[#allocation3 + $0xf0] sm:$0xff] %vm287, 0.0
        %351 = vst.msk [vmem:[#allocation3 + $0xf8] sm:$0xff] %vm287, 0.0
        %352 = vst [vmem:[#allocation4] sm:$0xff] 0.0
        %353 = vst [vmem:[#allocation4 + $0x8] sm:$0xff] 0.0
        %354 = vst [vmem:[#allocation4 + $0x10] sm:$0xff] 0.0
        %355 = vst [vmem:[#allocation4 + $0x18] sm:$0xff] 0.0
        %356 = vst [vmem:[#allocation4 + $0x20] sm:$0xff] 0.0
        %357 = vst [vmem:[#allocation4 + $0x28] sm:$0xff] 0.0
        %358 = vst [vmem:[#allocation4 + $0x30] sm:$0xff] 0.0
        %359 = vst [vmem:[#allocation4 + $0x38] sm:$0xff] 0.0
        %360 = vst [vmem:[#allocation4 + $0x40] sm:$0xff] 0.0
        %361 = vst [vmem:[#allocation4 + $0x48] sm:$0xff] 0.0
        %362 = vst [vmem:[#allocation4 + $0x50] sm:$0xff] 0.0
        %363 = vst [vmem:[#allocation4 + $0x58] sm:$0xff] 0.0
        %364 = vst [vmem:[#allocation4 + $0x60] sm:$0xff] 0.0
        %365 = vst [vmem:[#allocation4 + $0x68] sm:$0xff] 0.0
        %366 = vst [vmem:[#allocation4 + $0x70] sm:$0xff] 0.0
        %367 = vst [vmem:[#allocation4 + $0x78] sm:$0xff] 0.0
        %368 = vst [vmem:[#allocation4 + $0x80] sm:$0xff] 0.0
        %369 = vst [vmem:[#allocation4 + $0x88] sm:$0xff] 0.0
        %370 = vst [vmem:[#allocation4 + $0x90] sm:$0xff] 0.0
        %371 = vst [vmem:[#allocation4 + $0x98] sm:$0xff] 0.0
        %372 = vst [vmem:[#allocation4 + $0xa0] sm:$0xff] 0.0
        %373 = vst [vmem:[#allocation4 + $0xa8] sm:$0xff] 0.0
        %374 = vst [vmem:[#allocation4 + $0xb0] sm:$0xff] 0.0
        %375 = vst [vmem:[#allocation4 + $0xb8] sm:$0xff] 0.0
        %376 = vst [vmem:[#allocation4 + $0xc0] sm:$0xff] 0.0
        %377 = vst [vmem:[#allocation4 + $0xc8] sm:$0xff] 0.0
        %378 = vst [vmem:[#allocation4 + $0xd0] sm:$0xff] 0.0
        %379 = vst [vmem:[#allocation4 + $0xd8] sm:$0xff] 0.0
        %380 = vst [vmem:[#allocation4 + $0xe0] sm:$0xff] 0.0
        %381 = vst [vmem:[#allocation4 + $0xe8] sm:$0xff] 0.0
        %382 = vst [vmem:[#allocation4 + $0xf0] sm:$0xff] 0.0
        %383 = vst [vmem:[#allocation4 + $0xf8] sm:$0xff] 0.0
        %v384 = vld [vmem:[%s233] sm:$0xf]
        %v385 = vld [vmem:[%s233 + $0x4] sm:$0xf]
        %v386 = vld [vmem:[%s233 + $0x8] sm:$0xf]
        %v387 = vld [vmem:[%s233 + $0xc] sm:$0xf]
        %v388 = vld [vmem:[%s233 + $0x10] sm:$0xf]
        %v389 = vld [vmem:[%s233 + $0x14] sm:$0xf]
        %v390 = vld [vmem:[%s233 + $0x18] sm:$0xf]
        %v391 = vld [vmem:[%s233 + $0x1c] sm:$0xf]
        %v392 = vld [vmem:[%s233 + $0x20] sm:$0xf]
        %v393 = vld [vmem:[%s233 + $0x24] sm:$0xf]
        %v394 = vld [vmem:[%s233 + $0x28] sm:$0xf]
        %v395 = vld [vmem:[%s233 + $0x2c] sm:$0xf]
        %v396 = vld [vmem:[%s233 + $0x30] sm:$0xf]
        %v397 = vld [vmem:[%s233 + $0x34] sm:$0xf]
        %v398 = vld [vmem:[%s233 + $0x38] sm:$0xf]
        %v399 = vld [vmem:[%s233 + $0x3c] sm:$0xf]
        %v400 = vld [vmem:[%s233 + $0x40] sm:$0xf]
        %v401 = vld [vmem:[%s233 + $0x44] sm:$0xf]
        %v402 = vld [vmem:[%s233 + $0x48] sm:$0xf]
        %v403 = vld [vmem:[%s233 + $0x4c] sm:$0xf]
        %v404 = vld [vmem:[%s233 + $0x50] sm:$0xf]
        %v405 = vld [vmem:[%s233 + $0x54] sm:$0xf]
        %v406 = vld [vmem:[%s233 + $0x58] sm:$0xf]
        %v407 = vld [vmem:[%s233 + $0x5c] sm:$0xf]
        %v408 = vld [vmem:[%s233 + $0x60] sm:$0xf]
        %v409 = vld [vmem:[%s233 + $0x64] sm:$0xf]
        %v410 = vld [vmem:[%s233 + $0x68] sm:$0xf]
        %v411 = vld [vmem:[%s233 + $0x6c] sm:$0xf]
        %v412 = vld [vmem:[%s233 + $0x70] sm:$0xf]
        %v413 = vld [vmem:[%s233 + $0x74] sm:$0xf]
        %v414 = vld [vmem:[%s233 + $0x78] sm:$0xf]
        %v415 = vld [vmem:[%s233 + $0x7c] sm:$0xf]
        %v416 = vunpack.c.l.bf16 %v384
        %v417 = vunpack.c.l.bf16 %v385
        %v418 = vunpack.c.l.bf16 %v386
        %v419 = vunpack.c.l.bf16 %v387
        %v420 = vunpack.c.l.bf16 %v388
        %v421 = vunpack.c.l.bf16 %v389
        %v422 = vunpack.c.l.bf16 %v390
        %v423 = vunpack.c.l.bf16 %v391
        %v424 = vunpack.c.l.bf16 %v392
        %v425 = vunpack.c.l.bf16 %v393
        %v426 = vunpack.c.l.bf16 %v394
        %v427 = vunpack.c.l.bf16 %v395
        %v428 = vunpack.c.l.bf16 %v396
        %v429 = vunpack.c.l.bf16 %v397
        %v430 = vunpack.c.l.bf16 %v398
        %v431 = vunpack.c.l.bf16 %v399
        %v432 = vunpack.c.l.bf16 %v400
        %v433 = vunpack.c.l.bf16 %v401
        %v434 = vunpack.c.l.bf16 %v402
        %v435 = vunpack.c.l.bf16 %v403
        %v436 = vunpack.c.l.bf16 %v404
        %v437 = vunpack.c.l.bf16 %v405
        %v438 = vunpack.c.l.bf16 %v406
        %v439 = vunpack.c.l.bf16 %v407
        %v440 = vunpack.c.l.bf16 %v408
        %v441 = vunpack.c.l.bf16 %v409
        %v442 = vunpack.c.l.bf16 %v410
        %v443 = vunpack.c.l.bf16 %v411
        %v444 = vunpack.c.l.bf16 %v412
        %v445 = vunpack.c.l.bf16 %v413
        %v446 = vunpack.c.l.bf16 %v414
        %v447 = vunpack.c.l.bf16 %v415
        %v448 = vmul.f32 %v416, 0.088388346
        %v449 = vmul.f32 %v417, 0.088388346
        %v450 = vmul.f32 %v418, 0.088388346
        %v451 = vmul.f32 %v419, 0.088388346
        %v452 = vmul.f32 %v420, 0.088388346
        %v453 = vmul.f32 %v421, 0.088388346
        %v454 = vmul.f32 %v422, 0.088388346
        %v455 = vmul.f32 %v423, 0.088388346
        %v456 = vmul.f32 %v424, 0.088388346
        %v457 = vmul.f32 %v425, 0.088388346
        %v458 = vmul.f32 %v426, 0.088388346
        %v459 = vmul.f32 %v427, 0.088388346
        %v460 = vmul.f32 %v428, 0.088388346
        %v461 = vmul.f32 %v429, 0.088388346
        %v462 = vmul.f32 %v430, 0.088388346
        %v463 = vmul.f32 %v431, 0.088388346
        %v464 = vmul.f32 %v432, 0.088388346
        %v465 = vmul.f32 %v433, 0.088388346
        %v466 = vmul.f32 %v434, 0.088388346
        %v467 = vmul.f32 %v435, 0.088388346
        %v468 = vmul.f32 %v436, 0.088388346
        %v469 = vmul.f32 %v437, 0.088388346
        %v470 = vmul.f32 %v438, 0.088388346
        %v471 = vmul.f32 %v439, 0.088388346
        %v472 = vmul.f32 %v440, 0.088388346
        %v473 = vmul.f32 %v441, 0.088388346
        %v474 = vmul.f32 %v442, 0.088388346
        %v475 = vmul.f32 %v443, 0.088388346
        %v476 = vmul.f32 %v444, 0.088388346
        %v477 = vmul.f32 %v445, 0.088388346
        %v478 = vmul.f32 %v446, 0.088388346
        %v479 = vmul.f32 %v447, 0.088388346
        %v480 = vpack.c.bf16 %v449, %v448
        %v481 = vpack.c.bf16 %v451, %v450
        %v482 = vpack.c.bf16 %v453, %v452
        %v483 = vpack.c.bf16 %v455, %v454
        %v484 = vpack.c.bf16 %v457, %v456
        %v485 = vpack.c.bf16 %v459, %v458
        %v486 = vpack.c.bf16 %v461, %v460
        %v487 = vpack.c.bf16 %v463, %v462
        %v488 = vpack.c.bf16 %v465, %v464
        %v489 = vpack.c.bf16 %v467, %v466
        %v490 = vpack.c.bf16 %v469, %v468
        %v491 = vpack.c.bf16 %v471, %v470
        %v492 = vpack.c.bf16 %v473, %v472
        %v493 = vpack.c.bf16 %v475, %v474
        %v494 = vpack.c.bf16 %v477, %v476
        %v495 = vpack.c.bf16 %v479, %v478
        // While loop
        $region45: #{tpu_custom_call.1} parent=31 // loop_pre_header
          _
        $region46: #{tpu_custom_call.1} parent=31 // loop_header
          %s497 = sphi 0, %s499
          %p498 = scmp.ge.s32.totalorder %s497, %s28
        $region47: #{tpu_custom_call.1} parent=31 // loop_header_branch
          %501 = sbr.rel (%p498) target = $region51
        $region48: #{tpu_custom_call.1} parent=31 // loop_body
          %s502 = smul.u32 %s497, 256
          %s503 = sshra.s32 %s502, 3
          %s504 = sand.u32 %s502, 7
          %s505 = smul.addr %s503, 4
          %s506 = scalar_lea.vmem %s242, %s505 [#allocation8]
          %v507 = vld [vmem:[%s506] sm:$0xf]
          %v508 = vld [vmem:[%s506 + $0x4] sm:$0xf]
          %v509 = vld [vmem:[%s506 + $0x8] sm:$0xf]
          %v510 = vld [vmem:[%s506 + $0xc] sm:$0xf]
          %v511 = vld [vmem:[%s506 + $0x10] sm:$0xf]
          %v512 = vld [vmem:[%s506 + $0x14] sm:$0xf]
          %v513 = vld [vmem:[%s506 + $0x18] sm:$0xf]
          %v514 = vld [vmem:[%s506 + $0x1c] sm:$0xf]
          %v515 = vld [vmem:[%s506 + $0x20] sm:$0xf]
          %v516 = vld [vmem:[%s506 + $0x24] sm:$0xf]
          %v517 = vld [vmem:[%s506 + $0x28] sm:$0xf]
          %v518 = vld [vmem:[%s506 + $0x2c] sm:$0xf]
          %v519 = vld [vmem:[%s506 + $0x30] sm:$0xf]
          %v520 = vld [vmem:[%s506 + $0x34] sm:$0xf]
          %v521 = vld [vmem:[%s506 + $0x38] sm:$0xf]
          %v522 = vld [vmem:[%s506 + $0x3c] sm:$0xf]
          %v523 = vld [vmem:[%s506 + $0x40] sm:$0xf]
          %v524 = vld [vmem:[%s506 + $0x44] sm:$0xf]
          %v525 = vld [vmem:[%s506 + $0x48] sm:$0xf]
          %v526 = vld [vmem:[%s506 + $0x4c] sm:$0xf]
          %v527 = vld [vmem:[%s506 + $0x50] sm:$0xf]
          %v528 = vld [vmem:[%s506 + $0x54] sm:$0xf]
          %v529 = vld [vmem:[%s506 + $0x58] sm:$0xf]
          %v530 = vld [vmem:[%s506 + $0x5c] sm:$0xf]
          %v531 = vld [vmem:[%s506 + $0x60] sm:$0xf]
          %v532 = vld [vmem:[%s506 + $0x64] sm:$0xf]
          %v533 = vld [vmem:[%s506 + $0x68] sm:$0xf]
          %v534 = vld [vmem:[%s506 + $0x6c] sm:$0xf]
          %v535 = vld [vmem:[%s506 + $0x70] sm:$0xf]
          %v536 = vld [vmem:[%s506 + $0x74] sm:$0xf]
          %v537 = vld [vmem:[%s506 + $0x78] sm:$0xf]
          %v538 = vld [vmem:[%s506 + $0x7c] sm:$0xf]
          %s539 = smul.addr %s503, 4
          %s540 = scalar_lea.vmem %s251, %s539 [#allocation10]
          %v541 = vld [vmem:[%s540] sm:$0xf]
          %v542 = vld [vmem:[%s540 + $0x4] sm:$0xf]
          %v543 = vld [vmem:[%s540 + $0x8] sm:$0xf]
          %v544 = vld [vmem:[%s540 + $0xc] sm:$0xf]
          %v545 = vld [vmem:[%s540 + $0x10] sm:$0xf]
          %v546 = vld [vmem:[%s540 + $0x14] sm:$0xf]
          %v547 = vld [vmem:[%s540 + $0x18] sm:$0xf]
          %v548 = vld [vmem:[%s540 + $0x1c] sm:$0xf]
          %v549 = vld [vmem:[%s540 + $0x20] sm:$0xf]
          %v550 = vld [vmem:[%s540 + $0x24] sm:$0xf]
          %v551 = vld [vmem:[%s540 + $0x28] sm:$0xf]
          %v552 = vld [vmem:[%s540 + $0x2c] sm:$0xf]
          %v553 = vld [vmem:[%s540 + $0x30] sm:$0xf]
          %v554 = vld [vmem:[%s540 + $0x34] sm:$0xf]
          %v555 = vld [vmem:[%s540 + $0x38] sm:$0xf]
          %v556 = vld [vmem:[%s540 + $0x3c] sm:$0xf]
          %v557 = vld [vmem:[%s540 + $0x40] sm:$0xf]
          %v558 = vld [vmem:[%s540 + $0x44] sm:$0xf]
          %v559 = vld [vmem:[%s540 + $0x48] sm:$0xf]
          %v560 = vld [vmem:[%s540 + $0x4c] sm:$0xf]
          %v561 = vld [vmem:[%s540 + $0x50] sm:$0xf]
          %v562 = vld [vmem:[%s540 + $0x54] sm:$0xf]
          %v563 = vld [vmem:[%s540 + $0x58] sm:$0xf]
          %v564 = vld [vmem:[%s540 + $0x5c] sm:$0xf]
          %v565 = vld [vmem:[%s540 + $0x60] sm:$0xf]
          %v566 = vld [vmem:[%s540 + $0x64] sm:$0xf]
          %v567 = vld [vmem:[%s540 + $0x68] sm:$0xf]
          %v568 = vld [vmem:[%s540 + $0x6c] sm:$0xf]
          %v569 = vld [vmem:[%s540 + $0x70] sm:$0xf]
          %v570 = vld [vmem:[%s540 + $0x74] sm:$0xf]
          %v571 = vld [vmem:[%s540 + $0x78] sm:$0xf]
          %v572 = vld [vmem:[%s540 + $0x7c] sm:$0xf]
          %v605 = vunpack.c.l.b16 %v507
          %v606 = vunpack.c.l.b16 %v508
          %v607 = vunpack.c.l.b16 %v509
          %v608 = vunpack.c.l.b16 %v510
          %v609 = vunpack.c.l.b16 %v511
          %v610 = vunpack.c.l.b16 %v512
          %v611 = vunpack.c.l.b16 %v513
          %v612 = vunpack.c.l.b16 %v514
          %v613 = vunpack.c.l.b16 %v515
          %v614 = vunpack.c.l.b16 %v516
          %v615 = vunpack.c.l.b16 %v517
          %v616 = vunpack.c.l.b16 %v518
          %v617 = vunpack.c.l.b16 %v519
          %v618 = vunpack.c.l.b16 %v520
          %v619 = vunpack.c.l.b16 %v521
          %v620 = vunpack.c.l.b16 %v522
          %v621 = vunpack.c.l.b16 %v523
          %v622 = vunpack.c.l.b16 %v524
          %v623 = vunpack.c.l.b16 %v525
          %v624 = vunpack.c.l.b16 %v526
          %v625 = vunpack.c.l.b16 %v527
          %v626 = vunpack.c.l.b16 %v528
          %v627 = vunpack.c.l.b16 %v529
          %v628 = vunpack.c.l.b16 %v530
          %v629 = vunpack.c.l.b16 %v531
          %v630 = vunpack.c.l.b16 %v532
          %v631 = vunpack.c.l.b16 %v533
          %v632 = vunpack.c.l.b16 %v534
          %v633 = vunpack.c.l.b16 %v535
          %v634 = vunpack.c.l.b16 %v536
          %v635 = vunpack.c.l.b16 %v537
          %v636 = vunpack.c.l.b16 %v538
          %v637 = vpack.c.b16 %v606, %v605
          %v638 = vpack.c.b16 %v608, %v607
          %v639 = vpack.c.b16 %v610, %v609
          %v640 = vpack.c.b16 %v612, %v611
          %v641 = vpack.c.b16 %v614, %v613
          %v642 = vpack.c.b16 %v616, %v615
          %v643 = vpack.c.b16 %v618, %v617
          %v644 = vpack.c.b16 %v620, %v619
          %v645 = vpack.c.b16 %v622, %v621
          %v646 = vpack.c.b16 %v624, %v623
          %v647 = vpack.c.b16 %v626, %v625
          %v648 = vpack.c.b16 %v628, %v627
          %v649 = vpack.c.b16 %v630, %v629
          %v650 = vpack.c.b16 %v632, %v631
          %v651 = vpack.c.b16 %v634, %v633
          %v652 = vpack.c.b16 %v636, %v635
          %669 = vmatprep.subr.bf16.mxu0 0
          %670 = vmatpush1.bf16.xpose.msra.mxu0 %v644
          %671 = vmatprep.subr.bf16.mxu0 0
          %672 = vmatpush1.bf16.xpose.msra.mxu0 %v643
          %673 = vmatprep.subr.bf16.mxu0 0
          %674 = vmatpush1.bf16.xpose.msra.mxu0 %v642
          %675 = vmatprep.subr.bf16.mxu0 0
          %676 = vmatpush1.bf16.xpose.msra.mxu0 %v641
          %677 = vmatprep.subr.bf16.mxu0 0
          %678 = vmatpush1.bf16.xpose.msra.mxu0 %v640
          %679 = vmatprep.subr.bf16.mxu0 0
          %680 = vmatpush1.bf16.xpose.msra.mxu0 %v639
          %681 = vmatprep.subr.bf16.mxu0 0
          %682 = vmatpush1.bf16.xpose.msra.mxu0 %v638
          %683 = vmatprep.subr.bf16.mxu0 0
          %684 = vmatpush1.bf16.xpose.msra.mxu0 %v637
          %685 = vmatprep.subr.bf16.mxu0 0
          %686 = vmatpush2.bf16.xpose.msra.mxu0 %v652
          %687 = vmatprep.subr.bf16.mxu0 0
          %688 = vmatpush2.bf16.xpose.msra.mxu0 %v651
          %689 = vmatprep.subr.bf16.mxu0 0
          %690 = vmatpush2.bf16.xpose.msra.mxu0 %v650
          %691 = vmatprep.subr.bf16.mxu0 0
          %692 = vmatpush2.bf16.xpose.msra.mxu0 %v649
          %693 = vmatprep.subr.bf16.mxu0 0
          %694 = vmatpush2.bf16.xpose.msra.mxu0 %v648
          %695 = vmatprep.subr.bf16.mxu0 0
          %696 = vmatpush2.bf16.xpose.msra.mxu0 %v647
          %697 = vmatprep.subr.bf16.mxu0 0
          %698 = vmatpush2.bf16.xpose.msra.mxu0 %v646
          %699 = vmatprep.subr.bf16.mxu0 0
          %700 = vmatpush2.bf16.xpose.msra.mxu0 %v645
          %701 = vmatprep.mubr.bf16.mxu0 0
          %702 = vmatmul.mubr.bf16.gmra.mxu0 %v480
          %v703 = vpop.f32.mrf.mxu0
          %v704 = vadd.f32 0.0, %v703
          %v705 = vpop.f32.mrf.mxu0
          %v706 = vadd.f32 0.0, %v705
          %v707 = vpop.f32.mrf.mxu0
          %v708 = vadd.f32 0.0, %v707
          %v709 = vpop.f32.mrf.mxu0
          %v710 = vadd.f32 0.0, %v709
          %711 = vmatprep.mubr.bf16.mxu0 0
          %712 = vmatmul.mubr.bf16.gmra.mxu0 %v481
          %v713 = vpop.f32.mrf.mxu0
          %v714 = vadd.f32 0.0, %v713
          %v715 = vpop.f32.mrf.mxu0
          %v716 = vadd.f32 0.0, %v715
          %v717 = vpop.f32.mrf.mxu0
          %v718 = vadd.f32 0.0, %v717
          %v719 = vpop.f32.mrf.mxu0
          %v720 = vadd.f32 0.0, %v719
          %721 = vmatprep.mubr.bf16.mxu0 0
          %722 = vmatmul.mubr.bf16.gmra.mxu0 %v482
          %v723 = vpop.f32.mrf.mxu0
          %v724 = vadd.f32 0.0, %v723
          %v725 = vpop.f32.mrf.mxu0
          %v726 = vadd.f32 0.0, %v725
          %v727 = vpop.f32.mrf.mxu0
          %v728 = vadd.f32 0.0, %v727
          %v729 = vpop.f32.mrf.mxu0
          %v730 = vadd.f32 0.0, %v729
          %731 = vmatprep.mubr.bf16.mxu0 0
          %732 = vmatmul.mubr.bf16.gmra.mxu0 %v483
          %v733 = vpop.f32.mrf.mxu0
          %v734 = vadd.f32 0.0, %v733
          %v735 = vpop.f32.mrf.mxu0
          %v736 = vadd.f32 0.0, %v735
          %v737 = vpop.f32.mrf.mxu0
          %v738 = vadd.f32 0.0, %v737
          %v739 = vpop.f32.mrf.mxu0
          %v740 = vadd.f32 0.0, %v739
          %741 = vmatprep.mubr.bf16.mxu0 0
          %742 = vmatmul.mubr.bf16.gmra.mxu0 %v484
          %v743 = vpop.f32.mrf.mxu0
          %v744 = vadd.f32 0.0, %v743
          %v745 = vpop.f32.mrf.mxu0
          %v746 = vadd.f32 0.0, %v745
          %v747 = vpop.f32.mrf.mxu0
          %v748 = vadd.f32 0.0, %v747
          %v749 = vpop.f32.mrf.mxu0
          %v750 = vadd.f32 0.0, %v749
          %751 = vmatprep.mubr.bf16.mxu0 0
          %752 = vmatmul.mubr.bf16.gmra.mxu0 %v485
          %v753 = vpop.f32.mrf.mxu0
          %v754 = vadd.f32 0.0, %v753
          %v755 = vpop.f32.mrf.mxu0
          %v756 = vadd.f32 0.0, %v755
          %v757 = vpop.f32.mrf.mxu0
          %v758 = vadd.f32 0.0, %v757
          %v759 = vpop.f32.mrf.mxu0
          %v760 = vadd.f32 0.0, %v759
          %761 = vmatprep.mubr.bf16.mxu0 0
          %762 = vmatmul.mubr.bf16.gmra.mxu0 %v486
          %v763 = vpop.f32.mrf.mxu0
          %v764 = vadd.f32 0.0, %v763
          %v765 = vpop.f32.mrf.mxu0
          %v766 = vadd.f32 0.0, %v765
          %v767 = vpop.f32.mrf.mxu0
          %v768 = vadd.f32 0.0, %v767
          %v769 = vpop.f32.mrf.mxu0
          %v770 = vadd.f32 0.0, %v769
          %771 = vmatprep.mubr.bf16.mxu0 0
          %772 = vmatmul.mubr.bf16.gmra.mxu0 %v487
          %v773 = vpop.f32.mrf.mxu0
          %v774 = vadd.f32 0.0, %v773
          %v775 = vpop.f32.mrf.mxu0
          %v776 = vadd.f32 0.0, %v775
          %v777 = vpop.f32.mrf.mxu0
          %v778 = vadd.f32 0.0, %v777
          %v779 = vpop.f32.mrf.mxu0
          %v780 = vadd.f32 0.0, %v779
          %781 = vmatprep.mubr.bf16.mxu0 0
          %782 = vmatmul.mubr.bf16.gmra.mxu0 %v488
          %v783 = vpop.f32.mrf.mxu0
          %v784 = vadd.f32 0.0, %v783
          %v785 = vpop.f32.mrf.mxu0
          %v786 = vadd.f32 0.0, %v785
          %v787 = vpop.f32.mrf.mxu0
          %v788 = vadd.f32 0.0, %v787
          %v789 = vpop.f32.mrf.mxu0
          %v790 = vadd.f32 0.0, %v789
          %791 = vmatprep.mubr.bf16.mxu0 0
          %792 = vmatmul.mubr.bf16.gmra.mxu0 %v489
          %v793 = vpop.f32.mrf.mxu0
          %v794 = vadd.f32 0.0, %v793
          %v795 = vpop.f32.mrf.mxu0
          %v796 = vadd.f32 0.0, %v795
          %v797 = vpop.f32.mrf.mxu0
          %v798 = vadd.f32 0.0, %v797
          %v799 = vpop.f32.mrf.mxu0
          %v800 = vadd.f32 0.0, %v799
          %801 = vmatprep.mubr.bf16.mxu0 0
          %802 = vmatmul.mubr.bf16.gmra.mxu0 %v490
          %v803 = vpop.f32.mrf.mxu0
          %v804 = vadd.f32 0.0, %v803
          %v805 = vpop.f32.mrf.mxu0
          %v806 = vadd.f32 0.0, %v805
          %v807 = vpop.f32.mrf.mxu0
          %v808 = vadd.f32 0.0, %v807
          %v809 = vpop.f32.mrf.mxu0
          %v810 = vadd.f32 0.0, %v809
          %811 = vmatprep.mubr.bf16.mxu0 0
          %812 = vmatmul.mubr.bf16.gmra.mxu0 %v491
          %v813 = vpop.f32.mrf.mxu0
          %v814 = vadd.f32 0.0, %v813
          %v815 = vpop.f32.mrf.mxu0
          %v816 = vadd.f32 0.0, %v815
          %v817 = vpop.f32.mrf.mxu0
          %v818 = vadd.f32 0.0, %v817
          %v819 = vpop.f32.mrf.mxu0
          %v820 = vadd.f32 0.0, %v819
          %821 = vmatprep.mubr.bf16.mxu0 0
          %822 = vmatmul.mubr.bf16.gmra.mxu0 %v492
          %v823 = vpop.f32.mrf.mxu0
          %v824 = vadd.f32 0.0, %v823
          %v825 = vpop.f32.mrf.mxu0
          %v826 = vadd.f32 0.0, %v825
          %v827 = vpop.f32.mrf.mxu0
          %v828 = vadd.f32 0.0, %v827
          %v829 = vpop.f32.mrf.mxu0
          %v830 = vadd.f32 0.0, %v829
          %831 = vmatprep.mubr.bf16.mxu0 0
          %832 = vmatmul.mubr.bf16.gmra.mxu0 %v493
          %v833 = vpop.f32.mrf.mxu0
          %v834 = vadd.f32 0.0, %v833
          %v835 = vpop.f32.mrf.mxu0
          %v836 = vadd.f32 0.0, %v835
          %v837 = vpop.f32.mrf.mxu0
          %v838 = vadd.f32 0.0, %v837
          %v839 = vpop.f32.mrf.mxu0
          %v840 = vadd.f32 0.0, %v839
          %841 = vmatprep.mubr.bf16.mxu0 0
          %842 = vmatmul.mubr.bf16.gmra.mxu0 %v494
          %v843 = vpop.f32.mrf.mxu0
          %v844 = vadd.f32 0.0, %v843
          %v845 = vpop.f32.mrf.mxu0
          %v846 = vadd.f32 0.0, %v845
          %v847 = vpop.f32.mrf.mxu0
          %v848 = vadd.f32 0.0, %v847
          %v849 = vpop.f32.mrf.mxu0
          %v850 = vadd.f32 0.0, %v849
          %851 = vmatprep.mubr.bf16.mxu0 0
          %852 = vmatmul.mubr.bf16.gmra.mxu0 %v495
          %v853 = vpop.f32.mrf.mxu0
          %v854 = vadd.f32 0.0, %v853
          %v855 = vpop.f32.mrf.mxu0
          %v856 = vadd.f32 0.0, %v855
          %v857 = vpop.f32.mrf.mxu0
          %v858 = vadd.f32 0.0, %v857
          %v859 = vpop.f32.mrf.mxu0
          %v860 = vadd.f32 0.0, %v859
          %861 = vdwg.mxu0
          %v862 = vld [vmem:[#allocation2] sm:$0xff]
          %v863 = vld [vmem:[#allocation2 + $0x8] sm:$0xff]
          %v864 = vld [vmem:[#allocation2 + $0x10] sm:$0xff]
          %v865 = vld [vmem:[#allocation2 + $0x18] sm:$0xff]
          %v866 = vld [vmem:[#allocation2 + $0x20] sm:$0xff]
          %v867 = vld [vmem:[#allocation2 + $0x28] sm:$0xff]
          %v868 = vld [vmem:[#allocation2 + $0x30] sm:$0xff]
          %v869 = vld [vmem:[#allocation2 + $0x38] sm:$0xff]
          %v870 = vld [vmem:[#allocation2 + $0x40] sm:$0xff]
          %v871 = vld [vmem:[#allocation2 + $0x48] sm:$0xff]
          %v872 = vld [vmem:[#allocation2 + $0x50] sm:$0xff]
          %v873 = vld [vmem:[#allocation2 + $0x58] sm:$0xff]
          %v874 = vld [vmem:[#allocation2 + $0x60] sm:$0xff]
          %v875 = vld [vmem:[#allocation2 + $0x68] sm:$0xff]
          %v876 = vld [vmem:[#allocation2 + $0x70] sm:$0xff]
          %v877 = vld [vmem:[#allocation2 + $0x78] sm:$0xff]
          %v878 = vld [vmem:[#allocation2 + $0x80] sm:$0xff]
          %v879 = vld [vmem:[#allocation2 + $0x88] sm:$0xff]
          %v880 = vld [vmem:[#allocation2 + $0x90] sm:$0xff]
          %v881 = vld [vmem:[#allocation2 + $0x98] sm:$0xff]
          %v882 = vld [vmem:[#allocation2 + $0xa0] sm:$0xff]
          %v883 = vld [vmem:[#allocation2 + $0xa8] sm:$0xff]
          %v884 = vld [vmem:[#allocation2 + $0xb0] sm:$0xff]
          %v885 = vld [vmem:[#allocation2 + $0xb8] sm:$0xff]
          %v886 = vld [vmem:[#allocation2 + $0xc0] sm:$0xff]
          %v887 = vld [vmem:[#allocation2 + $0xc8] sm:$0xff]
          %v888 = vld [vmem:[#allocation2 + $0xd0] sm:$0xff]
          %v889 = vld [vmem:[#allocation2 + $0xd8] sm:$0xff]
          %v890 = vld [vmem:[#allocation2 + $0xe0] sm:$0xff]
          %v891 = vld [vmem:[#allocation2 + $0xe8] sm:$0xff]
          %v892 = vld [vmem:[#allocation2 + $0xf0] sm:$0xff]
          %v893 = vld [vmem:[#allocation2 + $0xf8] sm:$0xff]
          %v894 = vmax.f32 %v704, %v706
          %895 = vmax.xlane.f32.xlu0 %v894
          %v896 = vpop.xlane.xlu0 %895
          %v897 = vmax.f32 %v708, %v710
          %898 = vmax.xlane.f32.xlu0 %v897
          %v899 = vpop.xlane.xlu0 %898
          %v900 = vmax.f32 %v714, %v716
          %901 = vmax.xlane.f32.xlu0 %v900
          %v902 = vpop.xlane.xlu0 %901
          %v903 = vmax.f32 %v718, %v720
          %904 = vmax.xlane.f32.xlu0 %v903
          %v905 = vpop.xlane.xlu0 %904
          %v906 = vmax.f32 %v724, %v726
          %907 = vmax.xlane.f32.xlu0 %v906
          %v908 = vpop.xlane.xlu0 %907
          %v909 = vmax.f32 %v728, %v730
          %910 = vmax.xlane.f32.xlu0 %v909
          %v911 = vpop.xlane.xlu0 %910
          %v912 = vmax.f32 %v734, %v736
          %913 = vmax.xlane.f32.xlu0 %v912
          %v914 = vpop.xlane.xlu0 %913
          %v915 = vmax.f32 %v738, %v740
          %916 = vmax.xlane.f32.xlu0 %v915
          %v917 = vpop.xlane.xlu0 %916
          %v918 = vmax.f32 %v744, %v746
          %919 = vmax.xlane.f32.xlu0 %v918
          %v920 = vpop.xlane.xlu0 %919
          %v921 = vmax.f32 %v748, %v750
          %922 = vmax.xlane.f32.xlu0 %v921
          %v923 = vpop.xlane.xlu0 %922
          %v924 = vmax.f32 %v754, %v756
          %925 = vmax.xlane.f32.xlu0 %v924
          %v926 = vpop.xlane.xlu0 %925
          %v927 = vmax.f32 %v758, %v760
          %928 = vmax.xlane.f32.xlu0 %v927
          %v929 = vpop.xlane.xlu0 %928
          %v930 = vmax.f32 %v764, %v766
          %931 = vmax.xlane.f32.xlu0 %v930
          %v932 = vpop.xlane.xlu0 %931
          %v933 = vmax.f32 %v768, %v770
          %934 = vmax.xlane.f32.xlu0 %v933
          %v935 = vpop.xlane.xlu0 %934
          %v936 = vmax.f32 %v774, %v776
          %937 = vmax.xlane.f32.xlu0 %v936
          %v938 = vpop.xlane.xlu0 %937
          %v939 = vmax.f32 %v778, %v780
          %940 = vmax.xlane.f32.xlu0 %v939
          %v941 = vpop.xlane.xlu0 %940
          %v942 = vmax.f32 %v784, %v786
          %943 = vmax.xlane.f32.xlu0 %v942
          %v944 = vpop.xlane.xlu0 %943
          %v945 = vmax.f32 %v788, %v790
          %946 = vmax.xlane.f32.xlu0 %v945
          %v947 = vpop.xlane.xlu0 %946
          %v948 = vmax.f32 %v794, %v796
          %949 = vmax.xlane.f32.xlu0 %v948
          %v950 = vpop.xlane.xlu0 %949
          %v951 = vmax.f32 %v798, %v800
          %952 = vmax.xlane.f32.xlu0 %v951
          %v953 = vpop.xlane.xlu0 %952
          %v954 = vmax.f32 %v804, %v806
          %955 = vmax.xlane.f32.xlu0 %v954
          %v956 = vpop.xlane.xlu0 %955
          %v957 = vmax.f32 %v808, %v810
          %958 = vmax.xlane.f32.xlu0 %v957
          %v959 = vpop.xlane.xlu0 %958
          %v960 = vmax.f32 %v814, %v816
          %961 = vmax.xlane.f32.xlu0 %v960
          %v962 = vpop.xlane.xlu0 %961
          %v963 = vmax.f32 %v818, %v820
          %964 = vmax.xlane.f32.xlu0 %v963
          %v965 = vpop.xlane.xlu0 %964
          %v966 = vmax.f32 %v824, %v826
          %967 = vmax.xlane.f32.xlu0 %v966
          %v968 = vpop.xlane.xlu0 %967
          %v969 = vmax.f32 %v828, %v830
          %970 = vmax.xlane.f32.xlu0 %v969
          %v971 = vpop.xlane.xlu0 %970
          %v972 = vmax.f32 %v834, %v836
          %973 = vmax.xlane.f32.xlu0 %v972
          %v974 = vpop.xlane.xlu0 %973
          %v975 = vmax.f32 %v838, %v840
          %976 = vmax.xlane.f32.xlu0 %v975
          %v977 = vpop.xlane.xlu0 %976
          %v978 = vmax.f32 %v844, %v846
          %979 = vmax.xlane.f32.xlu0 %v978
          %v980 = vpop.xlane.xlu0 %979
          %v981 = vmax.f32 %v848, %v850
          %982 = vmax.xlane.f32.xlu0 %v981
          %v983 = vpop.xlane.xlu0 %982
          %v984 = vmax.f32 %v854, %v856
          %985 = vmax.xlane.f32.xlu0 %v984
          %v986 = vpop.xlane.xlu0 %985
          %v987 = vmax.f32 %v858, %v860
          %988 = vmax.xlane.f32.xlu0 %v987
          %v989 = vpop.xlane.xlu0 %988
          %v990 = vmax.f32 %v862, %v896
          %v991 = vmax.f32 %v863, %v899
          %v992 = vmax.f32 %v864, %v902
          %v993 = vmax.f32 %v865, %v905
          %v994 = vmax.f32 %v866, %v908
          %v995 = vmax.f32 %v867, %v911
          %v996 = vmax.f32 %v868, %v914
          %v997 = vmax.f32 %v869, %v917
          %v998 = vmax.f32 %v870, %v920
          %v999 = vmax.f32 %v871, %v923
          %v1000 = vmax.f32 %v872, %v926
          %v1001 = vmax.f32 %v873, %v929
          %v1002 = vmax.f32 %v874, %v932
          %v1003 = vmax.f32 %v875, %v935
          %v1004 = vmax.f32 %v876, %v938
          %v1005 = vmax.f32 %v877, %v941
          %v1006 = vmax.f32 %v878, %v944
          %v1007 = vmax.f32 %v879, %v947
          %v1008 = vmax.f32 %v880, %v950
          %v1009 = vmax.f32 %v881, %v953
          %v1010 = vmax.f32 %v882, %v956
          %v1011 = vmax.f32 %v883, %v959
          %v1012 = vmax.f32 %v884, %v962
          %v1013 = vmax.f32 %v885, %v965
          %v1014 = vmax.f32 %v886, %v968
          %v1015 = vmax.f32 %v887, %v971
          %v1016 = vmax.f32 %v888, %v974
          %v1017 = vmax.f32 %v889, %v977
          %v1018 = vmax.f32 %v890, %v980
          %v1019 = vmax.f32 %v891, %v983
          %v1020 = vmax.f32 %v892, %v986
          %v1021 = vmax.f32 %v893, %v989
          %v1022 = vsub.f32 %v862, %v990
          %v1023 = vsub.f32 %v863, %v991
          %v1024 = vsub.f32 %v864, %v992
          %v1025 = vsub.f32 %v865, %v993
          %v1026 = vsub.f32 %v866, %v994
          %v1027 = vsub.f32 %v867, %v995
          %v1028 = vsub.f32 %v868, %v996
          %v1029 = vsub.f32 %v869, %v997
          %v1030 = vsub.f32 %v870, %v998
          %v1031 = vsub.f32 %v871, %v999
          %v1032 = vsub.f32 %v872, %v1000
          %v1033 = vsub.f32 %v873, %v1001
          %v1034 = vsub.f32 %v874, %v1002
          %v1035 = vsub.f32 %v875, %v1003
          %v1036 = vsub.f32 %v876, %v1004
          %v1037 = vsub.f32 %v877, %v1005
          %v1038 = vsub.f32 %v878, %v1006
          %v1039 = vsub.f32 %v879, %v1007
          %v1040 = vsub.f32 %v880, %v1008
          %v1041 = vsub.f32 %v881, %v1009
          %v1042 = vsub.f32 %v882, %v1010
          %v1043 = vsub.f32 %v883, %v1011
          %v1044 = vsub.f32 %v884, %v1012
          %v1045 = vsub.f32 %v885, %v1013
          %v1046 = vsub.f32 %v886, %v1014
          %v1047 = vsub.f32 %v887, %v1015
          %v1048 = vsub.f32 %v888, %v1016
          %v1049 = vsub.f32 %v889, %v1017
          %v1050 = vsub.f32 %v890, %v1018
          %v1051 = vsub.f32 %v891, %v1019
          %v1052 = vsub.f32 %v892, %v1020
          %v1053 = vsub.f32 %v893, %v1021
          %v1054 = vmul.f32 %v1022, 1.442695
          %v1055 = vpow.pop %v1054
          %v1056 = vmul.f32 %v1023, 1.442695
          %v1057 = vpow.pop %v1056
          %v1058 = vmul.f32 %v1024, 1.442695
          %v1059 = vpow.pop %v1058
          %v1060 = vmul.f32 %v1025, 1.442695
          %v1061 = vpow.pop %v1060
          %v1062 = vmul.f32 %v1026, 1.442695
          %v1063 = vpow.pop %v1062
          %v1064 = vmul.f32 %v1027, 1.442695
          %v1065 = vpow.pop %v1064
          %v1066 = vmul.f32 %v1028, 1.442695
          %v1067 = vpow.pop %v1066
          %v1068 = vmul.f32 %v1029, 1.442695
          %v1069 = vpow.pop %v1068
          %v1070 = vmul.f32 %v1030, 1.442695
          %v1071 = vpow.pop %v1070
          %v1072 = vmul.f32 %v1031, 1.442695
          %v1073 = vpow.pop %v1072
          %v1074 = vmul.f32 %v1032, 1.442695
          %v1075 = vpow.pop %v1074
          %v1076 = vmul.f32 %v1033, 1.442695
          %v1077 = vpow.pop %v1076
          %v1078 = vmul.f32 %v1034, 1.442695
          %v1079 = vpow.pop %v1078
          %v1080 = vmul.f32 %v1035, 1.442695
          %v1081 = vpow.pop %v1080
          %v1082 = vmul.f32 %v1036, 1.442695
          %v1083 = vpow.pop %v1082
          %v1084 = vmul.f32 %v1037, 1.442695
          %v1085 = vpow.pop %v1084
          %v1086 = vmul.f32 %v1038, 1.442695
          %v1087 = vpow.pop %v1086
          %v1088 = vmul.f32 %v1039, 1.442695
          %v1089 = vpow.pop %v1088
          %v1090 = vmul.f32 %v1040, 1.442695
          %v1091 = vpow.pop %v1090
          %v1092 = vmul.f32 %v1041, 1.442695
          %v1093 = vpow.pop %v1092
          %v1094 = vmul.f32 %v1042, 1.442695
          %v1095 = vpow.pop %v1094
          %v1096 = vmul.f32 %v1043, 1.442695
          %v1097 = vpow.pop %v1096
          %v1098 = vmul.f32 %v1044, 1.442695
          %v1099 = vpow.pop %v1098
          %v1100 = vmul.f32 %v1045, 1.442695
          %v1101 = vpow.pop %v1100
          %v1102 = vmul.f32 %v1046, 1.442695
          %v1103 = vpow.pop %v1102
          %v1104 = vmul.f32 %v1047, 1.442695
          %v1105 = vpow.pop %v1104
          %v1106 = vmul.f32 %v1048, 1.442695
          %v1107 = vpow.pop %v1106
          %v1108 = vmul.f32 %v1049, 1.442695
          %v1109 = vpow.pop %v1108
          %v1110 = vmul.f32 %v1050, 1.442695
          %v1111 = vpow.pop %v1110
          %v1112 = vmul.f32 %v1051, 1.442695
          %v1113 = vpow.pop %v1112
          %v1114 = vmul.f32 %v1052, 1.442695
          %v1115 = vpow.pop %v1114
          %v1116 = vmul.f32 %v1053, 1.442695
          %v1117 = vpow.pop %v1116
          %1119 = vset.pattern.permute.xlu0 0
          %1120 = vperm.xlu0 %1119, %v990
          %v1121 = vpop.permute.xlu0 %1120
          %1124 = vset.pattern.permute.xlu0 0
          %1125 = vperm.xlu0 %1124, %v991
          %v1126 = vpop.permute.xlu0 %1125
          %1129 = vset.pattern.permute.xlu0 0
          %1130 = vperm.xlu0 %1129, %v992
          %v1131 = vpop.permute.xlu0 %1130
          %1134 = vset.pattern.permute.xlu0 0
          %1135 = vperm.xlu0 %1134, %v993
          %v1136 = vpop.permute.xlu0 %1135
          %1139 = vset.pattern.permute.xlu0 0
          %1140 = vperm.xlu0 %1139, %v994
          %v1141 = vpop.permute.xlu0 %1140
          %1144 = vset.pattern.permute.xlu0 0
          %1145 = vperm.xlu0 %1144, %v995
          %v1146 = vpop.permute.xlu0 %1145
          %1149 = vset.pattern.permute.xlu0 0
          %1150 = vperm.xlu0 %1149, %v996
          %v1151 = vpop.permute.xlu0 %1150
          %1154 = vset.pattern.permute.xlu0 0
          %1155 = vperm.xlu0 %1154, %v997
          %v1156 = vpop.permute.xlu0 %1155
          %1159 = vset.pattern.permute.xlu0 0
          %1160 = vperm.xlu0 %1159, %v998
          %v1161 = vpop.permute.xlu0 %1160
          %1164 = vset.pattern.permute.xlu0 0
          %1165 = vperm.xlu0 %1164, %v999
          %v1166 = vpop.permute.xlu0 %1165
          %1169 = vset.pattern.permute.xlu0 0
          %1170 = vperm.xlu0 %1169, %v1000
          %v1171 = vpop.permute.xlu0 %1170
          %1174 = vset.pattern.permute.xlu0 0
          %1175 = vperm.xlu0 %1174, %v1001
          %v1176 = vpop.permute.xlu0 %1175
          %1179 = vset.pattern.permute.xlu0 0
          %1180 = vperm.xlu0 %1179, %v1002
          %v1181 = vpop.permute.xlu0 %1180
          %1184 = vset.pattern.permute.xlu0 0
          %1185 = vperm.xlu0 %1184, %v1003
          %v1186 = vpop.permute.xlu0 %1185
          %1189 = vset.pattern.permute.xlu0 0
          %1190 = vperm.xlu0 %1189, %v1004
          %v1191 = vpop.permute.xlu0 %1190
          %1194 = vset.pattern.permute.xlu0 0
          %1195 = vperm.xlu0 %1194, %v1005
          %v1196 = vpop.permute.xlu0 %1195
          %1199 = vset.pattern.permute.xlu0 0
          %1200 = vperm.xlu0 %1199, %v1006
          %v1201 = vpop.permute.xlu0 %1200
          %1204 = vset.pattern.permute.xlu0 0
          %1205 = vperm.xlu0 %1204, %v1007
          %v1206 = vpop.permute.xlu0 %1205
          %1209 = vset.pattern.permute.xlu0 0
          %1210 = vperm.xlu0 %1209, %v1008
          %v1211 = vpop.permute.xlu0 %1210
          %1214 = vset.pattern.permute.xlu0 0
          %1215 = vperm.xlu0 %1214, %v1009
          %v1216 = vpop.permute.xlu0 %1215
          %1219 = vset.pattern.permute.xlu0 0
          %1220 = vperm.xlu0 %1219, %v1010
          %v1221 = vpop.permute.xlu0 %1220
          %1224 = vset.pattern.permute.xlu0 0
          %1225 = vperm.xlu0 %1224, %v1011
          %v1226 = vpop.permute.xlu0 %1225
          %1229 = vset.pattern.permute.xlu0 0
          %1230 = vperm.xlu0 %1229, %v1012
          %v1231 = vpop.permute.xlu0 %1230
          %1234 = vset.pattern.permute.xlu0 0
          %1235 = vperm.xlu0 %1234, %v1013
          %v1236 = vpop.permute.xlu0 %1235
          %1239 = vset.pattern.permute.xlu0 0
          %1240 = vperm.xlu0 %1239, %v1014
          %v1241 = vpop.permute.xlu0 %1240
          %1244 = vset.pattern.permute.xlu0 0
          %1245 = vperm.xlu0 %1244, %v1015
          %v1246 = vpop.permute.xlu0 %1245
          %1249 = vset.pattern.permute.xlu0 0
          %1250 = vperm.xlu0 %1249, %v1016
          %v1251 = vpop.permute.xlu0 %1250
          %1254 = vset.pattern.permute.xlu0 0
          %1255 = vperm.xlu0 %1254, %v1017
          %v1256 = vpop.permute.xlu0 %1255
          %1259 = vset.pattern.permute.xlu0 0
          %1260 = vperm.xlu0 %1259, %v1018
          %v1261 = vpop.permute.xlu0 %1260
          %1264 = vset.pattern.permute.xlu0 0
          %1265 = vperm.xlu0 %1264, %v1019
          %v1266 = vpop.permute.xlu0 %1265
          %1269 = vset.pattern.permute.xlu0 0
          %1270 = vperm.xlu0 %1269, %v1020
          %v1271 = vpop.permute.xlu0 %1270
          %1274 = vset.pattern.permute.xlu0 0
          %1275 = vperm.xlu0 %1274, %v1021
          %v1276 = vpop.permute.xlu0 %1275
          %v1278 = vsub.f32 %v704, %v1121
          %v1279 = vsub.f32 %v706, %v1121
          %v1280 = vsub.f32 %v708, %v1126
          %v1281 = vsub.f32 %v710, %v1126
          %v1282 = vsub.f32 %v714, %v1131
          %v1283 = vsub.f32 %v716, %v1131
          %v1284 = vsub.f32 %v718, %v1136
          %v1285 = vsub.f32 %v720, %v1136
          %v1286 = vsub.f32 %v724, %v1141
          %v1287 = vsub.f32 %v726, %v1141
          %v1288 = vsub.f32 %v728, %v1146
          %v1289 = vsub.f32 %v730, %v1146
          %v1290 = vsub.f32 %v734, %v1151
          %v1291 = vsub.f32 %v736, %v1151
          %v1292 = vsub.f32 %v738, %v1156
          %v1293 = vsub.f32 %v740, %v1156
          %v1294 = vsub.f32 %v744, %v1161
          %v1295 = vsub.f32 %v746, %v1161
          %v1296 = vsub.f32 %v748, %v1166
          %v1297 = vsub.f32 %v750, %v1166
          %v1298 = vsub.f32 %v754, %v1171
          %v1299 = vsub.f32 %v756, %v1171
          %v1300 = vsub.f32 %v758, %v1176
          %v1301 = vsub.f32 %v760, %v1176
          %v1302 = vsub.f32 %v764, %v1181
          %v1303 = vsub.f32 %v766, %v1181
          %v1304 = vsub.f32 %v768, %v1186
          %v1305 = vsub.f32 %v770, %v1186
          %v1306 = vsub.f32 %v774, %v1191
          %v1307 = vsub.f32 %v776, %v1191
          %v1308 = vsub.f32 %v778, %v1196
          %v1309 = vsub.f32 %v780, %v1196
          %v1310 = vsub.f32 %v784, %v1201
          %v1311 = vsub.f32 %v786, %v1201
          %v1312 = vsub.f32 %v788, %v1206
          %v1313 = vsub.f32 %v790, %v1206
          %v1314 = vsub.f32 %v794, %v1211
          %v1315 = vsub.f32 %v796, %v1211
          %v1316 = vsub.f32 %v798, %v1216
          %v1317 = vsub.f32 %v800, %v1216
          %v1318 = vsub.f32 %v804, %v1221
          %v1319 = vsub.f32 %v806, %v1221
          %v1320 = vsub.f32 %v808, %v1226
          %v1321 = vsub.f32 %v810, %v1226
          %v1322 = vsub.f32 %v814, %v1231
          %v1323 = vsub.f32 %v816, %v1231
          %v1324 = vsub.f32 %v818, %v1236
          %v1325 = vsub.f32 %v820, %v1236
          %v1326 = vsub.f32 %v824, %v1241
          %v1327 = vsub.f32 %v826, %v1241
          %v1328 = vsub.f32 %v828, %v1246
          %v1329 = vsub.f32 %v830, %v1246
          %v1330 = vsub.f32 %v834, %v1251
          %v1331 = vsub.f32 %v836, %v1251
          %v1332 = vsub.f32 %v838, %v1256
          %v1333 = vsub.f32 %v840, %v1256
          %v1334 = vsub.f32 %v844, %v1261
          %v1335 = vsub.f32 %v846, %v1261
          %v1336 = vsub.f32 %v848, %v1266
          %v1337 = vsub.f32 %v850, %v1266
          %v1338 = vsub.f32 %v854, %v1271
          %v1339 = vsub.f32 %v856, %v1271
          %v1340 = vsub.f32 %v858, %v1276
          %v1341 = vsub.f32 %v860, %v1276
          %v1342 = vmul.f32 %v1278, 1.442695
          %v1343 = vpow.pop %v1342
          %v1344 = vmul.f32 %v1279, 1.442695
          %v1345 = vpow.pop %v1344
          %v1346 = vmul.f32 %v1280, 1.442695
          %v1347 = vpow.pop %v1346
          %v1348 = vmul.f32 %v1281, 1.442695
          %v1349 = vpow.pop %v1348
          %v1350 = vmul.f32 %v1282, 1.442695
          %v1351 = vpow.pop %v1350
          %v1352 = vmul.f32 %v1283, 1.442695
          %v1353 = vpow.pop %v1352
          %v1354 = vmul.f32 %v1284, 1.442695
          %v1355 = vpow.pop %v1354
          %v1356 = vmul.f32 %v1285, 1.442695
          %v1357 = vpow.pop %v1356
          %v1358 = vmul.f32 %v1286, 1.442695
          %v1359 = vpow.pop %v1358
          %v1360 = vmul.f32 %v1287, 1.442695
          %v1361 = vpow.pop %v1360
          %v1362 = vmul.f32 %v1288, 1.442695
          %v1363 = vpow.pop %v1362
          %v1364 = vmul.f32 %v1289, 1.442695
          %v1365 = vpow.pop %v1364
          %v1366 = vmul.f32 %v1290, 1.442695
          %v1367 = vpow.pop %v1366
          %v1368 = vmul.f32 %v1291, 1.442695
          %v1369 = vpow.pop %v1368
          %v1370 = vmul.f32 %v1292, 1.442695
          %v1371 = vpow.pop %v1370
          %v1372 = vmul.f32 %v1293, 1.442695
          %v1373 = vpow.pop %v1372
          %v1374 = vmul.f32 %v1294, 1.442695
          %v1375 = vpow.pop %v1374
          %v1376 = vmul.f32 %v1295, 1.442695
          %v1377 = vpow.pop %v1376
          %v1378 = vmul.f32 %v1296, 1.442695
          %v1379 = vpow.pop %v1378
          %v1380 = vmul.f32 %v1297, 1.442695
          %v1381 = vpow.pop %v1380
          %v1382 = vmul.f32 %v1298, 1.442695
          %v1383 = vpow.pop %v1382
          %v1384 = vmul.f32 %v1299, 1.442695
          %v1385 = vpow.pop %v1384
          %v1386 = vmul.f32 %v1300, 1.442695
          %v1387 = vpow.pop %v1386
          %v1388 = vmul.f32 %v1301, 1.442695
          %v1389 = vpow.pop %v1388
          %v1390 = vmul.f32 %v1302, 1.442695
          %v1391 = vpow.pop %v1390
          %v1392 = vmul.f32 %v1303, 1.442695
          %v1393 = vpow.pop %v1392
          %v1394 = vmul.f32 %v1304, 1.442695
          %v1395 = vpow.pop %v1394
          %v1396 = vmul.f32 %v1305, 1.442695
          %v1397 = vpow.pop %v1396
          %v1398 = vmul.f32 %v1306, 1.442695
          %v1399 = vpow.pop %v1398
          %v1400 = vmul.f32 %v1307, 1.442695
          %v1401 = vpow.pop %v1400
          %v1402 = vmul.f32 %v1308, 1.442695
          %v1403 = vpow.pop %v1402
          %v1404 = vmul.f32 %v1309, 1.442695
          %v1405 = vpow.pop %v1404
          %v1406 = vmul.f32 %v1310, 1.442695
          %v1407 = vpow.pop %v1406
          %v1408 = vmul.f32 %v1311, 1.442695
          %v1409 = vpow.pop %v1408
          %v1410 = vmul.f32 %v1312, 1.442695
          %v1411 = vpow.pop %v1410
          %v1412 = vmul.f32 %v1313, 1.442695
          %v1413 = vpow.pop %v1412
          %v1414 = vmul.f32 %v1314, 1.442695
          %v1415 = vpow.pop %v1414
          %v1416 = vmul.f32 %v1315, 1.442695
          %v1417 = vpow.pop %v1416
          %v1418 = vmul.f32 %v1316, 1.442695
          %v1419 = vpow.pop %v1418
          %v1420 = vmul.f32 %v1317, 1.442695
          %v1421 = vpow.pop %v1420
          %v1422 = vmul.f32 %v1318, 1.442695
          %v1423 = vpow.pop %v1422
          %v1424 = vmul.f32 %v1319, 1.442695
          %v1425 = vpow.pop %v1424
          %v1426 = vmul.f32 %v1320, 1.442695
          %v1427 = vpow.pop %v1426
          %v1428 = vmul.f32 %v1321, 1.442695
          %v1429 = vpow.pop %v1428
          %v1430 = vmul.f32 %v1322, 1.442695
          %v1431 = vpow.pop %v1430
          %v1432 = vmul.f32 %v1323, 1.442695
          %v1433 = vpow.pop %v1432
          %v1434 = vmul.f32 %v1324, 1.442695
          %v1435 = vpow.pop %v1434
          %v1436 = vmul.f32 %v1325, 1.442695
          %v1437 = vpow.pop %v1436
          %v1438 = vmul.f32 %v1326, 1.442695
          %v1439 = vpow.pop %v1438
          %v1440 = vmul.f32 %v1327, 1.442695
          %v1441 = vpow.pop %v1440
          %v1442 = vmul.f32 %v1328, 1.442695
          %v1443 = vpow.pop %v1442
          %v1444 = vmul.f32 %v1329, 1.442695
          %v1445 = vpow.pop %v1444
          %v1446 = vmul.f32 %v1330, 1.442695
          %v1447 = vpow.pop %v1446
          %v1448 = vmul.f32 %v1331, 1.442695
          %v1449 = vpow.pop %v1448
          %v1450 = vmul.f32 %v1332, 1.442695
          %v1451 = vpow.pop %v1450
          %v1452 = vmul.f32 %v1333, 1.442695
          %v1453 = vpow.pop %v1452
          %v1454 = vmul.f32 %v1334, 1.442695
          %v1455 = vpow.pop %v1454
          %v1456 = vmul.f32 %v1335, 1.442695
          %v1457 = vpow.pop %v1456
          %v1458 = vmul.f32 %v1336, 1.442695
          %v1459 = vpow.pop %v1458
          %v1460 = vmul.f32 %v1337, 1.442695
          %v1461 = vpow.pop %v1460
          %v1462 = vmul.f32 %v1338, 1.442695
          %v1463 = vpow.pop %v1462
          %v1464 = vmul.f32 %v1339, 1.442695
          %v1465 = vpow.pop %v1464
          %v1466 = vmul.f32 %v1340, 1.442695
          %v1467 = vpow.pop %v1466
          %v1468 = vmul.f32 %v1341, 1.442695
          %v1469 = vpow.pop %v1468
          %v1470 = vld [vmem:[#allocation3] sm:$0xff]
          %v1471 = vld [vmem:[#allocation3 + $0x8] sm:$0xff]
          %v1472 = vld [vmem:[#allocation3 + $0x10] sm:$0xff]
          %v1473 = vld [vmem:[#allocation3 + $0x18] sm:$0xff]
          %v1474 = vld [vmem:[#allocation3 + $0x20] sm:$0xff]
          %v1475 = vld [vmem:[#allocation3 + $0x28] sm:$0xff]
          %v1476 = vld [vmem:[#allocation3 + $0x30] sm:$0xff]
          %v1477 = vld [vmem:[#allocation3 + $0x38] sm:$0xff]
          %v1478 = vld [vmem:[#allocation3 + $0x40] sm:$0xff]
          %v1479 = vld [vmem:[#allocation3 + $0x48] sm:$0xff]
          %v1480 = vld [vmem:[#allocation3 + $0x50] sm:$0xff]
          %v1481 = vld [vmem:[#allocation3 + $0x58] sm:$0xff]
          %v1482 = vld [vmem:[#allocation3 + $0x60] sm:$0xff]
          %v1483 = vld [vmem:[#allocation3 + $0x68] sm:$0xff]
          %v1484 = vld [vmem:[#allocation3 + $0x70] sm:$0xff]
          %v1485 = vld [vmem:[#allocation3 + $0x78] sm:$0xff]
          %v1486 = vld [vmem:[#allocation3 + $0x80] sm:$0xff]
          %v1487 = vld [vmem:[#allocation3 + $0x88] sm:$0xff]
          %v1488 = vld [vmem:[#allocation3 + $0x90] sm:$0xff]
          %v1489 = vld [vmem:[#allocation3 + $0x98] sm:$0xff]
          %v1490 = vld [vmem:[#allocation3 + $0xa0] sm:$0xff]
          %v1491 = vld [vmem:[#allocation3 + $0xa8] sm:$0xff]
          %v1492 = vld [vmem:[#allocation3 + $0xb0] sm:$0xff]
          %v1493 = vld [vmem:[#allocation3 + $0xb8] sm:$0xff]
          %v1494 = vld [vmem:[#allocation3 + $0xc0] sm:$0xff]
          %v1495 = vld [vmem:[#allocation3 + $0xc8] sm:$0xff]
          %v1496 = vld [vmem:[#allocation3 + $0xd0] sm:$0xff]
          %v1497 = vld [vmem:[#allocation3 + $0xd8] sm:$0xff]
          %v1498 = vld [vmem:[#allocation3 + $0xe0] sm:$0xff]
          %v1499 = vld [vmem:[#allocation3 + $0xe8] sm:$0xff]
          %v1500 = vld [vmem:[#allocation3 + $0xf0] sm:$0xff]
          %v1501 = vld [vmem:[#allocation3 + $0xf8] sm:$0xff]
          %v1502 = vmul.f32 %v1055, %v1470
          %v1503 = vmul.f32 %v1057, %v1471
          %v1504 = vmul.f32 %v1059, %v1472
          %v1505 = vmul.f32 %v1061, %v1473
          %v1506 = vmul.f32 %v1063, %v1474
          %v1507 = vmul.f32 %v1065, %v1475
          %v1508 = vmul.f32 %v1067, %v1476
          %v1509 = vmul.f32 %v1069, %v1477
          %v1510 = vmul.f32 %v1071, %v1478
          %v1511 = vmul.f32 %v1073, %v1479
          %v1512 = vmul.f32 %v1075, %v1480
          %v1513 = vmul.f32 %v1077, %v1481
          %v1514 = vmul.f32 %v1079, %v1482
          %v1515 = vmul.f32 %v1081, %v1483
          %v1516 = vmul.f32 %v1083, %v1484
          %v1517 = vmul.f32 %v1085, %v1485
          %v1518 = vmul.f32 %v1087, %v1486
          %v1519 = vmul.f32 %v1089, %v1487
          %v1520 = vmul.f32 %v1091, %v1488
          %v1521 = vmul.f32 %v1093, %v1489
          %v1522 = vmul.f32 %v1095, %v1490
          %v1523 = vmul.f32 %v1097, %v1491
          %v1524 = vmul.f32 %v1099, %v1492
          %v1525 = vmul.f32 %v1101, %v1493
          %v1526 = vmul.f32 %v1103, %v1494
          %v1527 = vmul.f32 %v1105, %v1495
          %v1528 = vmul.f32 %v1107, %v1496
          %v1529 = vmul.f32 %v1109, %v1497
          %v1530 = vmul.f32 %v1111, %v1498
          %v1531 = vmul.f32 %v1113, %v1499
          %v1532 = vmul.f32 %v1115, %v1500
          %v1533 = vmul.f32 %v1117, %v1501
          %v1534 = vadd.f32 %v1343, %v1345
          %1535 = vadd.xlane.f32.xlu0 %v1534
          %v1536 = vpop.xlane.xlu0 %1535
          %v1537 = vadd.f32 %v1347, %v1349
          %1538 = vadd.xlane.f32.xlu0 %v1537
          %v1539 = vpop.xlane.xlu0 %1538
          %v1540 = vadd.f32 %v1351, %v1353
          %1541 = vadd.xlane.f32.xlu0 %v1540
          %v1542 = vpop.xlane.xlu0 %1541
          %v1543 = vadd.f32 %v1355, %v1357
          %1544 = vadd.xlane.f32.xlu0 %v1543
          %v1545 = vpop.xlane.xlu0 %1544
          %v1546 = vadd.f32 %v1359, %v1361
          %1547 = vadd.xlane.f32.xlu0 %v1546
          %v1548 = vpop.xlane.xlu0 %1547
          %v1549 = vadd.f32 %v1363, %v1365
          %1550 = vadd.xlane.f32.xlu0 %v1549
          %v1551 = vpop.xlane.xlu0 %1550
          %v1552 = vadd.f32 %v1367, %v1369
          %1553 = vadd.xlane.f32.xlu0 %v1552
          %v1554 = vpop.xlane.xlu0 %1553
          %v1555 = vadd.f32 %v1371, %v1373
          %1556 = vadd.xlane.f32.xlu0 %v1555
          %v1557 = vpop.xlane.xlu0 %1556
          %v1558 = vadd.f32 %v1375, %v1377
          %1559 = vadd.xlane.f32.xlu0 %v1558
          %v1560 = vpop.xlane.xlu0 %1559
          %v1561 = vadd.f32 %v1379, %v1381
          %1562 = vadd.xlane.f32.xlu0 %v1561
          %v1563 = vpop.xlane.xlu0 %1562
          %v1564 = vadd.f32 %v1383, %v1385
          %1565 = vadd.xlane.f32.xlu0 %v1564
          %v1566 = vpop.xlane.xlu0 %1565
          %v1567 = vadd.f32 %v1387, %v1389
          %1568 = vadd.xlane.f32.xlu0 %v1567
          %v1569 = vpop.xlane.xlu0 %1568
          %v1570 = vadd.f32 %v1391, %v1393
          %1571 = vadd.xlane.f32.xlu0 %v1570
          %v1572 = vpop.xlane.xlu0 %1571
          %v1573 = vadd.f32 %v1395, %v1397
          %1574 = vadd.xlane.f32.xlu0 %v1573
          %v1575 = vpop.xlane.xlu0 %1574
          %v1576 = vadd.f32 %v1399, %v1401
          %1577 = vadd.xlane.f32.xlu0 %v1576
          %v1578 = vpop.xlane.xlu0 %1577
          %v1579 = vadd.f32 %v1403, %v1405
          %1580 = vadd.xlane.f32.xlu0 %v1579
          %v1581 = vpop.xlane.xlu0 %1580
          %v1582 = vadd.f32 %v1407, %v1409
          %1583 = vadd.xlane.f32.xlu0 %v1582
          %v1584 = vpop.xlane.xlu0 %1583
          %v1585 = vadd.f32 %v1411, %v1413
          %1586 = vadd.xlane.f32.xlu0 %v1585
          %v1587 = vpop.xlane.xlu0 %1586
          %v1588 = vadd.f32 %v1415, %v1417
          %1589 = vadd.xlane.f32.xlu0 %v1588
          %v1590 = vpop.xlane.xlu0 %1589
          %v1591 = vadd.f32 %v1419, %v1421
          %1592 = vadd.xlane.f32.xlu0 %v1591
          %v1593 = vpop.xlane.xlu0 %1592
          %v1594 = vadd.f32 %v1423, %v1425
          %1595 = vadd.xlane.f32.xlu0 %v1594
          %v1596 = vpop.xlane.xlu0 %1595
          %v1597 = vadd.f32 %v1427, %v1429
          %1598 = vadd.xlane.f32.xlu0 %v1597
          %v1599 = vpop.xlane.xlu0 %1598
          %v1600 = vadd.f32 %v1431, %v1433
          %1601 = vadd.xlane.f32.xlu0 %v1600
          %v1602 = vpop.xlane.xlu0 %1601
          %v1603 = vadd.f32 %v1435, %v1437
          %1604 = vadd.xlane.f32.xlu0 %v1603
          %v1605 = vpop.xlane.xlu0 %1604
          %v1606 = vadd.f32 %v1439, %v1441
          %1607 = vadd.xlane.f32.xlu0 %v1606
          %v1608 = vpop.xlane.xlu0 %1607
          %v1609 = vadd.f32 %v1443, %v1445
          %1610 = vadd.xlane.f32.xlu0 %v1609
          %v1611 = vpop.xlane.xlu0 %1610
          %v1612 = vadd.f32 %v1447, %v1449
          %1613 = vadd.xlane.f32.xlu0 %v1612
          %v1614 = vpop.xlane.xlu0 %1613
          %v1615 = vadd.f32 %v1451, %v1453
          %1616 = vadd.xlane.f32.xlu0 %v1615
          %v1617 = vpop.xlane.xlu0 %1616
          %v1618 = vadd.f32 %v1455, %v1457
          %1619 = vadd.xlane.f32.xlu0 %v1618
          %v1620 = vpop.xlane.xlu0 %1619
          %v1621 = vadd.f32 %v1459, %v1461
          %1622 = vadd.xlane.f32.xlu0 %v1621
          %v1623 = vpop.xlane.xlu0 %1622
          %v1624 = vadd.f32 %v1463, %v1465
          %1625 = vadd.xlane.f32.xlu0 %v1624
          %v1626 = vpop.xlane.xlu0 %1625
          %v1627 = vadd.f32 %v1467, %v1469
          %1628 = vadd.xlane.f32.xlu0 %v1627
          %v1629 = vpop.xlane.xlu0 %1628
          %v1630 = vadd.f32 %v1502, %v1536
          %v1631 = vadd.f32 %v1503, %v1539
          %v1632 = vadd.f32 %v1504, %v1542
          %v1633 = vadd.f32 %v1505, %v1545
          %v1634 = vadd.f32 %v1506, %v1548
          %v1635 = vadd.f32 %v1507, %v1551
          %v1636 = vadd.f32 %v1508, %v1554
          %v1637 = vadd.f32 %v1509, %v1557
          %v1638 = vadd.f32 %v1510, %v1560
          %v1639 = vadd.f32 %v1511, %v1563
          %v1640 = vadd.f32 %v1512, %v1566
          %v1641 = vadd.f32 %v1513, %v1569
          %v1642 = vadd.f32 %v1514, %v1572
          %v1643 = vadd.f32 %v1515, %v1575
          %v1644 = vadd.f32 %v1516, %v1578
          %v1645 = vadd.f32 %v1517, %v1581
          %v1646 = vadd.f32 %v1518, %v1584
          %v1647 = vadd.f32 %v1519, %v1587
          %v1648 = vadd.f32 %v1520, %v1590
          %v1649 = vadd.f32 %v1521, %v1593
          %v1650 = vadd.f32 %v1522, %v1596
          %v1651 = vadd.f32 %v1523, %v1599
          %v1652 = vadd.f32 %v1524, %v1602
          %v1653 = vadd.f32 %v1525, %v1605
          %v1654 = vadd.f32 %v1526, %v1608
          %v1655 = vadd.f32 %v1527, %v1611
          %v1656 = vadd.f32 %v1528, %v1614
          %v1657 = vadd.f32 %v1529, %v1617
          %v1658 = vadd.f32 %v1530, %v1620
          %v1659 = vadd.f32 %v1531, %v1623
          %v1660 = vadd.f32 %v1532, %v1626
          %v1661 = vadd.f32 %v1533, %v1629
          %1662 = vst.msk [vmem:[#allocation3] sm:$0xff] %vm287, %v1630
          %1663 = vst.msk [vmem:[#allocation3 + $0x8] sm:$0xff] %vm287, %v1631
          %1664 = vst.msk [vmem:[#allocation3 + $0x10] sm:$0xff] %vm287, %v1632
          %1665 = vst.msk [vmem:[#allocation3 + $0x18] sm:$0xff] %vm287, %v1633
          %1666 = vst.msk [vmem:[#allocation3 + $0x20] sm:$0xff] %vm287, %v1634
          %1667 = vst.msk [vmem:[#allocation3 + $0x28] sm:$0xff] %vm287, %v1635
          %1668 = vst.msk [vmem:[#allocation3 + $0x30] sm:$0xff] %vm287, %v1636
          %1669 = vst.msk [vmem:[#allocation3 + $0x38] sm:$0xff] %vm287, %v1637
          %1670 = vst.msk [vmem:[#allocation3 + $0x40] sm:$0xff] %vm287, %v1638
          %1671 = vst.msk [vmem:[#allocation3 + $0x48] sm:$0xff] %vm287, %v1639
          %1672 = vst.msk [vmem:[#allocation3 + $0x50] sm:$0xff] %vm287, %v1640
          %1673 = vst.msk [vmem:[#allocation3 + $0x58] sm:$0xff] %vm287, %v1641
          %1674 = vst.msk [vmem:[#allocation3 + $0x60] sm:$0xff] %vm287, %v1642
          %1675 = vst.msk [vmem:[#allocation3 + $0x68] sm:$0xff] %vm287, %v1643
          %1676 = vst.msk [vmem:[#allocation3 + $0x70] sm:$0xff] %vm287, %v1644
          %1677 = vst.msk [vmem:[#allocation3 + $0x78] sm:$0xff] %vm287, %v1645
          %1678 = vst.msk [vmem:[#allocation3 + $0x80] sm:$0xff] %vm287, %v1646
          %1679 = vst.msk [vmem:[#allocation3 + $0x88] sm:$0xff] %vm287, %v1647
          %1680 = vst.msk [vmem:[#allocation3 + $0x90] sm:$0xff] %vm287, %v1648
          %1681 = vst.msk [vmem:[#allocation3 + $0x98] sm:$0xff] %vm287, %v1649
          %1682 = vst.msk [vmem:[#allocation3 + $0xa0] sm:$0xff] %vm287, %v1650
          %1683 = vst.msk [vmem:[#allocation3 + $0xa8] sm:$0xff] %vm287, %v1651
          %1684 = vst.msk [vmem:[#allocation3 + $0xb0] sm:$0xff] %vm287, %v1652
          %1685 = vst.msk [vmem:[#allocation3 + $0xb8] sm:$0xff] %vm287, %v1653
          %1686 = vst.msk [vmem:[#allocation3 + $0xc0] sm:$0xff] %vm287, %v1654
          %1687 = vst.msk [vmem:[#allocation3 + $0xc8] sm:$0xff] %vm287, %v1655
          %1688 = vst.msk [vmem:[#allocation3 + $0xd0] sm:$0xff] %vm287, %v1656
          %1689 = vst.msk [vmem:[#allocation3 + $0xd8] sm:$0xff] %vm287, %v1657
          %1690 = vst.msk [vmem:[#allocation3 + $0xe0] sm:$0xff] %vm287, %v1658
          %1691 = vst.msk [vmem:[#allocation3 + $0xe8] sm:$0xff] %vm287, %v1659
          %1692 = vst.msk [vmem:[#allocation3 + $0xf0] sm:$0xff] %vm287, %v1660
          %1693 = vst.msk [vmem:[#allocation3 + $0xf8] sm:$0xff] %vm287, %v1661
          %v1694 = vpack.c.bf16 %v1347, %v1343
          %v1695 = vpack.c.bf16 %v1349, %v1345
          %v1696 = vpack.c.bf16 %v1355, %v1351
          %v1697 = vpack.c.bf16 %v1357, %v1353
          %v1698 = vpack.c.bf16 %v1363, %v1359
          %v1699 = vpack.c.bf16 %v1365, %v1361
          %v1700 = vpack.c.bf16 %v1371, %v1367
          %v1701 = vpack.c.bf16 %v1373, %v1369
          %v1702 = vpack.c.bf16 %v1379, %v1375
          %v1703 = vpack.c.bf16 %v1381, %v1377
          %v1704 = vpack.c.bf16 %v1387, %v1383
          %v1705 = vpack.c.bf16 %v1389, %v1385
          %v1706 = vpack.c.bf16 %v1395, %v1391
          %v1707 = vpack.c.bf16 %v1397, %v1393
          %v1708 = vpack.c.bf16 %v1403, %v1399
          %v1709 = vpack.c.bf16 %v1405, %v1401
          %v1710 = vpack.c.bf16 %v1411, %v1407
          %v1711 = vpack.c.bf16 %v1413, %v1409
          %v1712 = vpack.c.bf16 %v1419, %v1415
          %v1713 = vpack.c.bf16 %v1421, %v1417
          %v1714 = vpack.c.bf16 %v1427, %v1423
          %v1715 = vpack.c.bf16 %v1429, %v1425
          %v1716 = vpack.c.bf16 %v1435, %v1431
          %v1717 = vpack.c.bf16 %v1437, %v1433
          %v1718 = vpack.c.bf16 %v1443, %v1439
          %v1719 = vpack.c.bf16 %v1445, %v1441
          %v1720 = vpack.c.bf16 %v1451, %v1447
          %v1721 = vpack.c.bf16 %v1453, %v1449
          %v1722 = vpack.c.bf16 %v1459, %v1455
          %v1723 = vpack.c.bf16 %v1461, %v1457
          %v1724 = vpack.c.bf16 %v1467, %v1463
          %v1725 = vpack.c.bf16 %v1469, %v1465
          %v1758 = vunpack.c.l.b16 %v541
          %v1759 = vunpack.c.l.b16 %v542
          %v1760 = vunpack.c.l.b16 %v543
          %v1761 = vunpack.c.l.b16 %v544
          %v1762 = vunpack.c.l.b16 %v545
          %v1763 = vunpack.c.l.b16 %v546
          %v1764 = vunpack.c.l.b16 %v547
          %v1765 = vunpack.c.l.b16 %v548
          %v1766 = vunpack.c.l.b16 %v549
          %v1767 = vunpack.c.l.b16 %v550
          %v1768 = vunpack.c.l.b16 %v551
          %v1769 = vunpack.c.l.b16 %v552
          %v1770 = vunpack.c.l.b16 %v553
          %v1771 = vunpack.c.l.b16 %v554
          %v1772 = vunpack.c.l.b16 %v555
          %v1773 = vunpack.c.l.b16 %v556
          %v1774 = vunpack.c.l.b16 %v557
          %v1775 = vunpack.c.l.b16 %v558
          %v1776 = vunpack.c.l.b16 %v559
          %v1777 = vunpack.c.l.b16 %v560
          %v1778 = vunpack.c.l.b16 %v561
          %v1779 = vunpack.c.l.b16 %v562
          %v1780 = vunpack.c.l.b16 %v563
          %v1781 = vunpack.c.l.b16 %v564
          %v1782 = vunpack.c.l.b16 %v565
          %v1783 = vunpack.c.l.b16 %v566
          %v1784 = vunpack.c.l.b16 %v567
          %v1785 = vunpack.c.l.b16 %v568
          %v1786 = vunpack.c.l.b16 %v569
          %v1787 = vunpack.c.l.b16 %v570
          %v1788 = vunpack.c.l.b16 %v571
          %v1789 = vunpack.c.l.b16 %v572
          %v1790 = vpack.c.b16 %v1759, %v1758
          %v1791 = vpack.c.b16 %v1761, %v1760
          %v1792 = vpack.c.b16 %v1763, %v1762
          %v1793 = vpack.c.b16 %v1765, %v1764
          %v1794 = vpack.c.b16 %v1767, %v1766
          %v1795 = vpack.c.b16 %v1769, %v1768
          %v1796 = vpack.c.b16 %v1771, %v1770
          %v1797 = vpack.c.b16 %v1773, %v1772
          %v1798 = vpack.c.b16 %v1775, %v1774
          %v1799 = vpack.c.b16 %v1777, %v1776
          %v1800 = vpack.c.b16 %v1779, %v1778
          %v1801 = vpack.c.b16 %v1781, %v1780
          %v1802 = vpack.c.b16 %v1783, %v1782
          %v1803 = vpack.c.b16 %v1785, %v1784
          %v1804 = vpack.c.b16 %v1787, %v1786
          %v1805 = vpack.c.b16 %v1789, %v1788
          %1822 = vmatprep.subr.bf16.mxu0 0
          %1823 = vmatpush1.bf16.msra.mxu0 %v1797
          %1824 = vmatprep.subr.bf16.mxu0 0
          %1825 = vmatpush1.bf16.msra.mxu0 %v1796
          %1826 = vmatprep.subr.bf16.mxu0 0
          %1827 = vmatpush1.bf16.msra.mxu0 %v1795
          %1828 = vmatprep.subr.bf16.mxu0 0
          %1829 = vmatpush1.bf16.msra.mxu0 %v1794
          %1830 = vmatprep.subr.bf16.mxu0 0
          %1831 = vmatpush1.bf16.msra.mxu0 %v1793
          %1832 = vmatprep.subr.bf16.mxu0 0
          %1833 = vmatpush1.bf16.msra.mxu0 %v1792
          %1834 = vmatprep.subr.bf16.mxu0 0
          %1835 = vmatpush1.bf16.msra.mxu0 %v1791
          %1836 = vmatprep.subr.bf16.mxu0 0
          %1837 = vmatpush1.bf16.msra.mxu0 %v1790
          %1838 = vmatprep.subr.bf16.mxu0 0
          %1839 = vmatpush2.bf16.msra.mxu0 %v1805
          %1840 = vmatprep.subr.bf16.mxu0 0
          %1841 = vmatpush2.bf16.msra.mxu0 %v1804
          %1842 = vmatprep.subr.bf16.mxu0 0
          %1843 = vmatpush2.bf16.msra.mxu0 %v1803
          %1844 = vmatprep.subr.bf16.mxu0 0
          %1845 = vmatpush2.bf16.msra.mxu0 %v1802
          %1846 = vmatprep.subr.bf16.mxu0 0
          %1847 = vmatpush2.bf16.msra.mxu0 %v1801
          %1848 = vmatprep.subr.bf16.mxu0 0
          %1849 = vmatpush2.bf16.msra.mxu0 %v1800
          %1850 = vmatprep.subr.bf16.mxu0 0
          %1851 = vmatpush2.bf16.msra.mxu0 %v1799
          %1852 = vmatprep.subr.bf16.mxu0 0
          %1853 = vmatpush2.bf16.msra.mxu0 %v1798
          %1854 = vmatprep.mubr.bf16.mxu0 %v1695
          %1855 = vmatmul.mubr.bf16.gmra.mxu0 %v1694
          %v1856 = vpop.f32.mrf.mxu0
          %v1857 = vadd.f32 0.0, %v1856
          %v1858 = vpop.f32.mrf.mxu0
          %v1859 = vpop.f32.mrf.mxu0
          %v1860 = vadd.f32 0.0, %v1859
          %v1861 = vpop.f32.mrf.mxu0
          %1862 = vmatprep.mubr.bf16.mxu0 %v1697
          %1863 = vmatmul.mubr.bf16.gmra.mxu0 %v1696
          %v1864 = vpop.f32.mrf.mxu0
          %v1865 = vadd.f32 0.0, %v1864
          %v1866 = vpop.f32.mrf.mxu0
          %v1867 = vpop.f32.mrf.mxu0
          %v1868 = vadd.f32 0.0, %v1867
          %v1869 = vpop.f32.mrf.mxu0
          %1870 = vmatprep.mubr.bf16.mxu0 %v1699
          %1871 = vmatmul.mubr.bf16.gmra.mxu0 %v1698
          %v1872 = vpop.f32.mrf.mxu0
          %v1873 = vadd.f32 0.0, %v1872
          %v1874 = vpop.f32.mrf.mxu0
          %v1875 = vpop.f32.mrf.mxu0
          %v1876 = vadd.f32 0.0, %v1875
          %v1877 = vpop.f32.mrf.mxu0
          %1878 = vmatprep.mubr.bf16.mxu0 %v1701
          %1879 = vmatmul.mubr.bf16.gmra.mxu0 %v1700
          %v1880 = vpop.f32.mrf.mxu0
          %v1881 = vadd.f32 0.0, %v1880
          %v1882 = vpop.f32.mrf.mxu0
          %v1883 = vpop.f32.mrf.mxu0
          %v1884 = vadd.f32 0.0, %v1883
          %v1885 = vpop.f32.mrf.mxu0
          %1886 = vmatprep.mubr.bf16.mxu0 %v1703
          %1887 = vmatmul.mubr.bf16.gmra.mxu0 %v1702
          %v1888 = vpop.f32.mrf.mxu0
          %v1889 = vadd.f32 0.0, %v1888
          %v1890 = vpop.f32.mrf.mxu0
          %v1891 = vpop.f32.mrf.mxu0
          %v1892 = vadd.f32 0.0, %v1891
          %v1893 = vpop.f32.mrf.mxu0
          %1894 = vmatprep.mubr.bf16.mxu0 %v1705
          %1895 = vmatmul.mubr.bf16.gmra.mxu0 %v1704
          %v1896 = vpop.f32.mrf.mxu0
          %v1897 = vadd.f32 0.0, %v1896
          %v1898 = vpop.f32.mrf.mxu0
          %v1899 = vpop.f32.mrf.mxu0
          %v1900 = vadd.f32 0.0, %v1899
          %v1901 = vpop.f32.mrf.mxu0
          %1902 = vmatprep.mubr.bf16.mxu0 %v1707
          %1903 = vmatmul.mubr.bf16.gmra.mxu0 %v1706
          %v1904 = vpop.f32.mrf.mxu0
          %v1905 = vadd.f32 0.0, %v1904
          %v1906 = vpop.f32.mrf.mxu0
          %v1907 = vpop.f32.mrf.mxu0
          %v1908 = vadd.f32 0.0, %v1907
          %v1909 = vpop.f32.mrf.mxu0
          %1910 = vmatprep.mubr.bf16.mxu0 %v1709
          %1911 = vmatmul.mubr.bf16.gmra.mxu0 %v1708
          %v1912 = vpop.f32.mrf.mxu0
          %v1913 = vadd.f32 0.0, %v1912
          %v1914 = vpop.f32.mrf.mxu0
          %v1915 = vpop.f32.mrf.mxu0
          %v1916 = vadd.f32 0.0, %v1915
          %v1917 = vpop.f32.mrf.mxu0
          %1918 = vmatprep.mubr.bf16.mxu0 %v1711
          %1919 = vmatmul.mubr.bf16.gmra.mxu0 %v1710
          %v1920 = vpop.f32.mrf.mxu0
          %v1921 = vadd.f32 0.0, %v1920
          %v1922 = vpop.f32.mrf.mxu0
          %v1923 = vpop.f32.mrf.mxu0
          %v1924 = vadd.f32 0.0, %v1923
          %v1925 = vpop.f32.mrf.mxu0
          %1926 = vmatprep.mubr.bf16.mxu0 %v1713
          %1927 = vmatmul.mubr.bf16.gmra.mxu0 %v1712
          %v1928 = vpop.f32.mrf.mxu0
          %v1929 = vadd.f32 0.0, %v1928
          %v1930 = vpop.f32.mrf.mxu0
          %v1931 = vpop.f32.mrf.mxu0
          %v1932 = vadd.f32 0.0, %v1931
          %v1933 = vpop.f32.mrf.mxu0
          %1934 = vmatprep.mubr.bf16.mxu0 %v1715
          %1935 = vmatmul.mubr.bf16.gmra.mxu0 %v1714
          %v1936 = vpop.f32.mrf.mxu0
          %v1937 = vadd.f32 0.0, %v1936
          %v1938 = vpop.f32.mrf.mxu0
          %v1939 = vpop.f32.mrf.mxu0
          %v1940 = vadd.f32 0.0, %v1939
          %v1941 = vpop.f32.mrf.mxu0
          %1942 = vmatprep.mubr.bf16.mxu0 %v1717
          %1943 = vmatmul.mubr.bf16.gmra.mxu0 %v1716
          %v1944 = vpop.f32.mrf.mxu0
          %v1945 = vadd.f32 0.0, %v1944
          %v1946 = vpop.f32.mrf.mxu0
          %v1947 = vpop.f32.mrf.mxu0
          %v1948 = vadd.f32 0.0, %v1947
          %v1949 = vpop.f32.mrf.mxu0
          %1950 = vmatprep.mubr.bf16.mxu0 %v1719
          %1951 = vmatmul.mubr.bf16.gmra.mxu0 %v1718
          %v1952 = vpop.f32.mrf.mxu0
          %v1953 = vadd.f32 0.0, %v1952
          %v1954 = vpop.f32.mrf.mxu0
          %v1955 = vpop.f32.mrf.mxu0
          %v1956 = vadd.f32 0.0, %v1955
          %v1957 = vpop.f32.mrf.mxu0
          %1958 = vmatprep.mubr.bf16.mxu0 %v1721
          %1959 = vmatmul.mubr.bf16.gmra.mxu0 %v1720
          %v1960 = vpop.f32.mrf.mxu0
          %v1961 = vadd.f32 0.0, %v1960
          %v1962 = vpop.f32.mrf.mxu0
          %v1963 = vpop.f32.mrf.mxu0
          %v1964 = vadd.f32 0.0, %v1963
          %v1965 = vpop.f32.mrf.mxu0
          %1966 = vmatprep.mubr.bf16.mxu0 %v1723
          %1967 = vmatmul.mubr.bf16.gmra.mxu0 %v1722
          %v1968 = vpop.f32.mrf.mxu0
          %v1969 = vadd.f32 0.0, %v1968
          %v1970 = vpop.f32.mrf.mxu0
          %v1971 = vpop.f32.mrf.mxu0
          %v1972 = vadd.f32 0.0, %v1971
          %v1973 = vpop.f32.mrf.mxu0
          %1974 = vmatprep.mubr.bf16.mxu0 %v1725
          %1975 = vmatmul.mubr.bf16.gmra.mxu0 %v1724
          %v1976 = vpop.f32.mrf.mxu0
          %v1977 = vadd.f32 0.0, %v1976
          %v1978 = vpop.f32.mrf.mxu0
          %v1979 = vpop.f32.mrf.mxu0
          %v1980 = vadd.f32 0.0, %v1979
          %v1981 = vpop.f32.mrf.mxu0
          %1982 = vdwg.mxu0
          %v1983 = vld [vmem:[#allocation4] sm:$0xff]
          %v1984 = vld [vmem:[#allocation4 + $0x8] sm:$0xff]
          %v1985 = vld [vmem:[#allocation4 + $0x10] sm:$0xff]
          %v1986 = vld [vmem:[#allocation4 + $0x18] sm:$0xff]
          %v1987 = vld [vmem:[#allocation4 + $0x20] sm:$0xff]
          %v1988 = vld [vmem:[#allocation4 + $0x28] sm:$0xff]
          %v1989 = vld [vmem:[#allocation4 + $0x30] sm:$0xff]
          %v1990 = vld [vmem:[#allocation4 + $0x38] sm:$0xff]
          %v1991 = vld [vmem:[#allocation4 + $0x40] sm:$0xff]
          %v1992 = vld [vmem:[#allocation4 + $0x48] sm:$0xff]
          %v1993 = vld [vmem:[#allocation4 + $0x50] sm:$0xff]
          %v1994 = vld [vmem:[#allocation4 + $0x58] sm:$0xff]
          %v1995 = vld [vmem:[#allocation4 + $0x60] sm:$0xff]
          %v1996 = vld [vmem:[#allocation4 + $0x68] sm:$0xff]
          %v1997 = vld [vmem:[#allocation4 + $0x70] sm:$0xff]
          %v1998 = vld [vmem:[#allocation4 + $0x78] sm:$0xff]
          %v1999 = vld [vmem:[#allocation4 + $0x80] sm:$0xff]
          %v2000 = vld [vmem:[#allocation4 + $0x88] sm:$0xff]
          %v2001 = vld [vmem:[#allocation4 + $0x90] sm:$0xff]
          %v2002 = vld [vmem:[#allocation4 + $0x98] sm:$0xff]
          %v2003 = vld [vmem:[#allocation4 + $0xa0] sm:$0xff]
          %v2004 = vld [vmem:[#allocation4 + $0xa8] sm:$0xff]
          %v2005 = vld [vmem:[#allocation4 + $0xb0] sm:$0xff]
          %v2006 = vld [vmem:[#allocation4 + $0xb8] sm:$0xff]
          %v2007 = vld [vmem:[#allocation4 + $0xc0] sm:$0xff]
          %v2008 = vld [vmem:[#allocation4 + $0xc8] sm:$0xff]
          %v2009 = vld [vmem:[#allocation4 + $0xd0] sm:$0xff]
          %v2010 = vld [vmem:[#allocation4 + $0xd8] sm:$0xff]
          %v2011 = vld [vmem:[#allocation4 + $0xe0] sm:$0xff]
          %v2012 = vld [vmem:[#allocation4 + $0xe8] sm:$0xff]
          %v2013 = vld [vmem:[#allocation4 + $0xf0] sm:$0xff]
          %v2014 = vld [vmem:[#allocation4 + $0xf8] sm:$0xff]
          %2016 = vset.pattern.permute.xlu0 0
          %2017 = vperm.xlu0 %2016, %v1055
          %v2018 = vpop.permute.xlu0 %2017
          %2021 = vset.pattern.permute.xlu0 0
          %2022 = vperm.xlu0 %2021, %v1057
          %v2023 = vpop.permute.xlu0 %2022
          %2026 = vset.pattern.permute.xlu0 0
          %2027 = vperm.xlu0 %2026, %v1059
          %v2028 = vpop.permute.xlu0 %2027
          %2031 = vset.pattern.permute.xlu0 0
          %2032 = vperm.xlu0 %2031, %v1061
          %v2033 = vpop.permute.xlu0 %2032
          %2036 = vset.pattern.permute.xlu0 0
          %2037 = vperm.xlu0 %2036, %v1063
          %v2038 = vpop.permute.xlu0 %2037
          %2041 = vset.pattern.permute.xlu0 0
          %2042 = vperm.xlu0 %2041, %v1065
          %v2043 = vpop.permute.xlu0 %2042
          %2046 = vset.pattern.permute.xlu0 0
          %2047 = vperm.xlu0 %2046, %v1067
          %v2048 = vpop.permute.xlu0 %2047
          %2051 = vset.pattern.permute.xlu0 0
          %2052 = vperm.xlu0 %2051, %v1069
          %v2053 = vpop.permute.xlu0 %2052
          %2056 = vset.pattern.permute.xlu0 0
          %2057 = vperm.xlu0 %2056, %v1071
          %v2058 = vpop.permute.xlu0 %2057
          %2061 = vset.pattern.permute.xlu0 0
          %2062 = vperm.xlu0 %2061, %v1073
          %v2063 = vpop.permute.xlu0 %2062
          %2066 = vset.pattern.permute.xlu0 0
          %2067 = vperm.xlu0 %2066, %v1075
          %v2068 = vpop.permute.xlu0 %2067
          %2071 = vset.pattern.permute.xlu0 0
          %2072 = vperm.xlu0 %2071, %v1077
          %v2073 = vpop.permute.xlu0 %2072
          %2076 = vset.pattern.permute.xlu0 0
          %2077 = vperm.xlu0 %2076, %v1079
          %v2078 = vpop.permute.xlu0 %2077
          %2081 = vset.pattern.permute.xlu0 0
          %2082 = vperm.xlu0 %2081, %v1081
          %v2083 = vpop.permute.xlu0 %2082
          %2086 = vset.pattern.permute.xlu0 0
          %2087 = vperm.xlu0 %2086, %v1083
          %v2088 = vpop.permute.xlu0 %2087
          %2091 = vset.pattern.permute.xlu0 0
          %2092 = vperm.xlu0 %2091, %v1085
          %v2093 = vpop.permute.xlu0 %2092
          %2096 = vset.pattern.permute.xlu0 0
          %2097 = vperm.xlu0 %2096, %v1087
          %v2098 = vpop.permute.xlu0 %2097
          %2101 = vset.pattern.permute.xlu0 0
          %2102 = vperm.xlu0 %2101, %v1089
          %v2103 = vpop.permute.xlu0 %2102
          %2106 = vset.pattern.permute.xlu0 0
          %2107 = vperm.xlu0 %2106, %v1091
          %v2108 = vpop.permute.xlu0 %2107
          %2111 = vset.pattern.permute.xlu0 0
          %2112 = vperm.xlu0 %2111, %v1093
          %v2113 = vpop.permute.xlu0 %2112
          %2116 = vset.pattern.permute.xlu0 0
          %2117 = vperm.xlu0 %2116, %v1095
          %v2118 = vpop.permute.xlu0 %2117
          %2121 = vset.pattern.permute.xlu0 0
          %2122 = vperm.xlu0 %2121, %v1097
          %v2123 = vpop.permute.xlu0 %2122
          %2126 = vset.pattern.permute.xlu0 0
          %2127 = vperm.xlu0 %2126, %v1099
          %v2128 = vpop.permute.xlu0 %2127
          %2131 = vset.pattern.permute.xlu0 0
          %2132 = vperm.xlu0 %2131, %v1101
          %v2133 = vpop.permute.xlu0 %2132
          %2136 = vset.pattern.permute.xlu0 0
          %2137 = vperm.xlu0 %2136, %v1103
          %v2138 = vpop.permute.xlu0 %2137
          %2141 = vset.pattern.permute.xlu0 0
          %2142 = vperm.xlu0 %2141, %v1105
          %v2143 = vpop.permute.xlu0 %2142
          %2146 = vset.pattern.permute.xlu0 0
          %2147 = vperm.xlu0 %2146, %v1107
          %v2148 = vpop.permute.xlu0 %2147
          %2151 = vset.pattern.permute.xlu0 0
          %2152 = vperm.xlu0 %2151, %v1109
          %v2153 = vpop.permute.xlu0 %2152
          %2156 = vset.pattern.permute.xlu0 0
          %2157 = vperm.xlu0 %2156, %v1111
          %v2158 = vpop.permute.xlu0 %2157
          %2161 = vset.pattern.permute.xlu0 0
          %2162 = vperm.xlu0 %2161, %v1113
          %v2163 = vpop.permute.xlu0 %2162
          %2166 = vset.pattern.permute.xlu0 0
          %2167 = vperm.xlu0 %2166, %v1115
          %v2168 = vpop.permute.xlu0 %2167
          %2171 = vset.pattern.permute.xlu0 0
          %2172 = vperm.xlu0 %2171, %v1117
          %v2173 = vpop.permute.xlu0 %2172
          %v2175 = vmul.f32 %v2018, %v1983
          %v2176 = vmul.f32 %v2023, %v1984
          %v2177 = vmul.f32 %v2028, %v1985
          %v2178 = vmul.f32 %v2033, %v1986
          %v2179 = vmul.f32 %v2038, %v1987
          %v2180 = vmul.f32 %v2043, %v1988
          %v2181 = vmul.f32 %v2048, %v1989
          %v2182 = vmul.f32 %v2053, %v1990
          %v2183 = vmul.f32 %v2058, %v1991
          %v2184 = vmul.f32 %v2063, %v1992
          %v2185 = vmul.f32 %v2068, %v1993
          %v2186 = vmul.f32 %v2073, %v1994
          %v2187 = vmul.f32 %v2078, %v1995
          %v2188 = vmul.f32 %v2083, %v1996
          %v2189 = vmul.f32 %v2088, %v1997
          %v2190 = vmul.f32 %v2093, %v1998
          %v2191 = vmul.f32 %v2098, %v1999
          %v2192 = vmul.f32 %v2103, %v2000
          %v2193 = vmul.f32 %v2108, %v2001
          %v2194 = vmul.f32 %v2113, %v2002
          %v2195 = vmul.f32 %v2118, %v2003
          %v2196 = vmul.f32 %v2123, %v2004
          %v2197 = vmul.f32 %v2128, %v2005
          %v2198 = vmul.f32 %v2133, %v2006
          %v2199 = vmul.f32 %v2138, %v2007
          %v2200 = vmul.f32 %v2143, %v2008
          %v2201 = vmul.f32 %v2148, %v2009
          %v2202 = vmul.f32 %v2153, %v2010
          %v2203 = vmul.f32 %v2158, %v2011
          %v2204 = vmul.f32 %v2163, %v2012
          %v2205 = vmul.f32 %v2168, %v2013
          %v2206 = vmul.f32 %v2173, %v2014
          %v2207 = vadd.f32 %v2175, %v1857
          %v2208 = vadd.f32 %v2176, %v1860
          %v2209 = vadd.f32 %v2177, %v1865
          %v2210 = vadd.f32 %v2178, %v1868
          %v2211 = vadd.f32 %v2179, %v1873
          %v2212 = vadd.f32 %v2180, %v1876
          %v2213 = vadd.f32 %v2181, %v1881
          %v2214 = vadd.f32 %v2182, %v1884
          %v2215 = vadd.f32 %v2183, %v1889
          %v2216 = vadd.f32 %v2184, %v1892
          %v2217 = vadd.f32 %v2185, %v1897
          %v2218 = vadd.f32 %v2186, %v1900
          %v2219 = vadd.f32 %v2187, %v1905
          %v2220 = vadd.f32 %v2188, %v1908
          %v2221 = vadd.f32 %v2189, %v1913
          %v2222 = vadd.f32 %v2190, %v1916
          %v2223 = vadd.f32 %v2191, %v1921
          %v2224 = vadd.f32 %v2192, %v1924
          %v2225 = vadd.f32 %v2193, %v1929
          %v2226 = vadd.f32 %v2194, %v1932
          %v2227 = vadd.f32 %v2195, %v1937
          %v2228 = vadd.f32 %v2196, %v1940
          %v2229 = vadd.f32 %v2197, %v1945
          %v2230 = vadd.f32 %v2198, %v1948
          %v2231 = vadd.f32 %v2199, %v1953
          %v2232 = vadd.f32 %v2200, %v1956
          %v2233 = vadd.f32 %v2201, %v1961
          %v2234 = vadd.f32 %v2202, %v1964
          %v2235 = vadd.f32 %v2203, %v1969
          %v2236 = vadd.f32 %v2204, %v1972
          %v2237 = vadd.f32 %v2205, %v1977
          %v2238 = vadd.f32 %v2206, %v1980
          %2239 = vst [vmem:[#allocation4] sm:$0xff] %v2207
          %2240 = vst [vmem:[#allocation4 + $0x8] sm:$0xff] %v2208
          %2241 = vst [vmem:[#allocation4 + $0x10] sm:$0xff] %v2209
          %2242 = vst [vmem:[#allocation4 + $0x18] sm:$0xff] %v2210
          %2243 = vst [vmem:[#allocation4 + $0x20] sm:$0xff] %v2211
          %2244 = vst [vmem:[#allocation4 + $0x28] sm:$0xff] %v2212
          %2245 = vst [vmem:[#allocation4 + $0x30] sm:$0xff] %v2213
          %2246 = vst [vmem:[#allocation4 + $0x38] sm:$0xff] %v2214
          %2247 = vst [vmem:[#allocation4 + $0x40] sm:$0xff] %v2215
          %2248 = vst [vmem:[#allocation4 + $0x48] sm:$0xff] %v2216
          %2249 = vst [vmem:[#allocation4 + $0x50] sm:$0xff] %v2217
          %2250 = vst [vmem:[#allocation4 + $0x58] sm:$0xff] %v2218
          %2251 = vst [vmem:[#allocation4 + $0x60] sm:$0xff] %v2219
          %2252 = vst [vmem:[#allocation4 + $0x68] sm:$0xff] %v2220
          %2253 = vst [vmem:[#allocation4 + $0x70] sm:$0xff] %v2221
          %2254 = vst [vmem:[#allocation4 + $0x78] sm:$0xff] %v2222
          %2255 = vst [vmem:[#allocation4 + $0x80] sm:$0xff] %v2223
          %2256 = vst [vmem:[#allocation4 + $0x88] sm:$0xff] %v2224
          %2257 = vst [vmem:[#allocation4 + $0x90] sm:$0xff] %v2225
          %2258 = vst [vmem:[#allocation4 + $0x98] sm:$0xff] %v2226
          %2259 = vst [vmem:[#allocation4 + $0xa0] sm:$0xff] %v2227
          %2260 = vst [vmem:[#allocation4 + $0xa8] sm:$0xff] %v2228
          %2261 = vst [vmem:[#allocation4 + $0xb0] sm:$0xff] %v2229
          %2262 = vst [vmem:[#allocation4 + $0xb8] sm:$0xff] %v2230
          %2263 = vst [vmem:[#allocation4 + $0xc0] sm:$0xff] %v2231
          %2264 = vst [vmem:[#allocation4 + $0xc8] sm:$0xff] %v2232
          %2265 = vst [vmem:[#allocation4 + $0xd0] sm:$0xff] %v2233
          %2266 = vst [vmem:[#allocation4 + $0xd8] sm:$0xff] %v2234
          %2267 = vst [vmem:[#allocation4 + $0xe0] sm:$0xff] %v2235
          %2268 = vst [vmem:[#allocation4 + $0xe8] sm:$0xff] %v2236
          %2269 = vst [vmem:[#allocation4 + $0xf0] sm:$0xff] %v2237
          %2270 = vst [vmem:[#allocation4 + $0xf8] sm:$0xff] %v2238
          %2271 = vst.msk [vmem:[#allocation2] sm:$0xff] %vm287, %v990
          %2272 = vst.msk [vmem:[#allocation2 + $0x8] sm:$0xff] %vm287, %v991
          %2273 = vst.msk [vmem:[#allocation2 + $0x10] sm:$0xff] %vm287, %v992
          %2274 = vst.msk [vmem:[#allocation2 + $0x18] sm:$0xff] %vm287, %v993
          %2275 = vst.msk [vmem:[#allocation2 + $0x20] sm:$0xff] %vm287, %v994
          %2276 = vst.msk [vmem:[#allocation2 + $0x28] sm:$0xff] %vm287, %v995
          %2277 = vst.msk [vmem:[#allocation2 + $0x30] sm:$0xff] %vm287, %v996
          %2278 = vst.msk [vmem:[#allocation2 + $0x38] sm:$0xff] %vm287, %v997
          %2279 = vst.msk [vmem:[#allocation2 + $0x40] sm:$0xff] %vm287, %v998
          %2280 = vst.msk [vmem:[#allocation2 + $0x48] sm:$0xff] %vm287, %v999
          %2281 = vst.msk [vmem:[#allocation2 + $0x50] sm:$0xff] %vm287, %v1000
          %2282 = vst.msk [vmem:[#allocation2 + $0x58] sm:$0xff] %vm287, %v1001
          %2283 = vst.msk [vmem:[#allocation2 + $0x60] sm:$0xff] %vm287, %v1002
          %2284 = vst.msk [vmem:[#allocation2 + $0x68] sm:$0xff] %vm287, %v1003
          %2285 = vst.msk [vmem:[#allocation2 + $0x70] sm:$0xff] %vm287, %v1004
          %2286 = vst.msk [vmem:[#allocation2 + $0x78] sm:$0xff] %vm287, %v1005
          %2287 = vst.msk [vmem:[#allocation2 + $0x80] sm:$0xff] %vm287, %v1006
          %2288 = vst.msk [vmem:[#allocation2 + $0x88] sm:$0xff] %vm287, %v1007
          %2289 = vst.msk [vmem:[#allocation2 + $0x90] sm:$0xff] %vm287, %v1008
          %2290 = vst.msk [vmem:[#allocation2 + $0x98] sm:$0xff] %vm287, %v1009
          %2291 = vst.msk [vmem:[#allocation2 + $0xa0] sm:$0xff] %vm287, %v1010
          %2292 = vst.msk [vmem:[#allocation2 + $0xa8] sm:$0xff] %vm287, %v1011
          %2293 = vst.msk [vmem:[#allocation2 + $0xb0] sm:$0xff] %vm287, %v1012
          %2294 = vst.msk [vmem:[#allocation2 + $0xb8] sm:$0xff] %vm287, %v1013
          %2295 = vst.msk [vmem:[#allocation2 + $0xc0] sm:$0xff] %vm287, %v1014
          %2296 = vst.msk [vmem:[#allocation2 + $0xc8] sm:$0xff] %vm287, %v1015
          %2297 = vst.msk [vmem:[#allocation2 + $0xd0] sm:$0xff] %vm287, %v1016
          %2298 = vst.msk [vmem:[#allocation2 + $0xd8] sm:$0xff] %vm287, %v1017
          %2299 = vst.msk [vmem:[#allocation2 + $0xe0] sm:$0xff] %vm287, %v1018
          %2300 = vst.msk [vmem:[#allocation2 + $0xe8] sm:$0xff] %vm287, %v1019
          %2301 = vst.msk [vmem:[#allocation2 + $0xf0] sm:$0xff] %vm287, %v1020
          %2302 = vst.msk [vmem:[#allocation2 + $0xf8] sm:$0xff] %vm287, %v1021
        $region49: #{tpu_custom_call.1} parent=31 // loop_footer
          %s499 = sadd.s32 %s497, 1
        $region50: #{tpu_custom_call.1} parent=31 // loop_footer_branch
          %496 = sbr.rel target = $region46
        $region51: #{tpu_custom_call.1} parent=31 // loop_exit
          _
        %v2303 = vlaneseq
        %v2304 = vshrl.u32 %v2303, 7
        %v2305 = vadd.s32 %v2304, 8
        %v2306 = vadd.s32 %v2304, 16
        %v2307 = vadd.s32 %v2304, 24
        %v2308 = vadd.s32 %v2304, 32
        %v2309 = vadd.s32 %v2304, 40
        %v2310 = vadd.s32 %v2304, 48
        %v2311 = vadd.s32 %v2304, 56
        %v2312 = vadd.s32 %v2304, 64
        %v2313 = vadd.s32 %v2304, 72
        %v2314 = vadd.s32 %v2304, 80
        %v2315 = vadd.s32 %v2304, 88
        %v2316 = vadd.s32 %v2304, 96
        %v2317 = vadd.s32 %v2304, 104
        %v2318 = vadd.s32 %v2304, 112
        %v2319 = vadd.s32 %v2304, 120
        %v2320 = vadd.s32 %v2304, 128
        %v2321 = vadd.s32 %v2304, 136
        %v2322 = vadd.s32 %v2304, 144
        %v2323 = vadd.s32 %v2304, 152
        %v2324 = vadd.s32 %v2304, 160
        %v2325 = vadd.s32 %v2304, 168
        %v2326 = vadd.s32 %v2304, 176
        %v2327 = vadd.s32 %v2304, 184
        %v2328 = vadd.s32 %v2304, 192
        %v2329 = vadd.s32 %v2304, 200
        %v2330 = vadd.s32 %v2304, 208
        %v2331 = vadd.s32 %v2304, 216
        %v2332 = vadd.s32 %v2304, 224
        %v2333 = vadd.s32 %v2304, 232
        %v2334 = vadd.s32 %v2304, 240
        %v2335 = vadd.s32 %v2304, 248
        %v2336 = vlaneseq
        %v2337 = vand.u32 %v2336, 127
        %v2338 = vadd.s32 %v2337, 128
        %s2339 = smul.u32 %s28, 256
        %s2340 = sshra.s32 %s2339, 3
        %s2341 = sand.u32 %s2339, 7
        %s2342 = smul.addr %s2340, 4
        %s2343 = scalar_lea.vmem %s242, %s2342 [#allocation8]
        %v2344 = vld [vmem:[%s2343] sm:$0xf]
        %v2345 = vld [vmem:[%s2343 + $0x4] sm:$0xf]
        %v2346 = vld [vmem:[%s2343 + $0x8] sm:$0xf]
        %v2347 = vld [vmem:[%s2343 + $0xc] sm:$0xf]
        %v2348 = vld [vmem:[%s2343 + $0x10] sm:$0xf]
        %v2349 = vld [vmem:[%s2343 + $0x14] sm:$0xf]
        %v2350 = vld [vmem:[%s2343 + $0x18] sm:$0xf]
        %v2351 = vld [vmem:[%s2343 + $0x1c] sm:$0xf]
        %v2352 = vld [vmem:[%s2343 + $0x20] sm:$0xf]
        %v2353 = vld [vmem:[%s2343 + $0x24] sm:$0xf]
        %v2354 = vld [vmem:[%s2343 + $0x28] sm:$0xf]
        %v2355 = vld [vmem:[%s2343 + $0x2c] sm:$0xf]
        %v2356 = vld [vmem:[%s2343 + $0x30] sm:$0xf]
        %v2357 = vld [vmem:[%s2343 + $0x34] sm:$0xf]
        %v2358 = vld [vmem:[%s2343 + $0x38] sm:$0xf]
        %v2359 = vld [vmem:[%s2343 + $0x3c] sm:$0xf]
        %v2360 = vld [vmem:[%s2343 + $0x40] sm:$0xf]
        %v2361 = vld [vmem:[%s2343 + $0x44] sm:$0xf]
        %v2362 = vld [vmem:[%s2343 + $0x48] sm:$0xf]
        %v2363 = vld [vmem:[%s2343 + $0x4c] sm:$0xf]
        %v2364 = vld [vmem:[%s2343 + $0x50] sm:$0xf]
        %v2365 = vld [vmem:[%s2343 + $0x54] sm:$0xf]
        %v2366 = vld [vmem:[%s2343 + $0x58] sm:$0xf]
        %v2367 = vld [vmem:[%s2343 + $0x5c] sm:$0xf]
        %v2368 = vld [vmem:[%s2343 + $0x60] sm:$0xf]
        %v2369 = vld [vmem:[%s2343 + $0x64] sm:$0xf]
        %v2370 = vld [vmem:[%s2343 + $0x68] sm:$0xf]
        %v2371 = vld [vmem:[%s2343 + $0x6c] sm:$0xf]
        %v2372 = vld [vmem:[%s2343 + $0x70] sm:$0xf]
        %v2373 = vld [vmem:[%s2343 + $0x74] sm:$0xf]
        %v2374 = vld [vmem:[%s2343 + $0x78] sm:$0xf]
        %v2375 = vld [vmem:[%s2343 + $0x7c] sm:$0xf]
        %s2376 = smul.addr %s2340, 4
        %s2377 = scalar_lea.vmem %s251, %s2376 [#allocation10]
        %v2378 = vld [vmem:[%s2377] sm:$0xf]
        %v2379 = vld [vmem:[%s2377 + $0x4] sm:$0xf]
        %v2380 = vld [vmem:[%s2377 + $0x8] sm:$0xf]
        %v2381 = vld [vmem:[%s2377 + $0xc] sm:$0xf]
        %v2382 = vld [vmem:[%s2377 + $0x10] sm:$0xf]
        %v2383 = vld [vmem:[%s2377 + $0x14] sm:$0xf]
        %v2384 = vld [vmem:[%s2377 + $0x18] sm:$0xf]
        %v2385 = vld [vmem:[%s2377 + $0x1c] sm:$0xf]
        %v2386 = vld [vmem:[%s2377 + $0x20] sm:$0xf]
        %v2387 = vld [vmem:[%s2377 + $0x24] sm:$0xf]
        %v2388 = vld [vmem:[%s2377 + $0x28] sm:$0xf]
        %v2389 = vld [vmem:[%s2377 + $0x2c] sm:$0xf]
        %v2390 = vld [vmem:[%s2377 + $0x30] sm:$0xf]
        %v2391 = vld [vmem:[%s2377 + $0x34] sm:$0xf]
        %v2392 = vld [vmem:[%s2377 + $0x38] sm:$0xf]
        %v2393 = vld [vmem:[%s2377 + $0x3c] sm:$0xf]
        %v2394 = vld [vmem:[%s2377 + $0x40] sm:$0xf]
        %v2395 = vld [vmem:[%s2377 + $0x44] sm:$0xf]
        %v2396 = vld [vmem:[%s2377 + $0x48] sm:$0xf]
        %v2397 = vld [vmem:[%s2377 + $0x4c] sm:$0xf]
        %v2398 = vld [vmem:[%s2377 + $0x50] sm:$0xf]
        %v2399 = vld [vmem:[%s2377 + $0x54] sm:$0xf]
        %v2400 = vld [vmem:[%s2377 + $0x58] sm:$0xf]
        %v2401 = vld [vmem:[%s2377 + $0x5c] sm:$0xf]
        %v2402 = vld [vmem:[%s2377 + $0x60] sm:$0xf]
        %v2403 = vld [vmem:[%s2377 + $0x64] sm:$0xf]
        %v2404 = vld [vmem:[%s2377 + $0x68] sm:$0xf]
        %v2405 = vld [vmem:[%s2377 + $0x6c] sm:$0xf]
        %v2406 = vld [vmem:[%s2377 + $0x70] sm:$0xf]
        %v2407 = vld [vmem:[%s2377 + $0x74] sm:$0xf]
        %v2408 = vld [vmem:[%s2377 + $0x78] sm:$0xf]
        %v2409 = vld [vmem:[%s2377 + $0x7c] sm:$0xf]
        %vm2410 = vcmp.ge.s32.totalorder %v2304, %v2337
        %vm2411 = vcmp.ge.s32.totalorder %v2304, %v2338
        %vm2412 = vcmp.ge.s32.totalorder %v2305, %v2337
        %vm2413 = vcmp.ge.s32.totalorder %v2305, %v2338
        %vm2414 = vcmp.ge.s32.totalorder %v2306, %v2337
        %vm2415 = vcmp.ge.s32.totalorder %v2306, %v2338
        %vm2416 = vcmp.ge.s32.totalorder %v2307, %v2337
        %vm2417 = vcmp.ge.s32.totalorder %v2307, %v2338
        %vm2418 = vcmp.ge.s32.totalorder %v2308, %v2337
        %vm2419 = vcmp.ge.s32.totalorder %v2308, %v2338
        %vm2420 = vcmp.ge.s32.totalorder %v2309, %v2337
        %vm2421 = vcmp.ge.s32.totalorder %v2309, %v2338
        %vm2422 = vcmp.ge.s32.totalorder %v2310, %v2337
        %vm2423 = vcmp.ge.s32.totalorder %v2310, %v2338
        %vm2424 = vcmp.ge.s32.totalorder %v2311, %v2337
        %vm2425 = vcmp.ge.s32.totalorder %v2311, %v2338
        %vm2426 = vcmp.ge.s32.totalorder %v2312, %v2337
        %vm2427 = vcmp.ge.s32.totalorder %v2312, %v2338
        %vm2428 = vcmp.ge.s32.totalorder %v2313, %v2337
        %vm2429 = vcmp.ge.s32.totalorder %v2313, %v2338
        %vm2430 = vcmp.ge.s32.totalorder %v2314, %v2337
        %vm2431 = vcmp.ge.s32.totalorder %v2314, %v2338
        %vm2432 = vcmp.ge.s32.totalorder %v2315, %v2337
        %vm2433 = vcmp.ge.s32.totalorder %v2315, %v2338
        %vm2434 = vcmp.ge.s32.totalorder %v2316, %v2337
        %vm2435 = vcmp.ge.s32.totalorder %v2316, %v2338
        %vm2436 = vcmp.ge.s32.totalorder %v2317, %v2337
        %vm2437 = vcmp.ge.s32.totalorder %v2317, %v2338
        %vm2438 = vcmp.ge.s32.totalorder %v2318, %v2337
        %vm2439 = vcmp.ge.s32.totalorder %v2318, %v2338
        %vm2440 = vcmp.ge.s32.totalorder %v2319, %v2337
        %vm2441 = vcmp.ge.s32.totalorder %v2319, %v2338
        %vm2442 = vcmp.ge.s32.totalorder %v2320, %v2337
        %vm2443 = vcmp.ge.s32.totalorder %v2320, %v2338
        %vm2444 = vcmp.ge.s32.totalorder %v2321, %v2337
        %vm2445 = vcmp.ge.s32.totalorder %v2321, %v2338
        %vm2446 = vcmp.ge.s32.totalorder %v2322, %v2337
        %vm2447 = vcmp.ge.s32.totalorder %v2322, %v2338
        %vm2448 = vcmp.ge.s32.totalorder %v2323, %v2337
        %vm2449 = vcmp.ge.s32.totalorder %v2323, %v2338
        %vm2450 = vcmp.ge.s32.totalorder %v2324, %v2337
        %vm2451 = vcmp.ge.s32.totalorder %v2324, %v2338
        %vm2452 = vcmp.ge.s32.totalorder %v2325, %v2337
        %vm2453 = vcmp.ge.s32.totalorder %v2325, %v2338
        %vm2454 = vcmp.ge.s32.totalorder %v2326, %v2337
        %vm2455 = vcmp.ge.s32.totalorder %v2326, %v2338
        %vm2456 = vcmp.ge.s32.totalorder %v2327, %v2337
        %vm2457 = vcmp.ge.s32.totalorder %v2327, %v2338
        %vm2458 = vcmp.ge.s32.totalorder %v2328, %v2337
        %vm2459 = vcmp.ge.s32.totalorder %v2328, %v2338
        %vm2460 = vcmp.ge.s32.totalorder %v2329, %v2337
        %vm2461 = vcmp.ge.s32.totalorder %v2329, %v2338
        %vm2462 = vcmp.ge.s32.totalorder %v2330, %v2337
        %vm2463 = vcmp.ge.s32.totalorder %v2330, %v2338
        %vm2464 = vcmp.ge.s32.totalorder %v2331, %v2337
        %vm2465 = vcmp.ge.s32.totalorder %v2331, %v2338
        %vm2466 = vcmp.ge.s32.totalorder %v2332, %v2337
        %vm2467 = vcmp.ge.s32.totalorder %v2332, %v2338
        %vm2468 = vcmp.ge.s32.totalorder %v2333, %v2337
        %vm2469 = vcmp.ge.s32.totalorder %v2333, %v2338
        %vm2470 = vcmp.ge.s32.totalorder %v2334, %v2337
        %vm2471 = vcmp.ge.s32.totalorder %v2334, %v2338
        %vm2472 = vcmp.ge.s32.totalorder %v2335, %v2337
        %vm2473 = vcmp.ge.s32.totalorder %v2335, %v2338
        %v2506 = vunpack.c.l.b16 %v2344
        %v2507 = vunpack.c.l.b16 %v2345
        %v2508 = vunpack.c.l.b16 %v2346
        %v2509 = vunpack.c.l.b16 %v2347
        %v2510 = vunpack.c.l.b16 %v2348
        %v2511 = vunpack.c.l.b16 %v2349
        %v2512 = vunpack.c.l.b16 %v2350
        %v2513 = vunpack.c.l.b16 %v2351
        %v2514 = vunpack.c.l.b16 %v2352
        %v2515 = vunpack.c.l.b16 %v2353
        %v2516 = vunpack.c.l.b16 %v2354
        %v2517 = vunpack.c.l.b16 %v2355
        %v2518 = vunpack.c.l.b16 %v2356
        %v2519 = vunpack.c.l.b16 %v2357
        %v2520 = vunpack.c.l.b16 %v2358
        %v2521 = vunpack.c.l.b16 %v2359
        %v2522 = vunpack.c.l.b16 %v2360
        %v2523 = vunpack.c.l.b16 %v2361
        %v2524 = vunpack.c.l.b16 %v2362
        %v2525 = vunpack.c.l.b16 %v2363
        %v2526 = vunpack.c.l.b16 %v2364
        %v2527 = vunpack.c.l.b16 %v2365
        %v2528 = vunpack.c.l.b16 %v2366
        %v2529 = vunpack.c.l.b16 %v2367
        %v2530 = vunpack.c.l.b16 %v2368
        %v2531 = vunpack.c.l.b16 %v2369
        %v2532 = vunpack.c.l.b16 %v2370
        %v2533 = vunpack.c.l.b16 %v2371
        %v2534 = vunpack.c.l.b16 %v2372
        %v2535 = vunpack.c.l.b16 %v2373
        %v2536 = vunpack.c.l.b16 %v2374
        %v2537 = vunpack.c.l.b16 %v2375
        %v2538 = vpack.c.b16 %v2507, %v2506
        %v2539 = vpack.c.b16 %v2509, %v2508
        %v2540 = vpack.c.b16 %v2511, %v2510
        %v2541 = vpack.c.b16 %v2513, %v2512
        %v2542 = vpack.c.b16 %v2515, %v2514
        %v2543 = vpack.c.b16 %v2517, %v2516
        %v2544 = vpack.c.b16 %v2519, %v2518
        %v2545 = vpack.c.b16 %v2521, %v2520
        %v2546 = vpack.c.b16 %v2523, %v2522
        %v2547 = vpack.c.b16 %v2525, %v2524
        %v2548 = vpack.c.b16 %v2527, %v2526
        %v2549 = vpack.c.b16 %v2529, %v2528
        %v2550 = vpack.c.b16 %v2531, %v2530
        %v2551 = vpack.c.b16 %v2533, %v2532
        %v2552 = vpack.c.b16 %v2535, %v2534
        %v2553 = vpack.c.b16 %v2537, %v2536
        %2570 = vmatprep.subr.bf16.mxu0 0
        %2571 = vmatpush1.bf16.xpose.msra.mxu0 %v2545
        %2572 = vmatprep.subr.bf16.mxu0 0
        %2573 = vmatpush1.bf16.xpose.msra.mxu0 %v2544
        %2574 = vmatprep.subr.bf16.mxu0 0
        %2575 = vmatpush1.bf16.xpose.msra.mxu0 %v2543
        %2576 = vmatprep.subr.bf16.mxu0 0
        %2577 = vmatpush1.bf16.xpose.msra.mxu0 %v2542
        %2578 = vmatprep.subr.bf16.mxu0 0
        %2579 = vmatpush1.bf16.xpose.msra.mxu0 %v2541
        %2580 = vmatprep.subr.bf16.mxu0 0
        %2581 = vmatpush1.bf16.xpose.msra.mxu0 %v2540
        %2582 = vmatprep.subr.bf16.mxu0 0
        %2583 = vmatpush1.bf16.xpose.msra.mxu0 %v2539
        %2584 = vmatprep.subr.bf16.mxu0 0
        %2585 = vmatpush1.bf16.xpose.msra.mxu0 %v2538
        %2586 = vmatprep.subr.bf16.mxu0 0
        %2587 = vmatpush2.bf16.xpose.msra.mxu0 %v2553
        %2588 = vmatprep.subr.bf16.mxu0 0
        %2589 = vmatpush2.bf16.xpose.msra.mxu0 %v2552
        %2590 = vmatprep.subr.bf16.mxu0 0
        %2591 = vmatpush2.bf16.xpose.msra.mxu0 %v2551
        %2592 = vmatprep.subr.bf16.mxu0 0
        %2593 = vmatpush2.bf16.xpose.msra.mxu0 %v2550
        %2594 = vmatprep.subr.bf16.mxu0 0
        %2595 = vmatpush2.bf16.xpose.msra.mxu0 %v2549
        %2596 = vmatprep.subr.bf16.mxu0 0
        %2597 = vmatpush2.bf16.xpose.msra.mxu0 %v2548
        %2598 = vmatprep.subr.bf16.mxu0 0
        %2599 = vmatpush2.bf16.xpose.msra.mxu0 %v2547
        %2600 = vmatprep.subr.bf16.mxu0 0
        %2601 = vmatpush2.bf16.xpose.msra.mxu0 %v2546
        %2602 = vmatprep.mubr.bf16.mxu0 0
        %2603 = vmatmul.mubr.bf16.gmra.mxu0 %v480
        %v2604 = vpop.f32.mrf.mxu0
        %v2605 = vadd.f32 0.0, %v2604
        %v2606 = vpop.f32.mrf.mxu0
        %v2607 = vadd.f32 0.0, %v2606
        %v2608 = vpop.f32.mrf.mxu0
        %v2609 = vadd.f32 0.0, %v2608
        %v2610 = vpop.f32.mrf.mxu0
        %v2611 = vadd.f32 0.0, %v2610
        %2612 = vmatprep.mubr.bf16.mxu0 0
        %2613 = vmatmul.mubr.bf16.gmra.mxu0 %v481
        %v2614 = vpop.f32.mrf.mxu0
        %v2615 = vadd.f32 0.0, %v2614
        %v2616 = vpop.f32.mrf.mxu0
        %v2617 = vadd.f32 0.0, %v2616
        %v2618 = vpop.f32.mrf.mxu0
        %v2619 = vadd.f32 0.0, %v2618
        %v2620 = vpop.f32.mrf.mxu0
        %v2621 = vadd.f32 0.0, %v2620
        %2622 = vmatprep.mubr.bf16.mxu0 0
        %2623 = vmatmul.mubr.bf16.gmra.mxu0 %v482
        %v2624 = vpop.f32.mrf.mxu0
        %v2625 = vadd.f32 0.0, %v2624
        %v2626 = vpop.f32.mrf.mxu0
        %v2627 = vadd.f32 0.0, %v2626
        %v2628 = vpop.f32.mrf.mxu0
        %v2629 = vadd.f32 0.0, %v2628
        %v2630 = vpop.f32.mrf.mxu0
        %v2631 = vadd.f32 0.0, %v2630
        %2632 = vmatprep.mubr.bf16.mxu0 0
        %2633 = vmatmul.mubr.bf16.gmra.mxu0 %v483
        %v2634 = vpop.f32.mrf.mxu0
        %v2635 = vadd.f32 0.0, %v2634
        %v2636 = vpop.f32.mrf.mxu0
        %v2637 = vadd.f32 0.0, %v2636
        %v2638 = vpop.f32.mrf.mxu0
        %v2639 = vadd.f32 0.0, %v2638
        %v2640 = vpop.f32.mrf.mxu0
        %v2641 = vadd.f32 0.0, %v2640
        %2642 = vmatprep.mubr.bf16.mxu0 0
        %2643 = vmatmul.mubr.bf16.gmra.mxu0 %v484
        %v2644 = vpop.f32.mrf.mxu0
        %v2645 = vadd.f32 0.0, %v2644
        %v2646 = vpop.f32.mrf.mxu0
        %v2647 = vadd.f32 0.0, %v2646
        %v2648 = vpop.f32.mrf.mxu0
        %v2649 = vadd.f32 0.0, %v2648
        %v2650 = vpop.f32.mrf.mxu0
        %v2651 = vadd.f32 0.0, %v2650
        %2652 = vmatprep.mubr.bf16.mxu0 0
        %2653 = vmatmul.mubr.bf16.gmra.mxu0 %v485
        %v2654 = vpop.f32.mrf.mxu0
        %v2655 = vadd.f32 0.0, %v2654
        %v2656 = vpop.f32.mrf.mxu0
        %v2657 = vadd.f32 0.0, %v2656
        %v2658 = vpop.f32.mrf.mxu0
        %v2659 = vadd.f32 0.0, %v2658
        %v2660 = vpop.f32.mrf.mxu0
        %v2661 = vadd.f32 0.0, %v2660
        %2662 = vmatprep.mubr.bf16.mxu0 0
        %2663 = vmatmul.mubr.bf16.gmra.mxu0 %v486
        %v2664 = vpop.f32.mrf.mxu0
        %v2665 = vadd.f32 0.0, %v2664
        %v2666 = vpop.f32.mrf.mxu0
        %v2667 = vadd.f32 0.0, %v2666
        %v2668 = vpop.f32.mrf.mxu0
        %v2669 = vadd.f32 0.0, %v2668
        %v2670 = vpop.f32.mrf.mxu0
        %v2671 = vadd.f32 0.0, %v2670
        %2672 = vmatprep.mubr.bf16.mxu0 0
        %2673 = vmatmul.mubr.bf16.gmra.mxu0 %v487
        %v2674 = vpop.f32.mrf.mxu0
        %v2675 = vadd.f32 0.0, %v2674
        %v2676 = vpop.f32.mrf.mxu0
        %v2677 = vadd.f32 0.0, %v2676
        %v2678 = vpop.f32.mrf.mxu0
        %v2679 = vadd.f32 0.0, %v2678
        %v2680 = vpop.f32.mrf.mxu0
        %v2681 = vadd.f32 0.0, %v2680
        %2682 = vmatprep.mubr.bf16.mxu0 0
        %2683 = vmatmul.mubr.bf16.gmra.mxu0 %v488
        %v2684 = vpop.f32.mrf.mxu0
        %v2685 = vadd.f32 0.0, %v2684
        %v2686 = vpop.f32.mrf.mxu0
        %v2687 = vadd.f32 0.0, %v2686
        %v2688 = vpop.f32.mrf.mxu0
        %v2689 = vadd.f32 0.0, %v2688
        %v2690 = vpop.f32.mrf.mxu0
        %v2691 = vadd.f32 0.0, %v2690
        %2692 = vmatprep.mubr.bf16.mxu0 0
        %2693 = vmatmul.mubr.bf16.gmra.mxu0 %v489
        %v2694 = vpop.f32.mrf.mxu0
        %v2695 = vadd.f32 0.0, %v2694
        %v2696 = vpop.f32.mrf.mxu0
        %v2697 = vadd.f32 0.0, %v2696
        %v2698 = vpop.f32.mrf.mxu0
        %v2699 = vadd.f32 0.0, %v2698
        %v2700 = vpop.f32.mrf.mxu0
        %v2701 = vadd.f32 0.0, %v2700
        %2702 = vmatprep.mubr.bf16.mxu0 0
        %2703 = vmatmul.mubr.bf16.gmra.mxu0 %v490
        %v2704 = vpop.f32.mrf.mxu0
        %v2705 = vadd.f32 0.0, %v2704
        %v2706 = vpop.f32.mrf.mxu0
        %v2707 = vadd.f32 0.0, %v2706
        %v2708 = vpop.f32.mrf.mxu0
        %v2709 = vadd.f32 0.0, %v2708
        %v2710 = vpop.f32.mrf.mxu0
        %v2711 = vadd.f32 0.0, %v2710
        %2712 = vmatprep.mubr.bf16.mxu0 0
        %2713 = vmatmul.mubr.bf16.gmra.mxu0 %v491
        %v2714 = vpop.f32.mrf.mxu0
        %v2715 = vadd.f32 0.0, %v2714
        %v2716 = vpop.f32.mrf.mxu0
        %v2717 = vadd.f32 0.0, %v2716
        %v2718 = vpop.f32.mrf.mxu0
        %v2719 = vadd.f32 0.0, %v2718
        %v2720 = vpop.f32.mrf.mxu0
        %v2721 = vadd.f32 0.0, %v2720
        %2722 = vmatprep.mubr.bf16.mxu0 0
        %2723 = vmatmul.mubr.bf16.gmra.mxu0 %v492
        %v2724 = vpop.f32.mrf.mxu0
        %v2725 = vadd.f32 0.0, %v2724
        %v2726 = vpop.f32.mrf.mxu0
        %v2727 = vadd.f32 0.0, %v2726
        %v2728 = vpop.f32.mrf.mxu0
        %v2729 = vadd.f32 0.0, %v2728
        %v2730 = vpop.f32.mrf.mxu0
        %v2731 = vadd.f32 0.0, %v2730
        %2732 = vmatprep.mubr.bf16.mxu0 0
        %2733 = vmatmul.mubr.bf16.gmra.mxu0 %v493
        %v2734 = vpop.f32.mrf.mxu0
        %v2735 = vadd.f32 0.0, %v2734
        %v2736 = vpop.f32.mrf.mxu0
        %v2737 = vadd.f32 0.0, %v2736
        %v2738 = vpop.f32.mrf.mxu0
        %v2739 = vadd.f32 0.0, %v2738
        %v2740 = vpop.f32.mrf.mxu0
        %v2741 = vadd.f32 0.0, %v2740
        %2742 = vmatprep.mubr.bf16.mxu0 0
        %2743 = vmatmul.mubr.bf16.gmra.mxu0 %v494
        %v2744 = vpop.f32.mrf.mxu0
        %v2745 = vadd.f32 0.0, %v2744
        %v2746 = vpop.f32.mrf.mxu0
        %v2747 = vadd.f32 0.0, %v2746
        %v2748 = vpop.f32.mrf.mxu0
        %v2749 = vadd.f32 0.0, %v2748
        %v2750 = vpop.f32.mrf.mxu0
        %v2751 = vadd.f32 0.0, %v2750
        %2752 = vmatprep.mubr.bf16.mxu0 0
        %2753 = vmatmul.mubr.bf16.gmra.mxu0 %v495
        %v2754 = vpop.f32.mrf.mxu0
        %v2755 = vadd.f32 0.0, %v2754
        %v2756 = vpop.f32.mrf.mxu0
        %v2757 = vadd.f32 0.0, %v2756
        %v2758 = vpop.f32.mrf.mxu0
        %v2759 = vadd.f32 0.0, %v2758
        %v2760 = vpop.f32.mrf.mxu0
        %v2761 = vadd.f32 0.0, %v2760
        %2762 = vdwg.mxu0
        %v2763 = vsel %vm2410, %v2605, -1e+30
        %v2764 = vsel %vm2411, %v2607, -1e+30
        %v2765 = vsel %vm2412, %v2609, -1e+30
        %v2766 = vsel %vm2413, %v2611, -1e+30
        %v2767 = vsel %vm2414, %v2615, -1e+30
        %v2768 = vsel %vm2415, %v2617, -1e+30
        %v2769 = vsel %vm2416, %v2619, -1e+30
        %v2770 = vsel %vm2417, %v2621, -1e+30
        %v2771 = vsel %vm2418, %v2625, -1e+30
        %v2772 = vsel %vm2419, %v2627, -1e+30
        %v2773 = vsel %vm2420, %v2629, -1e+30
        %v2774 = vsel %vm2421, %v2631, -1e+30
        %v2775 = vsel %vm2422, %v2635, -1e+30
        %v2776 = vsel %vm2423, %v2637, -1e+30
        %v2777 = vsel %vm2424, %v2639, -1e+30
        %v2778 = vsel %vm2425, %v2641, -1e+30
        %v2779 = vsel %vm2426, %v2645, -1e+30
        %v2780 = vsel %vm2427, %v2647, -1e+30
        %v2781 = vsel %vm2428, %v2649, -1e+30
        %v2782 = vsel %vm2429, %v2651, -1e+30
        %v2783 = vsel %vm2430, %v2655, -1e+30
        %v2784 = vsel %vm2431, %v2657, -1e+30
        %v2785 = vsel %vm2432, %v2659, -1e+30
        %v2786 = vsel %vm2433, %v2661, -1e+30
        %v2787 = vsel %vm2434, %v2665, -1e+30
        %v2788 = vsel %vm2435, %v2667, -1e+30
        %v2789 = vsel %vm2436, %v2669, -1e+30
        %v2790 = vsel %vm2437, %v2671, -1e+30
        %v2791 = vsel %vm2438, %v2675, -1e+30
        %v2792 = vsel %vm2439, %v2677, -1e+30
        %v2793 = vsel %vm2440, %v2679, -1e+30
        %v2794 = vsel %vm2441, %v2681, -1e+30
        %v2795 = vsel %vm2442, %v2685, -1e+30
        %v2796 = vsel %vm2443, %v2687, -1e+30
        %v2797 = vsel %vm2444, %v2689, -1e+30
        %v2798 = vsel %vm2445, %v2691, -1e+30
        %v2799 = vsel %vm2446, %v2695, -1e+30
        %v2800 = vsel %vm2447, %v2697, -1e+30
        %v2801 = vsel %vm2448, %v2699, -1e+30
        %v2802 = vsel %vm2449, %v2701, -1e+30
        %v2803 = vsel %vm2450, %v2705, -1e+30
        %v2804 = vsel %vm2451, %v2707, -1e+30
        %v2805 = vsel %vm2452, %v2709, -1e+30
        %v2806 = vsel %vm2453, %v2711, -1e+30
        %v2807 = vsel %vm2454, %v2715, -1e+30
        %v2808 = vsel %vm2455, %v2717, -1e+30
        %v2809 = vsel %vm2456, %v2719, -1e+30
        %v2810 = vsel %vm2457, %v2721, -1e+30
        %v2811 = vsel %vm2458, %v2725, -1e+30
        %v2812 = vsel %vm2459, %v2727, -1e+30
        %v2813 = vsel %vm2460, %v2729, -1e+30
        %v2814 = vsel %vm2461, %v2731, -1e+30
        %v2815 = vsel %vm2462, %v2735, -1e+30
        %v2816 = vsel %vm2463, %v2737, -1e+30
        %v2817 = vsel %vm2464, %v2739, -1e+30
        %v2818 = vsel %vm2465, %v2741, -1e+30
        %v2819 = vsel %vm2466, %v2745, -1e+30
        %v2820 = vsel %vm2467, %v2747, -1e+30
        %v2821 = vsel %vm2468, %v2749, -1e+30
        %v2822 = vsel %vm2469, %v2751, -1e+30
        %v2823 = vsel %vm2470, %v2755, -1e+30
        %v2824 = vsel %vm2471, %v2757, -1e+30
        %v2825 = vsel %vm2472, %v2759, -1e+30
        %v2826 = vsel %vm2473, %v2761, -1e+30
        %v2827 = vld [vmem:[#allocation2] sm:$0xff]
        %v2828 = vld [vmem:[#allocation2 + $0x8] sm:$0xff]
        %v2829 = vld [vmem:[#allocation2 + $0x10] sm:$0xff]
        %v2830 = vld [vmem:[#allocation2 + $0x18] sm:$0xff]
        %v2831 = vld [vmem:[#allocation2 + $0x20] sm:$0xff]
        %v2832 = vld [vmem:[#allocation2 + $0x28] sm:$0xff]
        %v2833 = vld [vmem:[#allocation2 + $0x30] sm:$0xff]
        %v2834 = vld [vmem:[#allocation2 + $0x38] sm:$0xff]
        %v2835 = vld [vmem:[#allocation2 + $0x40] sm:$0xff]
        %v2836 = vld [vmem:[#allocation2 + $0x48] sm:$0xff]
        %v2837 = vld [vmem:[#allocation2 + $0x50] sm:$0xff]
        %v2838 = vld [vmem:[#allocation2 + $0x58] sm:$0xff]
        %v2839 = vld [vmem:[#allocation2 + $0x60] sm:$0xff]
        %v2840 = vld [vmem:[#allocation2 + $0x68] sm:$0xff]
        %v2841 = vld [vmem:[#allocation2 + $0x70] sm:$0xff]
        %v2842 = vld [vmem:[#allocation2 + $0x78] sm:$0xff]
        %v2843 = vld [vmem:[#allocation2 + $0x80] sm:$0xff]
        %v2844 = vld [vmem:[#allocation2 + $0x88] sm:$0xff]
        %v2845 = vld [vmem:[#allocation2 + $0x90] sm:$0xff]
        %v2846 = vld [vmem:[#allocation2 + $0x98] sm:$0xff]
        %v2847 = vld [vmem:[#allocation2 + $0xa0] sm:$0xff]
        %v2848 = vld [vmem:[#allocation2 + $0xa8] sm:$0xff]
        %v2849 = vld [vmem:[#allocation2 + $0xb0] sm:$0xff]
        %v2850 = vld [vmem:[#allocation2 + $0xb8] sm:$0xff]
        %v2851 = vld [vmem:[#allocation2 + $0xc0] sm:$0xff]
        %v2852 = vld [vmem:[#allocation2 + $0xc8] sm:$0xff]
        %v2853 = vld [vmem:[#allocation2 + $0xd0] sm:$0xff]
        %v2854 = vld [vmem:[#allocation2 + $0xd8] sm:$0xff]
        %v2855 = vld [vmem:[#allocation2 + $0xe0] sm:$0xff]
        %v2856 = vld [vmem:[#allocation2 + $0xe8] sm:$0xff]
        %v2857 = vld [vmem:[#allocation2 + $0xf0] sm:$0xff]
        %v2858 = vld [vmem:[#allocation2 + $0xf8] sm:$0xff]
        %v2859 = vmax.f32 %v2763, %v2764
        %2860 = vmax.xlane.f32.xlu0 %v2859
        %v2861 = vpop.xlane.xlu0 %2860
        %v2862 = vmax.f32 %v2765, %v2766
        %2863 = vmax.xlane.f32.xlu0 %v2862
        %v2864 = vpop.xlane.xlu0 %2863
        %v2865 = vmax.f32 %v2767, %v2768
        %2866 = vmax.xlane.f32.xlu0 %v2865
        %v2867 = vpop.xlane.xlu0 %2866
        %v2868 = vmax.f32 %v2769, %v2770
        %2869 = vmax.xlane.f32.xlu0 %v2868
        %v2870 = vpop.xlane.xlu0 %2869
        %v2871 = vmax.f32 %v2771, %v2772
        %2872 = vmax.xlane.f32.xlu0 %v2871
        %v2873 = vpop.xlane.xlu0 %2872
        %v2874 = vmax.f32 %v2773, %v2774
        %2875 = vmax.xlane.f32.xlu0 %v2874
        %v2876 = vpop.xlane.xlu0 %2875
        %v2877 = vmax.f32 %v2775, %v2776
        %2878 = vmax.xlane.f32.xlu0 %v2877
        %v2879 = vpop.xlane.xlu0 %2878
        %v2880 = vmax.f32 %v2777, %v2778
        %2881 = vmax.xlane.f32.xlu0 %v2880
        %v2882 = vpop.xlane.xlu0 %2881
        %v2883 = vmax.f32 %v2779, %v2780
        %2884 = vmax.xlane.f32.xlu0 %v2883
        %v2885 = vpop.xlane.xlu0 %2884
        %v2886 = vmax.f32 %v2781, %v2782
        %2887 = vmax.xlane.f32.xlu0 %v2886
        %v2888 = vpop.xlane.xlu0 %2887
        %v2889 = vmax.f32 %v2783, %v2784
        %2890 = vmax.xlane.f32.xlu0 %v2889
        %v2891 = vpop.xlane.xlu0 %2890
        %v2892 = vmax.f32 %v2785, %v2786
        %2893 = vmax.xlane.f32.xlu0 %v2892
        %v2894 = vpop.xlane.xlu0 %2893
        %v2895 = vmax.f32 %v2787, %v2788
        %2896 = vmax.xlane.f32.xlu0 %v2895
        %v2897 = vpop.xlane.xlu0 %2896
        %v2898 = vmax.f32 %v2789, %v2790
        %2899 = vmax.xlane.f32.xlu0 %v2898
        %v2900 = vpop.xlane.xlu0 %2899
        %v2901 = vmax.f32 %v2791, %v2792
        %2902 = vmax.xlane.f32.xlu0 %v2901
        %v2903 = vpop.xlane.xlu0 %2902
        %v2904 = vmax.f32 %v2793, %v2794
        %2905 = vmax.xlane.f32.xlu0 %v2904
        %v2906 = vpop.xlane.xlu0 %2905
        %v2907 = vmax.f32 %v2795, %v2796
        %2908 = vmax.xlane.f32.xlu0 %v2907
        %v2909 = vpop.xlane.xlu0 %2908
        %v2910 = vmax.f32 %v2797, %v2798
        %2911 = vmax.xlane.f32.xlu0 %v2910
        %v2912 = vpop.xlane.xlu0 %2911
        %v2913 = vmax.f32 %v2799, %v2800
        %2914 = vmax.xlane.f32.xlu0 %v2913
        %v2915 = vpop.xlane.xlu0 %2914
        %v2916 = vmax.f32 %v2801, %v2802
        %2917 = vmax.xlane.f32.xlu0 %v2916
        %v2918 = vpop.xlane.xlu0 %2917
        %v2919 = vmax.f32 %v2803, %v2804
        %2920 = vmax.xlane.f32.xlu0 %v2919
        %v2921 = vpop.xlane.xlu0 %2920
        %v2922 = vmax.f32 %v2805, %v2806
        %2923 = vmax.xlane.f32.xlu0 %v2922
        %v2924 = vpop.xlane.xlu0 %2923
        %v2925 = vmax.f32 %v2807, %v2808
        %2926 = vmax.xlane.f32.xlu0 %v2925
        %v2927 = vpop.xlane.xlu0 %2926
        %v2928 = vmax.f32 %v2809, %v2810
        %2929 = vmax.xlane.f32.xlu0 %v2928
        %v2930 = vpop.xlane.xlu0 %2929
        %v2931 = vmax.f32 %v2811, %v2812
        %2932 = vmax.xlane.f32.xlu0 %v2931
        %v2933 = vpop.xlane.xlu0 %2932
        %v2934 = vmax.f32 %v2813, %v2814
        %2935 = vmax.xlane.f32.xlu0 %v2934
        %v2936 = vpop.xlane.xlu0 %2935
        %v2937 = vmax.f32 %v2815, %v2816
        %2938 = vmax.xlane.f32.xlu0 %v2937
        %v2939 = vpop.xlane.xlu0 %2938
        %v2940 = vmax.f32 %v2817, %v2818
        %2941 = vmax.xlane.f32.xlu0 %v2940
        %v2942 = vpop.xlane.xlu0 %2941
        %v2943 = vmax.f32 %v2819, %v2820
        %2944 = vmax.xlane.f32.xlu0 %v2943
        %v2945 = vpop.xlane.xlu0 %2944
        %v2946 = vmax.f32 %v2821, %v2822
        %2947 = vmax.xlane.f32.xlu0 %v2946
        %v2948 = vpop.xlane.xlu0 %2947
        %v2949 = vmax.f32 %v2823, %v2824
        %2950 = vmax.xlane.f32.xlu0 %v2949
        %v2951 = vpop.xlane.xlu0 %2950
        %v2952 = vmax.f32 %v2825, %v2826
        %2953 = vmax.xlane.f32.xlu0 %v2952
        %v2954 = vpop.xlane.xlu0 %2953
        %v2955 = vmax.f32 %v2827, %v2861
        %v2956 = vmax.f32 %v2828, %v2864
        %v2957 = vmax.f32 %v2829, %v2867
        %v2958 = vmax.f32 %v2830, %v2870
        %v2959 = vmax.f32 %v2831, %v2873
        %v2960 = vmax.f32 %v2832, %v2876
        %v2961 = vmax.f32 %v2833, %v2879
        %v2962 = vmax.f32 %v2834, %v2882
        %v2963 = vmax.f32 %v2835, %v2885
        %v2964 = vmax.f32 %v2836, %v2888
        %v2965 = vmax.f32 %v2837, %v2891
        %v2966 = vmax.f32 %v2838, %v2894
        %v2967 = vmax.f32 %v2839, %v2897
        %v2968 = vmax.f32 %v2840, %v2900
        %v2969 = vmax.f32 %v2841, %v2903
        %v2970 = vmax.f32 %v2842, %v2906
        %v2971 = vmax.f32 %v2843, %v2909
        %v2972 = vmax.f32 %v2844, %v2912
        %v2973 = vmax.f32 %v2845, %v2915
        %v2974 = vmax.f32 %v2846, %v2918
        %v2975 = vmax.f32 %v2847, %v2921
        %v2976 = vmax.f32 %v2848, %v2924
        %v2977 = vmax.f32 %v2849, %v2927
        %v2978 = vmax.f32 %v2850, %v2930
        %v2979 = vmax.f32 %v2851, %v2933
        %v2980 = vmax.f32 %v2852, %v2936
        %v2981 = vmax.f32 %v2853, %v2939
        %v2982 = vmax.f32 %v2854, %v2942
        %v2983 = vmax.f32 %v2855, %v2945
        %v2984 = vmax.f32 %v2856, %v2948
        %v2985 = vmax.f32 %v2857, %v2951
        %v2986 = vmax.f32 %v2858, %v2954
        %v2987 = vsub.f32 %v2827, %v2955
        %v2988 = vsub.f32 %v2828, %v2956
        %v2989 = vsub.f32 %v2829, %v2957
        %v2990 = vsub.f32 %v2830, %v2958
        %v2991 = vsub.f32 %v2831, %v2959
        %v2992 = vsub.f32 %v2832, %v2960
        %v2993 = vsub.f32 %v2833, %v2961
        %v2994 = vsub.f32 %v2834, %v2962
        %v2995 = vsub.f32 %v2835, %v2963
        %v2996 = vsub.f32 %v2836, %v2964
        %v2997 = vsub.f32 %v2837, %v2965
        %v2998 = vsub.f32 %v2838, %v2966
        %v2999 = vsub.f32 %v2839, %v2967
        %v3000 = vsub.f32 %v2840, %v2968
        %v3001 = vsub.f32 %v2841, %v2969
        %v3002 = vsub.f32 %v2842, %v2970
        %v3003 = vsub.f32 %v2843, %v2971
        %v3004 = vsub.f32 %v2844, %v2972
        %v3005 = vsub.f32 %v2845, %v2973
        %v3006 = vsub.f32 %v2846, %v2974
        %v3007 = vsub.f32 %v2847, %v2975
        %v3008 = vsub.f32 %v2848, %v2976
        %v3009 = vsub.f32 %v2849, %v2977
        %v3010 = vsub.f32 %v2850, %v2978
        %v3011 = vsub.f32 %v2851, %v2979
        %v3012 = vsub.f32 %v2852, %v2980
        %v3013 = vsub.f32 %v2853, %v2981
        %v3014 = vsub.f32 %v2854, %v2982
        %v3015 = vsub.f32 %v2855, %v2983
        %v3016 = vsub.f32 %v2856, %v2984
        %v3017 = vsub.f32 %v2857, %v2985
        %v3018 = vsub.f32 %v2858, %v2986
        %v3019 = vmul.f32 %v2987, 1.442695
        %v3020 = vpow.pop %v3019
        %v3021 = vmul.f32 %v2988, 1.442695
        %v3022 = vpow.pop %v3021
        %v3023 = vmul.f32 %v2989, 1.442695
        %v3024 = vpow.pop %v3023
        %v3025 = vmul.f32 %v2990, 1.442695
        %v3026 = vpow.pop %v3025
        %v3027 = vmul.f32 %v2991, 1.442695
        %v3028 = vpow.pop %v3027
        %v3029 = vmul.f32 %v2992, 1.442695
        %v3030 = vpow.pop %v3029
        %v3031 = vmul.f32 %v2993, 1.442695
        %v3032 = vpow.pop %v3031
        %v3033 = vmul.f32 %v2994, 1.442695
        %v3034 = vpow.pop %v3033
        %v3035 = vmul.f32 %v2995, 1.442695
        %v3036 = vpow.pop %v3035
        %v3037 = vmul.f32 %v2996, 1.442695
        %v3038 = vpow.pop %v3037
        %v3039 = vmul.f32 %v2997, 1.442695
        %v3040 = vpow.pop %v3039
        %v3041 = vmul.f32 %v2998, 1.442695
        %v3042 = vpow.pop %v3041
        %v3043 = vmul.f32 %v2999, 1.442695
        %v3044 = vpow.pop %v3043
        %v3045 = vmul.f32 %v3000, 1.442695
        %v3046 = vpow.pop %v3045
        %v3047 = vmul.f32 %v3001, 1.442695
        %v3048 = vpow.pop %v3047
        %v3049 = vmul.f32 %v3002, 1.442695
        %v3050 = vpow.pop %v3049
        %v3051 = vmul.f32 %v3003, 1.442695
        %v3052 = vpow.pop %v3051
        %v3053 = vmul.f32 %v3004, 1.442695
        %v3054 = vpow.pop %v3053
        %v3055 = vmul.f32 %v3005, 1.442695
        %v3056 = vpow.pop %v3055
        %v3057 = vmul.f32 %v3006, 1.442695
        %v3058 = vpow.pop %v3057
        %v3059 = vmul.f32 %v3007, 1.442695
        %v3060 = vpow.pop %v3059
        %v3061 = vmul.f32 %v3008, 1.442695
        %v3062 = vpow.pop %v3061
        %v3063 = vmul.f32 %v3009, 1.442695
        %v3064 = vpow.pop %v3063
        %v3065 = vmul.f32 %v3010, 1.442695
        %v3066 = vpow.pop %v3065
        %v3067 = vmul.f32 %v3011, 1.442695
        %v3068 = vpow.pop %v3067
        %v3069 = vmul.f32 %v3012, 1.442695
        %v3070 = vpow.pop %v3069
        %v3071 = vmul.f32 %v3013, 1.442695
        %v3072 = vpow.pop %v3071
        %v3073 = vmul.f32 %v3014, 1.442695
        %v3074 = vpow.pop %v3073
        %v3075 = vmul.f32 %v3015, 1.442695
        %v3076 = vpow.pop %v3075
        %v3077 = vmul.f32 %v3016, 1.442695
        %v3078 = vpow.pop %v3077
        %v3079 = vmul.f32 %v3017, 1.442695
        %v3080 = vpow.pop %v3079
        %v3081 = vmul.f32 %v3018, 1.442695
        %v3082 = vpow.pop %v3081
        %3084 = vset.pattern.permute.xlu0 0
        %3085 = vperm.xlu0 %3084, %v2955
        %v3086 = vpop.permute.xlu0 %3085
        %3089 = vset.pattern.permute.xlu0 0
        %3090 = vperm.xlu0 %3089, %v2956
        %v3091 = vpop.permute.xlu0 %3090
        %3094 = vset.pattern.permute.xlu0 0
        %3095 = vperm.xlu0 %3094, %v2957
        %v3096 = vpop.permute.xlu0 %3095
        %3099 = vset.pattern.permute.xlu0 0
        %3100 = vperm.xlu0 %3099, %v2958
        %v3101 = vpop.permute.xlu0 %3100
        %3104 = vset.pattern.permute.xlu0 0
        %3105 = vperm.xlu0 %3104, %v2959
        %v3106 = vpop.permute.xlu0 %3105
        %3109 = vset.pattern.permute.xlu0 0
        %3110 = vperm.xlu0 %3109, %v2960
        %v3111 = vpop.permute.xlu0 %3110
        %3114 = vset.pattern.permute.xlu0 0
        %3115 = vperm.xlu0 %3114, %v2961
        %v3116 = vpop.permute.xlu0 %3115
        %3119 = vset.pattern.permute.xlu0 0
        %3120 = vperm.xlu0 %3119, %v2962
        %v3121 = vpop.permute.xlu0 %3120
        %3124 = vset.pattern.permute.xlu0 0
        %3125 = vperm.xlu0 %3124, %v2963
        %v3126 = vpop.permute.xlu0 %3125
        %3129 = vset.pattern.permute.xlu0 0
        %3130 = vperm.xlu0 %3129, %v2964
        %v3131 = vpop.permute.xlu0 %3130
        %3134 = vset.pattern.permute.xlu0 0
        %3135 = vperm.xlu0 %3134, %v2965
        %v3136 = vpop.permute.xlu0 %3135
        %3139 = vset.pattern.permute.xlu0 0
        %3140 = vperm.xlu0 %3139, %v2966
        %v3141 = vpop.permute.xlu0 %3140
        %3144 = vset.pattern.permute.xlu0 0
        %3145 = vperm.xlu0 %3144, %v2967
        %v3146 = vpop.permute.xlu0 %3145
        %3149 = vset.pattern.permute.xlu0 0
        %3150 = vperm.xlu0 %3149, %v2968
        %v3151 = vpop.permute.xlu0 %3150
        %3154 = vset.pattern.permute.xlu0 0
        %3155 = vperm.xlu0 %3154, %v2969
        %v3156 = vpop.permute.xlu0 %3155
        %3159 = vset.pattern.permute.xlu0 0
        %3160 = vperm.xlu0 %3159, %v2970
        %v3161 = vpop.permute.xlu0 %3160
        %3164 = vset.pattern.permute.xlu0 0
        %3165 = vperm.xlu0 %3164, %v2971
        %v3166 = vpop.permute.xlu0 %3165
        %3169 = vset.pattern.permute.xlu0 0
        %3170 = vperm.xlu0 %3169, %v2972
        %v3171 = vpop.permute.xlu0 %3170
        %3174 = vset.pattern.permute.xlu0 0
        %3175 = vperm.xlu0 %3174, %v2973
        %v3176 = vpop.permute.xlu0 %3175
        %3179 = vset.pattern.permute.xlu0 0
        %3180 = vperm.xlu0 %3179, %v2974
        %v3181 = vpop.permute.xlu0 %3180
        %3184 = vset.pattern.permute.xlu0 0
        %3185 = vperm.xlu0 %3184, %v2975
        %v3186 = vpop.permute.xlu0 %3185
        %3189 = vset.pattern.permute.xlu0 0
        %3190 = vperm.xlu0 %3189, %v2976
        %v3191 = vpop.permute.xlu0 %3190
        %3194 = vset.pattern.permute.xlu0 0
        %3195 = vperm.xlu0 %3194, %v2977
        %v3196 = vpop.permute.xlu0 %3195
        %3199 = vset.pattern.permute.xlu0 0
        %3200 = vperm.xlu0 %3199, %v2978
        %v3201 = vpop.permute.xlu0 %3200
        %3204 = vset.pattern.permute.xlu0 0
        %3205 = vperm.xlu0 %3204, %v2979
        %v3206 = vpop.permute.xlu0 %3205
        %3209 = vset.pattern.permute.xlu0 0
        %3210 = vperm.xlu0 %3209, %v2980
        %v3211 = vpop.permute.xlu0 %3210
        %3214 = vset.pattern.permute.xlu0 0
        %3215 = vperm.xlu0 %3214, %v2981
        %v3216 = vpop.permute.xlu0 %3215
        %3219 = vset.pattern.permute.xlu0 0
        %3220 = vperm.xlu0 %3219, %v2982
        %v3221 = vpop.permute.xlu0 %3220
        %3224 = vset.pattern.permute.xlu0 0
        %3225 = vperm.xlu0 %3224, %v2983
        %v3226 = vpop.permute.xlu0 %3225
        %3229 = vset.pattern.permute.xlu0 0
        %3230 = vperm.xlu0 %3229, %v2984
        %v3231 = vpop.permute.xlu0 %3230
        %3234 = vset.pattern.permute.xlu0 0
        %3235 = vperm.xlu0 %3234, %v2985
        %v3236 = vpop.permute.xlu0 %3235
        %3239 = vset.pattern.permute.xlu0 0
        %3240 = vperm.xlu0 %3239, %v2986
        %v3241 = vpop.permute.xlu0 %3240
        %v3243 = vsub.f32 %v2763, %v3086
        %v3244 = vsub.f32 %v2764, %v3086
        %v3245 = vsub.f32 %v2765, %v3091
        %v3246 = vsub.f32 %v2766, %v3091
        %v3247 = vsub.f32 %v2767, %v3096
        %v3248 = vsub.f32 %v2768, %v3096
        %v3249 = vsub.f32 %v2769, %v3101
        %v3250 = vsub.f32 %v2770, %v3101
        %v3251 = vsub.f32 %v2771, %v3106
        %v3252 = vsub.f32 %v2772, %v3106
        %v3253 = vsub.f32 %v2773, %v3111
        %v3254 = vsub.f32 %v2774, %v3111
        %v3255 = vsub.f32 %v2775, %v3116
        %v3256 = vsub.f32 %v2776, %v3116
        %v3257 = vsub.f32 %v2777, %v3121
        %v3258 = vsub.f32 %v2778, %v3121
        %v3259 = vsub.f32 %v2779, %v3126
        %v3260 = vsub.f32 %v2780, %v3126
        %v3261 = vsub.f32 %v2781, %v3131
        %v3262 = vsub.f32 %v2782, %v3131
        %v3263 = vsub.f32 %v2783, %v3136
        %v3264 = vsub.f32 %v2784, %v3136
        %v3265 = vsub.f32 %v2785, %v3141
        %v3266 = vsub.f32 %v2786, %v3141
        %v3267 = vsub.f32 %v2787, %v3146
        %v3268 = vsub.f32 %v2788, %v3146
        %v3269 = vsub.f32 %v2789, %v3151
        %v3270 = vsub.f32 %v2790, %v3151
        %v3271 = vsub.f32 %v2791, %v3156
        %v3272 = vsub.f32 %v2792, %v3156
        %v3273 = vsub.f32 %v2793, %v3161
        %v3274 = vsub.f32 %v2794, %v3161
        %v3275 = vsub.f32 %v2795, %v3166
        %v3276 = vsub.f32 %v2796, %v3166
        %v3277 = vsub.f32 %v2797, %v3171
        %v3278 = vsub.f32 %v2798, %v3171
        %v3279 = vsub.f32 %v2799, %v3176
        %v3280 = vsub.f32 %v2800, %v3176
        %v3281 = vsub.f32 %v2801, %v3181
        %v3282 = vsub.f32 %v2802, %v3181
        %v3283 = vsub.f32 %v2803, %v3186
        %v3284 = vsub.f32 %v2804, %v3186
        %v3285 = vsub.f32 %v2805, %v3191
        %v3286 = vsub.f32 %v2806, %v3191
        %v3287 = vsub.f32 %v2807, %v3196
        %v3288 = vsub.f32 %v2808, %v3196
        %v3289 = vsub.f32 %v2809, %v3201
        %v3290 = vsub.f32 %v2810, %v3201
        %v3291 = vsub.f32 %v2811, %v3206
        %v3292 = vsub.f32 %v2812, %v3206
        %v3293 = vsub.f32 %v2813, %v3211
        %v3294 = vsub.f32 %v2814, %v3211
        %v3295 = vsub.f32 %v2815, %v3216
        %v3296 = vsub.f32 %v2816, %v3216
        %v3297 = vsub.f32 %v2817, %v3221
        %v3298 = vsub.f32 %v2818, %v3221
        %v3299 = vsub.f32 %v2819, %v3226
        %v3300 = vsub.f32 %v2820, %v3226
        %v3301 = vsub.f32 %v2821, %v3231
        %v3302 = vsub.f32 %v2822, %v3231
        %v3303 = vsub.f32 %v2823, %v3236
        %v3304 = vsub.f32 %v2824, %v3236
        %v3305 = vsub.f32 %v2825, %v3241
        %v3306 = vsub.f32 %v2826, %v3241
        %v3307 = vmul.f32 %v3243, 1.442695
        %v3308 = vpow.pop %v3307
        %v3309 = vmul.f32 %v3244, 1.442695
        %v3310 = vpow.pop %v3309
        %v3311 = vmul.f32 %v3245, 1.442695
        %v3312 = vpow.pop %v3311
        %v3313 = vmul.f32 %v3246, 1.442695
        %v3314 = vpow.pop %v3313
        %v3315 = vmul.f32 %v3247, 1.442695
        %v3316 = vpow.pop %v3315
        %v3317 = vmul.f32 %v3248, 1.442695
        %v3318 = vpow.pop %v3317
        %v3319 = vmul.f32 %v3249, 1.442695
        %v3320 = vpow.pop %v3319
        %v3321 = vmul.f32 %v3250, 1.442695
        %v3322 = vpow.pop %v3321
        %v3323 = vmul.f32 %v3251, 1.442695
        %v3324 = vpow.pop %v3323
        %v3325 = vmul.f32 %v3252, 1.442695
        %v3326 = vpow.pop %v3325
        %v3327 = vmul.f32 %v3253, 1.442695
        %v3328 = vpow.pop %v3327
        %v3329 = vmul.f32 %v3254, 1.442695
        %v3330 = vpow.pop %v3329
        %v3331 = vmul.f32 %v3255, 1.442695
        %v3332 = vpow.pop %v3331
        %v3333 = vmul.f32 %v3256, 1.442695
        %v3334 = vpow.pop %v3333
        %v3335 = vmul.f32 %v3257, 1.442695
        %v3336 = vpow.pop %v3335
        %v3337 = vmul.f32 %v3258, 1.442695
        %v3338 = vpow.pop %v3337
        %v3339 = vmul.f32 %v3259, 1.442695
        %v3340 = vpow.pop %v3339
        %v3341 = vmul.f32 %v3260, 1.442695
        %v3342 = vpow.pop %v3341
        %v3343 = vmul.f32 %v3261, 1.442695
        %v3344 = vpow.pop %v3343
        %v3345 = vmul.f32 %v3262, 1.442695
        %v3346 = vpow.pop %v3345
        %v3347 = vmul.f32 %v3263, 1.442695
        %v3348 = vpow.pop %v3347
        %v3349 = vmul.f32 %v3264, 1.442695
        %v3350 = vpow.pop %v3349
        %v3351 = vmul.f32 %v3265, 1.442695
        %v3352 = vpow.pop %v3351
        %v3353 = vmul.f32 %v3266, 1.442695
        %v3354 = vpow.pop %v3353
        %v3355 = vmul.f32 %v3267, 1.442695
        %v3356 = vpow.pop %v3355
        %v3357 = vmul.f32 %v3268, 1.442695
        %v3358 = vpow.pop %v3357
        %v3359 = vmul.f32 %v3269, 1.442695
        %v3360 = vpow.pop %v3359
        %v3361 = vmul.f32 %v3270, 1.442695
        %v3362 = vpow.pop %v3361
        %v3363 = vmul.f32 %v3271, 1.442695
        %v3364 = vpow.pop %v3363
        %v3365 = vmul.f32 %v3272, 1.442695
        %v3366 = vpow.pop %v3365
        %v3367 = vmul.f32 %v3273, 1.442695
        %v3368 = vpow.pop %v3367
        %v3369 = vmul.f32 %v3274, 1.442695
        %v3370 = vpow.pop %v3369
        %v3371 = vmul.f32 %v3275, 1.442695
        %v3372 = vpow.pop %v3371
        %v3373 = vmul.f32 %v3276, 1.442695
        %v3374 = vpow.pop %v3373
        %v3375 = vmul.f32 %v3277, 1.442695
        %v3376 = vpow.pop %v3375
        %v3377 = vmul.f32 %v3278, 1.442695
        %v3378 = vpow.pop %v3377
        %v3379 = vmul.f32 %v3279, 1.442695
        %v3380 = vpow.pop %v3379
        %v3381 = vmul.f32 %v3280, 1.442695
        %v3382 = vpow.pop %v3381
        %v3383 = vmul.f32 %v3281, 1.442695
        %v3384 = vpow.pop %v3383
        %v3385 = vmul.f32 %v3282, 1.442695
        %v3386 = vpow.pop %v3385
        %v3387 = vmul.f32 %v3283, 1.442695
        %v3388 = vpow.pop %v3387
        %v3389 = vmul.f32 %v3284, 1.442695
        %v3390 = vpow.pop %v3389
        %v3391 = vmul.f32 %v3285, 1.442695
        %v3392 = vpow.pop %v3391
        %v3393 = vmul.f32 %v3286, 1.442695
        %v3394 = vpow.pop %v3393
        %v3395 = vmul.f32 %v3287, 1.442695
        %v3396 = vpow.pop %v3395
        %v3397 = vmul.f32 %v3288, 1.442695
        %v3398 = vpow.pop %v3397
        %v3399 = vmul.f32 %v3289, 1.442695
        %v3400 = vpow.pop %v3399
        %v3401 = vmul.f32 %v3290, 1.442695
        %v3402 = vpow.pop %v3401
        %v3403 = vmul.f32 %v3291, 1.442695
        %v3404 = vpow.pop %v3403
        %v3405 = vmul.f32 %v3292, 1.442695
        %v3406 = vpow.pop %v3405
        %v3407 = vmul.f32 %v3293, 1.442695
        %v3408 = vpow.pop %v3407
        %v3409 = vmul.f32 %v3294, 1.442695
        %v3410 = vpow.pop %v3409
        %v3411 = vmul.f32 %v3295, 1.442695
        %v3412 = vpow.pop %v3411
        %v3413 = vmul.f32 %v3296, 1.442695
        %v3414 = vpow.pop %v3413
        %v3415 = vmul.f32 %v3297, 1.442695
        %v3416 = vpow.pop %v3415
        %v3417 = vmul.f32 %v3298, 1.442695
        %v3418 = vpow.pop %v3417
        %v3419 = vmul.f32 %v3299, 1.442695
        %v3420 = vpow.pop %v3419
        %v3421 = vmul.f32 %v3300, 1.442695
        %v3422 = vpow.pop %v3421
        %v3423 = vmul.f32 %v3301, 1.442695
        %v3424 = vpow.pop %v3423
        %v3425 = vmul.f32 %v3302, 1.442695
        %v3426 = vpow.pop %v3425
        %v3427 = vmul.f32 %v3303, 1.442695
        %v3428 = vpow.pop %v3427
        %v3429 = vmul.f32 %v3304, 1.442695
        %v3430 = vpow.pop %v3429
        %v3431 = vmul.f32 %v3305, 1.442695
        %v3432 = vpow.pop %v3431
        %v3433 = vmul.f32 %v3306, 1.442695
        %v3434 = vpow.pop %v3433
        %v3435 = vld [vmem:[#allocation3] sm:$0xff]
        %v3436 = vld [vmem:[#allocation3 + $0x8] sm:$0xff]
        %v3437 = vld [vmem:[#allocation3 + $0x10] sm:$0xff]
        %v3438 = vld [vmem:[#allocation3 + $0x18] sm:$0xff]
        %v3439 = vld [vmem:[#allocation3 + $0x20] sm:$0xff]
        %v3440 = vld [vmem:[#allocation3 + $0x28] sm:$0xff]
        %v3441 = vld [vmem:[#allocation3 + $0x30] sm:$0xff]
        %v3442 = vld [vmem:[#allocation3 + $0x38] sm:$0xff]
        %v3443 = vld [vmem:[#allocation3 + $0x40] sm:$0xff]
        %v3444 = vld [vmem:[#allocation3 + $0x48] sm:$0xff]
        %v3445 = vld [vmem:[#allocation3 + $0x50] sm:$0xff]
        %v3446 = vld [vmem:[#allocation3 + $0x58] sm:$0xff]
        %v3447 = vld [vmem:[#allocation3 + $0x60] sm:$0xff]
        %v3448 = vld [vmem:[#allocation3 + $0x68] sm:$0xff]
        %v3449 = vld [vmem:[#allocation3 + $0x70] sm:$0xff]
        %v3450 = vld [vmem:[#allocation3 + $0x78] sm:$0xff]
        %v3451 = vld [vmem:[#allocation3 + $0x80] sm:$0xff]
        %v3452 = vld [vmem:[#allocation3 + $0x88] sm:$0xff]
        %v3453 = vld [vmem:[#allocation3 + $0x90] sm:$0xff]
        %v3454 = vld [vmem:[#allocation3 + $0x98] sm:$0xff]
        %v3455 = vld [vmem:[#allocation3 + $0xa0] sm:$0xff]
        %v3456 = vld [vmem:[#allocation3 + $0xa8] sm:$0xff]
        %v3457 = vld [vmem:[#allocation3 + $0xb0] sm:$0xff]
        %v3458 = vld [vmem:[#allocation3 + $0xb8] sm:$0xff]
        %v3459 = vld [vmem:[#allocation3 + $0xc0] sm:$0xff]
        %v3460 = vld [vmem:[#allocation3 + $0xc8] sm:$0xff]
        %v3461 = vld [vmem:[#allocation3 + $0xd0] sm:$0xff]
        %v3462 = vld [vmem:[#allocation3 + $0xd8] sm:$0xff]
        %v3463 = vld [vmem:[#allocation3 + $0xe0] sm:$0xff]
        %v3464 = vld [vmem:[#allocation3 + $0xe8] sm:$0xff]
        %v3465 = vld [vmem:[#allocation3 + $0xf0] sm:$0xff]
        %v3466 = vld [vmem:[#allocation3 + $0xf8] sm:$0xff]
        %v3467 = vmul.f32 %v3020, %v3435
        %v3468 = vmul.f32 %v3022, %v3436
        %v3469 = vmul.f32 %v3024, %v3437
        %v3470 = vmul.f32 %v3026, %v3438
        %v3471 = vmul.f32 %v3028, %v3439
        %v3472 = vmul.f32 %v3030, %v3440
        %v3473 = vmul.f32 %v3032, %v3441
        %v3474 = vmul.f32 %v3034, %v3442
        %v3475 = vmul.f32 %v3036, %v3443
        %v3476 = vmul.f32 %v3038, %v3444
        %v3477 = vmul.f32 %v3040, %v3445
        %v3478 = vmul.f32 %v3042, %v3446
        %v3479 = vmul.f32 %v3044, %v3447
        %v3480 = vmul.f32 %v3046, %v3448
        %v3481 = vmul.f32 %v3048, %v3449
        %v3482 = vmul.f32 %v3050, %v3450
        %v3483 = vmul.f32 %v3052, %v3451
        %v3484 = vmul.f32 %v3054, %v3452
        %v3485 = vmul.f32 %v3056, %v3453
        %v3486 = vmul.f32 %v3058, %v3454
        %v3487 = vmul.f32 %v3060, %v3455
        %v3488 = vmul.f32 %v3062, %v3456
        %v3489 = vmul.f32 %v3064, %v3457
        %v3490 = vmul.f32 %v3066, %v3458
        %v3491 = vmul.f32 %v3068, %v3459
        %v3492 = vmul.f32 %v3070, %v3460
        %v3493 = vmul.f32 %v3072, %v3461
        %v3494 = vmul.f32 %v3074, %v3462
        %v3495 = vmul.f32 %v3076, %v3463
        %v3496 = vmul.f32 %v3078, %v3464
        %v3497 = vmul.f32 %v3080, %v3465
        %v3498 = vmul.f32 %v3082, %v3466
        %v3499 = vadd.f32 %v3308, %v3310
        %3500 = vadd.xlane.f32.xlu0 %v3499
        %v3501 = vpop.xlane.xlu0 %3500
        %v3502 = vadd.f32 %v3312, %v3314
        %3503 = vadd.xlane.f32.xlu0 %v3502
        %v3504 = vpop.xlane.xlu0 %3503
        %v3505 = vadd.f32 %v3316, %v3318
        %3506 = vadd.xlane.f32.xlu0 %v3505
        %v3507 = vpop.xlane.xlu0 %3506
        %v3508 = vadd.f32 %v3320, %v3322
        %3509 = vadd.xlane.f32.xlu0 %v3508
        %v3510 = vpop.xlane.xlu0 %3509
        %v3511 = vadd.f32 %v3324, %v3326
        %3512 = vadd.xlane.f32.xlu0 %v3511
        %v3513 = vpop.xlane.xlu0 %3512
        %v3514 = vadd.f32 %v3328, %v3330
        %3515 = vadd.xlane.f32.xlu0 %v3514
        %v3516 = vpop.xlane.xlu0 %3515
        %v3517 = vadd.f32 %v3332, %v3334
        %3518 = vadd.xlane.f32.xlu0 %v3517
        %v3519 = vpop.xlane.xlu0 %3518
        %v3520 = vadd.f32 %v3336, %v3338
        %3521 = vadd.xlane.f32.xlu0 %v3520
        %v3522 = vpop.xlane.xlu0 %3521
        %v3523 = vadd.f32 %v3340, %v3342
        %3524 = vadd.xlane.f32.xlu0 %v3523
        %v3525 = vpop.xlane.xlu0 %3524
        %v3526 = vadd.f32 %v3344, %v3346
        %3527 = vadd.xlane.f32.xlu0 %v3526
        %v3528 = vpop.xlane.xlu0 %3527
        %v3529 = vadd.f32 %v3348, %v3350
        %3530 = vadd.xlane.f32.xlu0 %v3529
        %v3531 = vpop.xlane.xlu0 %3530
        %v3532 = vadd.f32 %v3352, %v3354
        %3533 = vadd.xlane.f32.xlu0 %v3532
        %v3534 = vpop.xlane.xlu0 %3533
        %v3535 = vadd.f32 %v3356, %v3358
        %3536 = vadd.xlane.f32.xlu0 %v3535
        %v3537 = vpop.xlane.xlu0 %3536
        %v3538 = vadd.f32 %v3360, %v3362
        %3539 = vadd.xlane.f32.xlu0 %v3538
        %v3540 = vpop.xlane.xlu0 %3539
        %v3541 = vadd.f32 %v3364, %v3366
        %3542 = vadd.xlane.f32.xlu0 %v3541
        %v3543 = vpop.xlane.xlu0 %3542
        %v3544 = vadd.f32 %v3368, %v3370
        %3545 = vadd.xlane.f32.xlu0 %v3544
        %v3546 = vpop.xlane.xlu0 %3545
        %v3547 = vadd.f32 %v3372, %v3374
        %3548 = vadd.xlane.f32.xlu0 %v3547
        %v3549 = vpop.xlane.xlu0 %3548
        %v3550 = vadd.f32 %v3376, %v3378
        %3551 = vadd.xlane.f32.xlu0 %v3550
        %v3552 = vpop.xlane.xlu0 %3551
        %v3553 = vadd.f32 %v3380, %v3382
        %3554 = vadd.xlane.f32.xlu0 %v3553
        %v3555 = vpop.xlane.xlu0 %3554
        %v3556 = vadd.f32 %v3384, %v3386
        %3557 = vadd.xlane.f32.xlu0 %v3556
        %v3558 = vpop.xlane.xlu0 %3557
        %v3559 = vadd.f32 %v3388, %v3390
        %3560 = vadd.xlane.f32.xlu0 %v3559
        %v3561 = vpop.xlane.xlu0 %3560
        %v3562 = vadd.f32 %v3392, %v3394
        %3563 = vadd.xlane.f32.xlu0 %v3562
        %v3564 = vpop.xlane.xlu0 %3563
        %v3565 = vadd.f32 %v3396, %v3398
        %3566 = vadd.xlane.f32.xlu0 %v3565
        %v3567 = vpop.xlane.xlu0 %3566
        %v3568 = vadd.f32 %v3400, %v3402
        %3569 = vadd.xlane.f32.xlu0 %v3568
        %v3570 = vpop.xlane.xlu0 %3569
        %v3571 = vadd.f32 %v3404, %v3406
        %3572 = vadd.xlane.f32.xlu0 %v3571
        %v3573 = vpop.xlane.xlu0 %3572
        %v3574 = vadd.f32 %v3408, %v3410
        %3575 = vadd.xlane.f32.xlu0 %v3574
        %v3576 = vpop.xlane.xlu0 %3575
        %v3577 = vadd.f32 %v3412, %v3414
        %3578 = vadd.xlane.f32.xlu0 %v3577
        %v3579 = vpop.xlane.xlu0 %3578
        %v3580 = vadd.f32 %v3416, %v3418
        %3581 = vadd.xlane.f32.xlu0 %v3580
        %v3582 = vpop.xlane.xlu0 %3581
        %v3583 = vadd.f32 %v3420, %v3422
        %3584 = vadd.xlane.f32.xlu0 %v3583
        %v3585 = vpop.xlane.xlu0 %3584
        %v3586 = vadd.f32 %v3424, %v3426
        %3587 = vadd.xlane.f32.xlu0 %v3586
        %v3588 = vpop.xlane.xlu0 %3587
        %v3589 = vadd.f32 %v3428, %v3430
        %3590 = vadd.xlane.f32.xlu0 %v3589
        %v3591 = vpop.xlane.xlu0 %3590
        %v3592 = vadd.f32 %v3432, %v3434
        %3593 = vadd.xlane.f32.xlu0 %v3592
        %v3594 = vpop.xlane.xlu0 %3593
        %v3595 = vadd.f32 %v3467, %v3501
        %v3596 = vadd.f32 %v3468, %v3504
        %v3597 = vadd.f32 %v3469, %v3507
        %v3598 = vadd.f32 %v3470, %v3510
        %v3599 = vadd.f32 %v3471, %v3513
        %v3600 = vadd.f32 %v3472, %v3516
        %v3601 = vadd.f32 %v3473, %v3519
        %v3602 = vadd.f32 %v3474, %v3522
        %v3603 = vadd.f32 %v3475, %v3525
        %v3604 = vadd.f32 %v3476, %v3528
        %v3605 = vadd.f32 %v3477, %v3531
        %v3606 = vadd.f32 %v3478, %v3534
        %v3607 = vadd.f32 %v3479, %v3537
        %v3608 = vadd.f32 %v3480, %v3540
        %v3609 = vadd.f32 %v3481, %v3543
        %v3610 = vadd.f32 %v3482, %v3546
        %v3611 = vadd.f32 %v3483, %v3549
        %v3612 = vadd.f32 %v3484, %v3552
        %v3613 = vadd.f32 %v3485, %v3555
        %v3614 = vadd.f32 %v3486, %v3558
        %v3615 = vadd.f32 %v3487, %v3561
        %v3616 = vadd.f32 %v3488, %v3564
        %v3617 = vadd.f32 %v3489, %v3567
        %v3618 = vadd.f32 %v3490, %v3570
        %v3619 = vadd.f32 %v3491, %v3573
        %v3620 = vadd.f32 %v3492, %v3576
        %v3621 = vadd.f32 %v3493, %v3579
        %v3622 = vadd.f32 %v3494, %v3582
        %v3623 = vadd.f32 %v3495, %v3585
        %v3624 = vadd.f32 %v3496, %v3588
        %v3625 = vadd.f32 %v3497, %v3591
        %v3626 = vadd.f32 %v3498, %v3594
        %3627 = vst.msk [vmem:[#allocation3] sm:$0xff] %vm287, %v3595
        %3628 = vst.msk [vmem:[#allocation3 + $0x8] sm:$0xff] %vm287, %v3596
        %3629 = vst.msk [vmem:[#allocation3 + $0x10] sm:$0xff] %vm287, %v3597
        %3630 = vst.msk [vmem:[#allocation3 + $0x18] sm:$0xff] %vm287, %v3598
        %3631 = vst.msk [vmem:[#allocation3 + $0x20] sm:$0xff] %vm287, %v3599
        %3632 = vst.msk [vmem:[#allocation3 + $0x28] sm:$0xff] %vm287, %v3600
        %3633 = vst.msk [vmem:[#allocation3 + $0x30] sm:$0xff] %vm287, %v3601
        %3634 = vst.msk [vmem:[#allocation3 + $0x38] sm:$0xff] %vm287, %v3602
        %3635 = vst.msk [vmem:[#allocation3 + $0x40] sm:$0xff] %vm287, %v3603
        %3636 = vst.msk [vmem:[#allocation3 + $0x48] sm:$0xff] %vm287, %v3604
        %3637 = vst.msk [vmem:[#allocation3 + $0x50] sm:$0xff] %vm287, %v3605
        %3638 = vst.msk [vmem:[#allocation3 + $0x58] sm:$0xff] %vm287, %v3606
        %3639 = vst.msk [vmem:[#allocation3 + $0x60] sm:$0xff] %vm287, %v3607
        %3640 = vst.msk [vmem:[#allocation3 + $0x68] sm:$0xff] %vm287, %v3608
        %3641 = vst.msk [vmem:[#allocation3 + $0x70] sm:$0xff] %vm287, %v3609
        %3642 = vst.msk [vmem:[#allocation3 + $0x78] sm:$0xff] %vm287, %v3610
        %3643 = vst.msk [vmem:[#allocation3 + $0x80] sm:$0xff] %vm287, %v3611
        %3644 = vst.msk [vmem:[#allocation3 + $0x88] sm:$0xff] %vm287, %v3612
        %3645 = vst.msk [vmem:[#allocation3 + $0x90] sm:$0xff] %vm287, %v3613
        %3646 = vst.msk [vmem:[#allocation3 + $0x98] sm:$0xff] %vm287, %v3614
        %3647 = vst.msk [vmem:[#allocation3 + $0xa0] sm:$0xff] %vm287, %v3615
        %3648 = vst.msk [vmem:[#allocation3 + $0xa8] sm:$0xff] %vm287, %v3616
        %3649 = vst.msk [vmem:[#allocation3 + $0xb0] sm:$0xff] %vm287, %v3617
        %3650 = vst.msk [vmem:[#allocation3 + $0xb8] sm:$0xff] %vm287, %v3618
        %3651 = vst.msk [vmem:[#allocation3 + $0xc0] sm:$0xff] %vm287, %v3619
        %3652 = vst.msk [vmem:[#allocation3 + $0xc8] sm:$0xff] %vm287, %v3620
        %3653 = vst.msk [vmem:[#allocation3 + $0xd0] sm:$0xff] %vm287, %v3621
        %3654 = vst.msk [vmem:[#allocation3 + $0xd8] sm:$0xff] %vm287, %v3622
        %3655 = vst.msk [vmem:[#allocation3 + $0xe0] sm:$0xff] %vm287, %v3623
        %3656 = vst.msk [vmem:[#allocation3 + $0xe8] sm:$0xff] %vm287, %v3624
        %3657 = vst.msk [vmem:[#allocation3 + $0xf0] sm:$0xff] %vm287, %v3625
        %3658 = vst.msk [vmem:[#allocation3 + $0xf8] sm:$0xff] %vm287, %v3626
        %v3659 = vpack.c.bf16 %v3312, %v3308
        %v3660 = vpack.c.bf16 %v3314, %v3310
        %v3661 = vpack.c.bf16 %v3320, %v3316
        %v3662 = vpack.c.bf16 %v3322, %v3318
        %v3663 = vpack.c.bf16 %v3328, %v3324
        %v3664 = vpack.c.bf16 %v3330, %v3326
        %v3665 = vpack.c.bf16 %v3336, %v3332
        %v3666 = vpack.c.bf16 %v3338, %v3334
        %v3667 = vpack.c.bf16 %v3344, %v3340
        %v3668 = vpack.c.bf16 %v3346, %v3342
        %v3669 = vpack.c.bf16 %v3352, %v3348
        %v3670 = vpack.c.bf16 %v3354, %v3350
        %v3671 = vpack.c.bf16 %v3360, %v3356
        %v3672 = vpack.c.bf16 %v3362, %v3358
        %v3673 = vpack.c.bf16 %v3368, %v3364
        %v3674 = vpack.c.bf16 %v3370, %v3366
        %v3675 = vpack.c.bf16 %v3376, %v3372
        %v3676 = vpack.c.bf16 %v3378, %v3374
        %v3677 = vpack.c.bf16 %v3384, %v3380
        %v3678 = vpack.c.bf16 %v3386, %v3382
        %v3679 = vpack.c.bf16 %v3392, %v3388
        %v3680 = vpack.c.bf16 %v3394, %v3390
        %v3681 = vpack.c.bf16 %v3400, %v3396
        %v3682 = vpack.c.bf16 %v3402, %v3398
        %v3683 = vpack.c.bf16 %v3408, %v3404
        %v3684 = vpack.c.bf16 %v3410, %v3406
        %v3685 = vpack.c.bf16 %v3416, %v3412
        %v3686 = vpack.c.bf16 %v3418, %v3414
        %v3687 = vpack.c.bf16 %v3424, %v3420
        %v3688 = vpack.c.bf16 %v3426, %v3422
        %v3689 = vpack.c.bf16 %v3432, %v3428
        %v3690 = vpack.c.bf16 %v3434, %v3430
        %v3723 = vunpack.c.l.b16 %v2378
        %v3724 = vunpack.c.l.b16 %v2379
        %v3725 = vunpack.c.l.b16 %v2380
        %v3726 = vunpack.c.l.b16 %v2381
        %v3727 = vunpack.c.l.b16 %v2382
        %v3728 = vunpack.c.l.b16 %v2383
        %v3729 = vunpack.c.l.b16 %v2384
        %v3730 = vunpack.c.l.b16 %v2385
        %v3731 = vunpack.c.l.b16 %v2386
        %v3732 = vunpack.c.l.b16 %v2387
        %v3733 = vunpack.c.l.b16 %v2388
        %v3734 = vunpack.c.l.b16 %v2389
        %v3735 = vunpack.c.l.b16 %v2390
        %v3736 = vunpack.c.l.b16 %v2391
        %v3737 = vunpack.c.l.b16 %v2392
        %v3738 = vunpack.c.l.b16 %v2393
        %v3739 = vunpack.c.l.b16 %v2394
        %v3740 = vunpack.c.l.b16 %v2395
        %v3741 = vunpack.c.l.b16 %v2396
        %v3742 = vunpack.c.l.b16 %v2397
        %v3743 = vunpack.c.l.b16 %v2398
        %v3744 = vunpack.c.l.b16 %v2399
        %v3745 = vunpack.c.l.b16 %v2400
        %v3746 = vunpack.c.l.b16 %v2401
        %v3747 = vunpack.c.l.b16 %v2402
        %v3748 = vunpack.c.l.b16 %v2403
        %v3749 = vunpack.c.l.b16 %v2404
        %v3750 = vunpack.c.l.b16 %v2405
        %v3751 = vunpack.c.l.b16 %v2406
        %v3752 = vunpack.c.l.b16 %v2407
        %v3753 = vunpack.c.l.b16 %v2408
        %v3754 = vunpack.c.l.b16 %v2409
        %v3755 = vpack.c.b16 %v3724, %v3723
        %v3756 = vpack.c.b16 %v3726, %v3725
        %v3757 = vpack.c.b16 %v3728, %v3727
        %v3758 = vpack.c.b16 %v3730, %v3729
        %v3759 = vpack.c.b16 %v3732, %v3731
        %v3760 = vpack.c.b16 %v3734, %v3733
        %v3761 = vpack.c.b16 %v3736, %v3735
        %v3762 = vpack.c.b16 %v3738, %v3737
        %v3763 = vpack.c.b16 %v3740, %v3739
        %v3764 = vpack.c.b16 %v3742, %v3741
        %v3765 = vpack.c.b16 %v3744, %v3743
        %v3766 = vpack.c.b16 %v3746, %v3745
        %v3767 = vpack.c.b16 %v3748, %v3747
        %v3768 = vpack.c.b16 %v3750, %v3749
        %v3769 = vpack.c.b16 %v3752, %v3751
        %v3770 = vpack.c.b16 %v3754, %v3753
        %3787 = vmatprep.subr.bf16.mxu0 0
        %3788 = vmatpush1.bf16.msra.mxu0 %v3762
        %3789 = vmatprep.subr.bf16.mxu0 0
        %3790 = vmatpush1.bf16.msra.mxu0 %v3761
        %3791 = vmatprep.subr.bf16.mxu0 0
        %3792 = vmatpush1.bf16.msra.mxu0 %v3760
        %3793 = vmatprep.subr.bf16.mxu0 0
        %3794 = vmatpush1.bf16.msra.mxu0 %v3759
        %3795 = vmatprep.subr.bf16.mxu0 0
        %3796 = vmatpush1.bf16.msra.mxu0 %v3758
        %3797 = vmatprep.subr.bf16.mxu0 0
        %3798 = vmatpush1.bf16.msra.mxu0 %v3757
        %3799 = vmatprep.subr.bf16.mxu0 0
        %3800 = vmatpush1.bf16.msra.mxu0 %v3756
        %3801 = vmatprep.subr.bf16.mxu0 0
        %3802 = vmatpush1.bf16.msra.mxu0 %v3755
        %3803 = vmatprep.subr.bf16.mxu0 0
        %3804 = vmatpush2.bf16.msra.mxu0 %v3770
        %3805 = vmatprep.subr.bf16.mxu0 0
        %3806 = vmatpush2.bf16.msra.mxu0 %v3769
        %3807 = vmatprep.subr.bf16.mxu0 0
        %3808 = vmatpush2.bf16.msra.mxu0 %v3768
        %3809 = vmatprep.subr.bf16.mxu0 0
        %3810 = vmatpush2.bf16.msra.mxu0 %v3767
        %3811 = vmatprep.subr.bf16.mxu0 0
        %3812 = vmatpush2.bf16.msra.mxu0 %v3766
        %3813 = vmatprep.subr.bf16.mxu0 0
        %3814 = vmatpush2.bf16.msra.mxu0 %v3765
        %3815 = vmatprep.subr.bf16.mxu0 0
        %3816 = vmatpush2.bf16.msra.mxu0 %v3764
        %3817 = vmatprep.subr.bf16.mxu0 0
        %3818 = vmatpush2.bf16.msra.mxu0 %v3763
        %3819 = vmatprep.mubr.bf16.mxu0 %v3660
        %3820 = vmatmul.mubr.bf16.gmra.mxu0 %v3659
        %v3821 = vpop.f32.mrf.mxu0
        %v3822 = vadd.f32 0.0, %v3821
        %v3823 = vpop.f32.mrf.mxu0
        %v3824 = vpop.f32.mrf.mxu0
        %v3825 = vadd.f32 0.0, %v3824
        %v3826 = vpop.f32.mrf.mxu0
        %3827 = vmatprep.mubr.bf16.mxu0 %v3662
        %3828 = vmatmul.mubr.bf16.gmra.mxu0 %v3661
        %v3829 = vpop.f32.mrf.mxu0
        %v3830 = vadd.f32 0.0, %v3829
        %v3831 = vpop.f32.mrf.mxu0
        %v3832 = vpop.f32.mrf.mxu0
        %v3833 = vadd.f32 0.0, %v3832
        %v3834 = vpop.f32.mrf.mxu0
        %3835 = vmatprep.mubr.bf16.mxu0 %v3664
        %3836 = vmatmul.mubr.bf16.gmra.mxu0 %v3663
        %v3837 = vpop.f32.mrf.mxu0
        %v3838 = vadd.f32 0.0, %v3837
        %v3839 = vpop.f32.mrf.mxu0
        %v3840 = vpop.f32.mrf.mxu0
        %v3841 = vadd.f32 0.0, %v3840
        %v3842 = vpop.f32.mrf.mxu0
        %3843 = vmatprep.mubr.bf16.mxu0 %v3666
        %3844 = vmatmul.mubr.bf16.gmra.mxu0 %v3665
        %v3845 = vpop.f32.mrf.mxu0
        %v3846 = vadd.f32 0.0, %v3845
        %v3847 = vpop.f32.mrf.mxu0
        %v3848 = vpop.f32.mrf.mxu0
        %v3849 = vadd.f32 0.0, %v3848
        %v3850 = vpop.f32.mrf.mxu0
        %3851 = vmatprep.mubr.bf16.mxu0 %v3668
        %3852 = vmatmul.mubr.bf16.gmra.mxu0 %v3667
        %v3853 = vpop.f32.mrf.mxu0
        %v3854 = vadd.f32 0.0, %v3853
        %v3855 = vpop.f32.mrf.mxu0
        %v3856 = vpop.f32.mrf.mxu0
        %v3857 = vadd.f32 0.0, %v3856
        %v3858 = vpop.f32.mrf.mxu0
        %3859 = vmatprep.mubr.bf16.mxu0 %v3670
        %3860 = vmatmul.mubr.bf16.gmra.mxu0 %v3669
        %v3861 = vpop.f32.mrf.mxu0
        %v3862 = vadd.f32 0.0, %v3861
        %v3863 = vpop.f32.mrf.mxu0
        %v3864 = vpop.f32.mrf.mxu0
        %v3865 = vadd.f32 0.0, %v3864
        %v3866 = vpop.f32.mrf.mxu0
        %3867 = vmatprep.mubr.bf16.mxu0 %v3672
        %3868 = vmatmul.mubr.bf16.gmra.mxu0 %v3671
        %v3869 = vpop.f32.mrf.mxu0
        %v3870 = vadd.f32 0.0, %v3869
        %v3871 = vpop.f32.mrf.mxu0
        %v3872 = vpop.f32.mrf.mxu0
        %v3873 = vadd.f32 0.0, %v3872
        %v3874 = vpop.f32.mrf.mxu0
        %3875 = vmatprep.mubr.bf16.mxu0 %v3674
        %3876 = vmatmul.mubr.bf16.gmra.mxu0 %v3673
        %v3877 = vpop.f32.mrf.mxu0
        %v3878 = vadd.f32 0.0, %v3877
        %v3879 = vpop.f32.mrf.mxu0
        %v3880 = vpop.f32.mrf.mxu0
        %v3881 = vadd.f32 0.0, %v3880
        %v3882 = vpop.f32.mrf.mxu0
        %3883 = vmatprep.mubr.bf16.mxu0 %v3676
        %3884 = vmatmul.mubr.bf16.gmra.mxu0 %v3675
        %v3885 = vpop.f32.mrf.mxu0
        %v3886 = vadd.f32 0.0, %v3885
        %v3887 = vpop.f32.mrf.mxu0
        %v3888 = vpop.f32.mrf.mxu0
        %v3889 = vadd.f32 0.0, %v3888
        %v3890 = vpop.f32.mrf.mxu0
        %3891 = vmatprep.mubr.bf16.mxu0 %v3678
        %3892 = vmatmul.mubr.bf16.gmra.mxu0 %v3677
        %v3893 = vpop.f32.mrf.mxu0
        %v3894 = vadd.f32 0.0, %v3893
        %v3895 = vpop.f32.mrf.mxu0
        %v3896 = vpop.f32.mrf.mxu0
        %v3897 = vadd.f32 0.0, %v3896
        %v3898 = vpop.f32.mrf.mxu0
        %3899 = vmatprep.mubr.bf16.mxu0 %v3680
        %3900 = vmatmul.mubr.bf16.gmra.mxu0 %v3679
        %v3901 = vpop.f32.mrf.mxu0
        %v3902 = vadd.f32 0.0, %v3901
        %v3903 = vpop.f32.mrf.mxu0
        %v3904 = vpop.f32.mrf.mxu0
        %v3905 = vadd.f32 0.0, %v3904
        %v3906 = vpop.f32.mrf.mxu0
        %3907 = vmatprep.mubr.bf16.mxu0 %v3682
        %3908 = vmatmul.mubr.bf16.gmra.mxu0 %v3681
        %v3909 = vpop.f32.mrf.mxu0
        %v3910 = vadd.f32 0.0, %v3909
        %v3911 = vpop.f32.mrf.mxu0
        %v3912 = vpop.f32.mrf.mxu0
        %v3913 = vadd.f32 0.0, %v3912
        %v3914 = vpop.f32.mrf.mxu0
        %3915 = vmatprep.mubr.bf16.mxu0 %v3684
        %3916 = vmatmul.mubr.bf16.gmra.mxu0 %v3683
        %v3917 = vpop.f32.mrf.mxu0
        %v3918 = vadd.f32 0.0, %v3917
        %v3919 = vpop.f32.mrf.mxu0
        %v3920 = vpop.f32.mrf.mxu0
        %v3921 = vadd.f32 0.0, %v3920
        %v3922 = vpop.f32.mrf.mxu0
        %3923 = vmatprep.mubr.bf16.mxu0 %v3686
        %3924 = vmatmul.mubr.bf16.gmra.mxu0 %v3685
        %v3925 = vpop.f32.mrf.mxu0
        %v3926 = vadd.f32 0.0, %v3925
        %v3927 = vpop.f32.mrf.mxu0
        %v3928 = vpop.f32.mrf.mxu0
        %v3929 = vadd.f32 0.0, %v3928
        %v3930 = vpop.f32.mrf.mxu0
        %3931 = vmatprep.mubr.bf16.mxu0 %v3688
        %3932 = vmatmul.mubr.bf16.gmra.mxu0 %v3687
        %v3933 = vpop.f32.mrf.mxu0
        %v3934 = vadd.f32 0.0, %v3933
        %v3935 = vpop.f32.mrf.mxu0
        %v3936 = vpop.f32.mrf.mxu0
        %v3937 = vadd.f32 0.0, %v3936
        %v3938 = vpop.f32.mrf.mxu0
        %3939 = vmatprep.mubr.bf16.mxu0 %v3690
        %3940 = vmatmul.mubr.bf16.gmra.mxu0 %v3689
        %v3941 = vpop.f32.mrf.mxu0
        %v3942 = vadd.f32 0.0, %v3941
        %v3943 = vpop.f32.mrf.mxu0
        %v3944 = vpop.f32.mrf.mxu0
        %v3945 = vadd.f32 0.0, %v3944
        %v3946 = vpop.f32.mrf.mxu0
        %3947 = vdwg.mxu0
        %v3948 = vld [vmem:[#allocation4] sm:$0xff]
        %v3949 = vld [vmem:[#allocation4 + $0x8] sm:$0xff]
        %v3950 = vld [vmem:[#allocation4 + $0x10] sm:$0xff]
        %v3951 = vld [vmem:[#allocation4 + $0x18] sm:$0xff]
        %v3952 = vld [vmem:[#allocation4 + $0x20] sm:$0xff]
        %v3953 = vld [vmem:[#allocation4 + $0x28] sm:$0xff]
        %v3954 = vld [vmem:[#allocation4 + $0x30] sm:$0xff]
        %v3955 = vld [vmem:[#allocation4 + $0x38] sm:$0xff]
        %v3956 = vld [vmem:[#allocation4 + $0x40] sm:$0xff]
        %v3957 = vld [vmem:[#allocation4 + $0x48] sm:$0xff]
        %v3958 = vld [vmem:[#allocation4 + $0x50] sm:$0xff]
        %v3959 = vld [vmem:[#allocation4 + $0x58] sm:$0xff]
        %v3960 = vld [vmem:[#allocation4 + $0x60] sm:$0xff]
        %v3961 = vld [vmem:[#allocation4 + $0x68] sm:$0xff]
        %v3962 = vld [vmem:[#allocation4 + $0x70] sm:$0xff]
        %v3963 = vld [vmem:[#allocation4 + $0x78] sm:$0xff]
        %v3964 = vld [vmem:[#allocation4 + $0x80] sm:$0xff]
        %v3965 = vld [vmem:[#allocation4 + $0x88] sm:$0xff]
        %v3966 = vld [vmem:[#allocation4 + $0x90] sm:$0xff]
        %v3967 = vld [vmem:[#allocation4 + $0x98] sm:$0xff]
        %v3968 = vld [vmem:[#allocation4 + $0xa0] sm:$0xff]
        %v3969 = vld [vmem:[#allocation4 + $0xa8] sm:$0xff]
        %v3970 = vld [vmem:[#allocation4 + $0xb0] sm:$0xff]
        %v3971 = vld [vmem:[#allocation4 + $0xb8] sm:$0xff]
        %v3972 = vld [vmem:[#allocation4 + $0xc0] sm:$0xff]
        %v3973 = vld [vmem:[#allocation4 + $0xc8] sm:$0xff]
        %v3974 = vld [vmem:[#allocation4 + $0xd0] sm:$0xff]
        %v3975 = vld [vmem:[#allocation4 + $0xd8] sm:$0xff]
        %v3976 = vld [vmem:[#allocation4 + $0xe0] sm:$0xff]
        %v3977 = vld [vmem:[#allocation4 + $0xe8] sm:$0xff]
        %v3978 = vld [vmem:[#allocation4 + $0xf0] sm:$0xff]
        %v3979 = vld [vmem:[#allocation4 + $0xf8] sm:$0xff]
        %3981 = vset.pattern.permute.xlu0 0
        %3982 = vperm.xlu0 %3981, %v3020
        %v3983 = vpop.permute.xlu0 %3982
        %3986 = vset.pattern.permute.xlu0 0
        %3987 = vperm.xlu0 %3986, %v3022
        %v3988 = vpop.permute.xlu0 %3987
        %3991 = vset.pattern.permute.xlu0 0
        %3992 = vperm.xlu0 %3991, %v3024
        %v3993 = vpop.permute.xlu0 %3992
        %3996 = vset.pattern.permute.xlu0 0
        %3997 = vperm.xlu0 %3996, %v3026
        %v3998 = vpop.permute.xlu0 %3997
        %4001 = vset.pattern.permute.xlu0 0
        %4002 = vperm.xlu0 %4001, %v3028
        %v4003 = vpop.permute.xlu0 %4002
        %4006 = vset.pattern.permute.xlu0 0
        %4007 = vperm.xlu0 %4006, %v3030
        %v4008 = vpop.permute.xlu0 %4007
        %4011 = vset.pattern.permute.xlu0 0
        %4012 = vperm.xlu0 %4011, %v3032
        %v4013 = vpop.permute.xlu0 %4012
        %4016 = vset.pattern.permute.xlu0 0
        %4017 = vperm.xlu0 %4016, %v3034
        %v4018 = vpop.permute.xlu0 %4017
        %4021 = vset.pattern.permute.xlu0 0
        %4022 = vperm.xlu0 %4021, %v3036
        %v4023 = vpop.permute.xlu0 %4022
        %4026 = vset.pattern.permute.xlu0 0
        %4027 = vperm.xlu0 %4026, %v3038
        %v4028 = vpop.permute.xlu0 %4027
        %4031 = vset.pattern.permute.xlu0 0
        %4032 = vperm.xlu0 %4031, %v3040
        %v4033 = vpop.permute.xlu0 %4032
        %4036 = vset.pattern.permute.xlu0 0
        %4037 = vperm.xlu0 %4036, %v3042
        %v4038 = vpop.permute.xlu0 %4037
        %4041 = vset.pattern.permute.xlu0 0
        %4042 = vperm.xlu0 %4041, %v3044
        %v4043 = vpop.permute.xlu0 %4042
        %4046 = vset.pattern.permute.xlu0 0
        %4047 = vperm.xlu0 %4046, %v3046
        %v4048 = vpop.permute.xlu0 %4047
        %4051 = vset.pattern.permute.xlu0 0
        %4052 = vperm.xlu0 %4051, %v3048
        %v4053 = vpop.permute.xlu0 %4052
        %4056 = vset.pattern.permute.xlu0 0
        %4057 = vperm.xlu0 %4056, %v3050
        %v4058 = vpop.permute.xlu0 %4057
        %4061 = vset.pattern.permute.xlu0 0
        %4062 = vperm.xlu0 %4061, %v3052
        %v4063 = vpop.permute.xlu0 %4062
        %4066 = vset.pattern.permute.xlu0 0
        %4067 = vperm.xlu0 %4066, %v3054
        %v4068 = vpop.permute.xlu0 %4067
        %4071 = vset.pattern.permute.xlu0 0
        %4072 = vperm.xlu0 %4071, %v3056
        %v4073 = vpop.permute.xlu0 %4072
        %4076 = vset.pattern.permute.xlu0 0
        %4077 = vperm.xlu0 %4076, %v3058
        %v4078 = vpop.permute.xlu0 %4077
        %4081 = vset.pattern.permute.xlu0 0
        %4082 = vperm.xlu0 %4081, %v3060
        %v4083 = vpop.permute.xlu0 %4082
        %4086 = vset.pattern.permute.xlu0 0
        %4087 = vperm.xlu0 %4086, %v3062
        %v4088 = vpop.permute.xlu0 %4087
        %4091 = vset.pattern.permute.xlu0 0
        %4092 = vperm.xlu0 %4091, %v3064
        %v4093 = vpop.permute.xlu0 %4092
        %4096 = vset.pattern.permute.xlu0 0
        %4097 = vperm.xlu0 %4096, %v3066
        %v4098 = vpop.permute.xlu0 %4097
        %4101 = vset.pattern.permute.xlu0 0
        %4102 = vperm.xlu0 %4101, %v3068
        %v4103 = vpop.permute.xlu0 %4102
        %4106 = vset.pattern.permute.xlu0 0
        %4107 = vperm.xlu0 %4106, %v3070
        %v4108 = vpop.permute.xlu0 %4107
        %4111 = vset.pattern.permute.xlu0 0
        %4112 = vperm.xlu0 %4111, %v3072
        %v4113 = vpop.permute.xlu0 %4112
        %4116 = vset.pattern.permute.xlu0 0
        %4117 = vperm.xlu0 %4116, %v3074
        %v4118 = vpop.permute.xlu0 %4117
        %4121 = vset.pattern.permute.xlu0 0
        %4122 = vperm.xlu0 %4121, %v3076
        %v4123 = vpop.permute.xlu0 %4122
        %4126 = vset.pattern.permute.xlu0 0
        %4127 = vperm.xlu0 %4126, %v3078
        %v4128 = vpop.permute.xlu0 %4127
        %4131 = vset.pattern.permute.xlu0 0
        %4132 = vperm.xlu0 %4131, %v3080
        %v4133 = vpop.permute.xlu0 %4132
        %4136 = vset.pattern.permute.xlu0 0
        %4137 = vperm.xlu0 %4136, %v3082
        %v4138 = vpop.permute.xlu0 %4137
        %v4140 = vmul.f32 %v3983, %v3948
        %v4141 = vmul.f32 %v3988, %v3949
        %v4142 = vmul.f32 %v3993, %v3950
        %v4143 = vmul.f32 %v3998, %v3951
        %v4144 = vmul.f32 %v4003, %v3952
        %v4145 = vmul.f32 %v4008, %v3953
        %v4146 = vmul.f32 %v4013, %v3954
        %v4147 = vmul.f32 %v4018, %v3955
        %v4148 = vmul.f32 %v4023, %v3956
        %v4149 = vmul.f32 %v4028, %v3957
        %v4150 = vmul.f32 %v4033, %v3958
        %v4151 = vmul.f32 %v4038, %v3959
        %v4152 = vmul.f32 %v4043, %v3960
        %v4153 = vmul.f32 %v4048, %v3961
        %v4154 = vmul.f32 %v4053, %v3962
        %v4155 = vmul.f32 %v4058, %v3963
        %v4156 = vmul.f32 %v4063, %v3964
        %v4157 = vmul.f32 %v4068, %v3965
        %v4158 = vmul.f32 %v4073, %v3966
        %v4159 = vmul.f32 %v4078, %v3967
        %v4160 = vmul.f32 %v4083, %v3968
        %v4161 = vmul.f32 %v4088, %v3969
        %v4162 = vmul.f32 %v4093, %v3970
        %v4163 = vmul.f32 %v4098, %v3971
        %v4164 = vmul.f32 %v4103, %v3972
        %v4165 = vmul.f32 %v4108, %v3973
        %v4166 = vmul.f32 %v4113, %v3974
        %v4167 = vmul.f32 %v4118, %v3975
        %v4168 = vmul.f32 %v4123, %v3976
        %v4169 = vmul.f32 %v4128, %v3977
        %v4170 = vmul.f32 %v4133, %v3978
        %v4171 = vmul.f32 %v4138, %v3979
        %v4172 = vadd.f32 %v4140, %v3822
        %v4173 = vadd.f32 %v4141, %v3825
        %v4174 = vadd.f32 %v4142, %v3830
        %v4175 = vadd.f32 %v4143, %v3833
        %v4176 = vadd.f32 %v4144, %v3838
        %v4177 = vadd.f32 %v4145, %v3841
        %v4178 = vadd.f32 %v4146, %v3846
        %v4179 = vadd.f32 %v4147, %v3849
        %v4180 = vadd.f32 %v4148, %v3854
        %v4181 = vadd.f32 %v4149, %v3857
        %v4182 = vadd.f32 %v4150, %v3862
        %v4183 = vadd.f32 %v4151, %v3865
        %v4184 = vadd.f32 %v4152, %v3870
        %v4185 = vadd.f32 %v4153, %v3873
        %v4186 = vadd.f32 %v4154, %v3878
        %v4187 = vadd.f32 %v4155, %v3881
        %v4188 = vadd.f32 %v4156, %v3886
        %v4189 = vadd.f32 %v4157, %v3889
        %v4190 = vadd.f32 %v4158, %v3894
        %v4191 = vadd.f32 %v4159, %v3897
        %v4192 = vadd.f32 %v4160, %v3902
        %v4193 = vadd.f32 %v4161, %v3905
        %v4194 = vadd.f32 %v4162, %v3910
        %v4195 = vadd.f32 %v4163, %v3913
        %v4196 = vadd.f32 %v4164, %v3918
        %v4197 = vadd.f32 %v4165, %v3921
        %v4198 = vadd.f32 %v4166, %v3926
        %v4199 = vadd.f32 %v4167, %v3929
        %v4200 = vadd.f32 %v4168, %v3934
        %v4201 = vadd.f32 %v4169, %v3937
        %v4202 = vadd.f32 %v4170, %v3942
        %v4203 = vadd.f32 %v4171, %v3945
        %4204 = vst [vmem:[#allocation4] sm:$0xff] %v4172
        %4205 = vst [vmem:[#allocation4 + $0x8] sm:$0xff] %v4173
        %4206 = vst [vmem:[#allocation4 + $0x10] sm:$0xff] %v4174
        %4207 = vst [vmem:[#allocation4 + $0x18] sm:$0xff] %v4175
        %4208 = vst [vmem:[#allocation4 + $0x20] sm:$0xff] %v4176
        %4209 = vst [vmem:[#allocation4 + $0x28] sm:$0xff] %v4177
        %4210 = vst [vmem:[#allocation4 + $0x30] sm:$0xff] %v4178
        %4211 = vst [vmem:[#allocation4 + $0x38] sm:$0xff] %v4179
        %4212 = vst [vmem:[#allocation4 + $0x40] sm:$0xff] %v4180
        %4213 = vst [vmem:[#allocation4 + $0x48] sm:$0xff] %v4181
        %4214 = vst [vmem:[#allocation4 + $0x50] sm:$0xff] %v4182
        %4215 = vst [vmem:[#allocation4 + $0x58] sm:$0xff] %v4183
        %4216 = vst [vmem:[#allocation4 + $0x60] sm:$0xff] %v4184
        %4217 = vst [vmem:[#allocation4 + $0x68] sm:$0xff] %v4185
        %4218 = vst [vmem:[#allocation4 + $0x70] sm:$0xff] %v4186
        %4219 = vst [vmem:[#allocation4 + $0x78] sm:$0xff] %v4187
        %4220 = vst [vmem:[#allocation4 + $0x80] sm:$0xff] %v4188
        %4221 = vst [vmem:[#allocation4 + $0x88] sm:$0xff] %v4189
        %4222 = vst [vmem:[#allocation4 + $0x90] sm:$0xff] %v4190
        %4223 = vst [vmem:[#allocation4 + $0x98] sm:$0xff] %v4191
        %4224 = vst [vmem:[#allocation4 + $0xa0] sm:$0xff] %v4192
        %4225 = vst [vmem:[#allocation4 + $0xa8] sm:$0xff] %v4193
        %4226 = vst [vmem:[#allocation4 + $0xb0] sm:$0xff] %v4194
        %4227 = vst [vmem:[#allocation4 + $0xb8] sm:$0xff] %v4195
        %4228 = vst [vmem:[#allocation4 + $0xc0] sm:$0xff] %v4196
        %4229 = vst [vmem:[#allocation4 + $0xc8] sm:$0xff] %v4197
        %4230 = vst [vmem:[#allocation4 + $0xd0] sm:$0xff] %v4198
        %4231 = vst [vmem:[#allocation4 + $0xd8] sm:$0xff] %v4199
        %4232 = vst [vmem:[#allocation4 + $0xe0] sm:$0xff] %v4200
        %4233 = vst [vmem:[#allocation4 + $0xe8] sm:$0xff] %v4201
        %4234 = vst [vmem:[#allocation4 + $0xf0] sm:$0xff] %v4202
        %4235 = vst [vmem:[#allocation4 + $0xf8] sm:$0xff] %v4203
        %4236 = vst.msk [vmem:[#allocation2] sm:$0xff] %vm287, %v2955
        %4237 = vst.msk [vmem:[#allocation2 + $0x8] sm:$0xff] %vm287, %v2956
        %4238 = vst.msk [vmem:[#allocation2 + $0x10] sm:$0xff] %vm287, %v2957
        %4239 = vst.msk [vmem:[#allocation2 + $0x18] sm:$0xff] %vm287, %v2958
        %4240 = vst.msk [vmem:[#allocation2 + $0x20] sm:$0xff] %vm287, %v2959
        %4241 = vst.msk [vmem:[#allocation2 + $0x28] sm:$0xff] %vm287, %v2960
        %4242 = vst.msk [vmem:[#allocation2 + $0x30] sm:$0xff] %vm287, %v2961
        %4243 = vst.msk [vmem:[#allocation2 + $0x38] sm:$0xff] %vm287, %v2962
        %4244 = vst.msk [vmem:[#allocation2 + $0x40] sm:$0xff] %vm287, %v2963
        %4245 = vst.msk [vmem:[#allocation2 + $0x48] sm:$0xff] %vm287, %v2964
        %4246 = vst.msk [vmem:[#allocation2 + $0x50] sm:$0xff] %vm287, %v2965
        %4247 = vst.msk [vmem:[#allocation2 + $0x58] sm:$0xff] %vm287, %v2966
        %4248 = vst.msk [vmem:[#allocation2 + $0x60] sm:$0xff] %vm287, %v2967
        %4249 = vst.msk [vmem:[#allocation2 + $0x68] sm:$0xff] %vm287, %v2968
        %4250 = vst.msk [vmem:[#allocation2 + $0x70] sm:$0xff] %vm287, %v2969
        %4251 = vst.msk [vmem:[#allocation2 + $0x78] sm:$0xff] %vm287, %v2970
        %4252 = vst.msk [vmem:[#allocation2 + $0x80] sm:$0xff] %vm287, %v2971
        %4253 = vst.msk [vmem:[#allocation2 + $0x88] sm:$0xff] %vm287, %v2972
        %4254 = vst.msk [vmem:[#allocation2 + $0x90] sm:$0xff] %vm287, %v2973
        %4255 = vst.msk [vmem:[#allocation2 + $0x98] sm:$0xff] %vm287, %v2974
        %4256 = vst.msk [vmem:[#allocation2 + $0xa0] sm:$0xff] %vm287, %v2975
        %4257 = vst.msk [vmem:[#allocation2 + $0xa8] sm:$0xff] %vm287, %v2976
        %4258 = vst.msk [vmem:[#allocation2 + $0xb0] sm:$0xff] %vm287, %v2977
        %4259 = vst.msk [vmem:[#allocation2 + $0xb8] sm:$0xff] %vm287, %v2978
        %4260 = vst.msk [vmem:[#allocation2 + $0xc0] sm:$0xff] %vm287, %v2979
        %4261 = vst.msk [vmem:[#allocation2 + $0xc8] sm:$0xff] %vm287, %v2980
        %4262 = vst.msk [vmem:[#allocation2 + $0xd0] sm:$0xff] %vm287, %v2981
        %4263 = vst.msk [vmem:[#allocation2 + $0xd8] sm:$0xff] %vm287, %v2982
        %4264 = vst.msk [vmem:[#allocation2 + $0xe0] sm:$0xff] %vm287, %v2983
        %4265 = vst.msk [vmem:[#allocation2 + $0xe8] sm:$0xff] %vm287, %v2984
        %4266 = vst.msk [vmem:[#allocation2 + $0xf0] sm:$0xff] %vm287, %v2985
        %4267 = vst.msk [vmem:[#allocation2 + $0xf8] sm:$0xff] %vm287, %v2986
        %v4268 = vld [vmem:[#allocation4] sm:$0xff]
        %v4269 = vld [vmem:[#allocation4 + $0x8] sm:$0xff]
        %v4270 = vld [vmem:[#allocation4 + $0x10] sm:$0xff]
        %v4271 = vld [vmem:[#allocation4 + $0x18] sm:$0xff]
        %v4272 = vld [vmem:[#allocation4 + $0x20] sm:$0xff]
        %v4273 = vld [vmem:[#allocation4 + $0x28] sm:$0xff]
        %v4274 = vld [vmem:[#allocation4 + $0x30] sm:$0xff]
        %v4275 = vld [vmem:[#allocation4 + $0x38] sm:$0xff]
        %v4276 = vld [vmem:[#allocation4 + $0x40] sm:$0xff]
        %v4277 = vld [vmem:[#allocation4 + $0x48] sm:$0xff]
        %v4278 = vld [vmem:[#allocation4 + $0x50] sm:$0xff]
        %v4279 = vld [vmem:[#allocation4 + $0x58] sm:$0xff]
        %v4280 = vld [vmem:[#allocation4 + $0x60] sm:$0xff]
        %v4281 = vld [vmem:[#allocation4 + $0x68] sm:$0xff]
        %v4282 = vld [vmem:[#allocation4 + $0x70] sm:$0xff]
        %v4283 = vld [vmem:[#allocation4 + $0x78] sm:$0xff]
        %v4284 = vld [vmem:[#allocation4 + $0x80] sm:$0xff]
        %v4285 = vld [vmem:[#allocation4 + $0x88] sm:$0xff]
        %v4286 = vld [vmem:[#allocation4 + $0x90] sm:$0xff]
        %v4287 = vld [vmem:[#allocation4 + $0x98] sm:$0xff]
        %v4288 = vld [vmem:[#allocation4 + $0xa0] sm:$0xff]
        %v4289 = vld [vmem:[#allocation4 + $0xa8] sm:$0xff]
        %v4290 = vld [vmem:[#allocation4 + $0xb0] sm:$0xff]
        %v4291 = vld [vmem:[#allocation4 + $0xb8] sm:$0xff]
        %v4292 = vld [vmem:[#allocation4 + $0xc0] sm:$0xff]
        %v4293 = vld [vmem:[#allocation4 + $0xc8] sm:$0xff]
        %v4294 = vld [vmem:[#allocation4 + $0xd0] sm:$0xff]
        %v4295 = vld [vmem:[#allocation4 + $0xd8] sm:$0xff]
        %v4296 = vld [vmem:[#allocation4 + $0xe0] sm:$0xff]
        %v4297 = vld [vmem:[#allocation4 + $0xe8] sm:$0xff]
        %v4298 = vld [vmem:[#allocation4 + $0xf0] sm:$0xff]
        %v4299 = vld [vmem:[#allocation4 + $0xf8] sm:$0xff]
        %v4300 = vld [vmem:[#allocation3] sm:$0xff]
        %v4301 = vld [vmem:[#allocation3 + $0x8] sm:$0xff]
        %v4302 = vld [vmem:[#allocation3 + $0x10] sm:$0xff]
        %v4303 = vld [vmem:[#allocation3 + $0x18] sm:$0xff]
        %v4304 = vld [vmem:[#allocation3 + $0x20] sm:$0xff]
        %v4305 = vld [vmem:[#allocation3 + $0x28] sm:$0xff]
        %v4306 = vld [vmem:[#allocation3 + $0x30] sm:$0xff]
        %v4307 = vld [vmem:[#allocation3 + $0x38] sm:$0xff]
        %v4308 = vld [vmem:[#allocation3 + $0x40] sm:$0xff]
        %v4309 = vld [vmem:[#allocation3 + $0x48] sm:$0xff]
        %v4310 = vld [vmem:[#allocation3 + $0x50] sm:$0xff]
        %v4311 = vld [vmem:[#allocation3 + $0x58] sm:$0xff]
        %v4312 = vld [vmem:[#allocation3 + $0x60] sm:$0xff]
        %v4313 = vld [vmem:[#allocation3 + $0x68] sm:$0xff]
        %v4314 = vld [vmem:[#allocation3 + $0x70] sm:$0xff]
        %v4315 = vld [vmem:[#allocation3 + $0x78] sm:$0xff]
        %v4316 = vld [vmem:[#allocation3 + $0x80] sm:$0xff]
        %v4317 = vld [vmem:[#allocation3 + $0x88] sm:$0xff]
        %v4318 = vld [vmem:[#allocation3 + $0x90] sm:$0xff]
        %v4319 = vld [vmem:[#allocation3 + $0x98] sm:$0xff]
        %v4320 = vld [vmem:[#allocation3 + $0xa0] sm:$0xff]
        %v4321 = vld [vmem:[#allocation3 + $0xa8] sm:$0xff]
        %v4322 = vld [vmem:[#allocation3 + $0xb0] sm:$0xff]
        %v4323 = vld [vmem:[#allocation3 + $0xb8] sm:$0xff]
        %v4324 = vld [vmem:[#allocation3 + $0xc0] sm:$0xff]
        %v4325 = vld [vmem:[#allocation3 + $0xc8] sm:$0xff]
        %v4326 = vld [vmem:[#allocation3 + $0xd0] sm:$0xff]
        %v4327 = vld [vmem:[#allocation3 + $0xd8] sm:$0xff]
        %v4328 = vld [vmem:[#allocation3 + $0xe0] sm:$0xff]
        %v4329 = vld [vmem:[#allocation3 + $0xe8] sm:$0xff]
        %v4330 = vld [vmem:[#allocation3 + $0xf0] sm:$0xff]
        %v4331 = vld [vmem:[#allocation3 + $0xf8] sm:$0xff]
        %v4332 = vrcp.pop %v4300
        %v4333 = vrcp.pop %v4301
        %v4334 = vrcp.pop %v4302
        %v4335 = vrcp.pop %v4303
        %v4336 = vrcp.pop %v4304
        %v4337 = vrcp.pop %v4305
        %v4338 = vrcp.pop %v4306
        %v4339 = vrcp.pop %v4307
        %v4340 = vrcp.pop %v4308
        %v4341 = vrcp.pop %v4309
        %v4342 = vrcp.pop %v4310
        %v4343 = vrcp.pop %v4311
        %v4344 = vrcp.pop %v4312
        %v4345 = vrcp.pop %v4313
        %v4346 = vrcp.pop %v4314
        %v4347 = vrcp.pop %v4315
        %v4348 = vrcp.pop %v4316
        %v4349 = vrcp.pop %v4317
        %v4350 = vrcp.pop %v4318
        %v4351 = vrcp.pop %v4319
        %v4352 = vrcp.pop %v4320
        %v4353 = vrcp.pop %v4321
        %v4354 = vrcp.pop %v4322
        %v4355 = vrcp.pop %v4323
        %v4356 = vrcp.pop %v4324
        %v4357 = vrcp.pop %v4325
        %v4358 = vrcp.pop %v4326
        %v4359 = vrcp.pop %v4327
        %v4360 = vrcp.pop %v4328
        %v4361 = vrcp.pop %v4329
        %v4362 = vrcp.pop %v4330
        %v4363 = vrcp.pop %v4331
        %4365 = vset.pattern.permute.xlu0 0
        %4366 = vperm.xlu0 %4365, %v4332
        %v4367 = vpop.permute.xlu0 %4366
        %4370 = vset.pattern.permute.xlu0 0
        %4371 = vperm.xlu0 %4370, %v4333
        %v4372 = vpop.permute.xlu0 %4371
        %4375 = vset.pattern.permute.xlu0 0
        %4376 = vperm.xlu0 %4375, %v4334
        %v4377 = vpop.permute.xlu0 %4376
        %4380 = vset.pattern.permute.xlu0 0
        %4381 = vperm.xlu0 %4380, %v4335
        %v4382 = vpop.permute.xlu0 %4381
        %4385 = vset.pattern.permute.xlu0 0
        %4386 = vperm.xlu0 %4385, %v4336
        %v4387 = vpop.permute.xlu0 %4386
        %4390 = vset.pattern.permute.xlu0 0
        %4391 = vperm.xlu0 %4390, %v4337
        %v4392 = vpop.permute.xlu0 %4391
        %4395 = vset.pattern.permute.xlu0 0
        %4396 = vperm.xlu0 %4395, %v4338
        %v4397 = vpop.permute.xlu0 %4396
        %4400 = vset.pattern.permute.xlu0 0
        %4401 = vperm.xlu0 %4400, %v4339
        %v4402 = vpop.permute.xlu0 %4401
        %4405 = vset.pattern.permute.xlu0 0
        %4406 = vperm.xlu0 %4405, %v4340
        %v4407 = vpop.permute.xlu0 %4406
        %4410 = vset.pattern.permute.xlu0 0
        %4411 = vperm.xlu0 %4410, %v4341
        %v4412 = vpop.permute.xlu0 %4411
        %4415 = vset.pattern.permute.xlu0 0
        %4416 = vperm.xlu0 %4415, %v4342
        %v4417 = vpop.permute.xlu0 %4416
        %4420 = vset.pattern.permute.xlu0 0
        %4421 = vperm.xlu0 %4420, %v4343
        %v4422 = vpop.permute.xlu0 %4421
        %4425 = vset.pattern.permute.xlu0 0
        %4426 = vperm.xlu0 %4425, %v4344
        %v4427 = vpop.permute.xlu0 %4426
        %4430 = vset.pattern.permute.xlu0 0
        %4431 = vperm.xlu0 %4430, %v4345
        %v4432 = vpop.permute.xlu0 %4431
        %4435 = vset.pattern.permute.xlu0 0
        %4436 = vperm.xlu0 %4435, %v4346
        %v4437 = vpop.permute.xlu0 %4436
        %4440 = vset.pattern.permute.xlu0 0
        %4441 = vperm.xlu0 %4440, %v4347
        %v4442 = vpop.permute.xlu0 %4441
        %4445 = vset.pattern.permute.xlu0 0
        %4446 = vperm.xlu0 %4445, %v4348
        %v4447 = vpop.permute.xlu0 %4446
        %4450 = vset.pattern.permute.xlu0 0
        %4451 = vperm.xlu0 %4450, %v4349
        %v4452 = vpop.permute.xlu0 %4451
        %4455 = vset.pattern.permute.xlu0 0
        %4456 = vperm.xlu0 %4455, %v4350
        %v4457 = vpop.permute.xlu0 %4456
        %4460 = vset.pattern.permute.xlu0 0
        %4461 = vperm.xlu0 %4460, %v4351
        %v4462 = vpop.permute.xlu0 %4461
        %4465 = vset.pattern.permute.xlu0 0
        %4466 = vperm.xlu0 %4465, %v4352
        %v4467 = vpop.permute.xlu0 %4466
        %4470 = vset.pattern.permute.xlu0 0
        %4471 = vperm.xlu0 %4470, %v4353
        %v4472 = vpop.permute.xlu0 %4471
        %4475 = vset.pattern.permute.xlu0 0
        %4476 = vperm.xlu0 %4475, %v4354
        %v4477 = vpop.permute.xlu0 %4476
        %4480 = vset.pattern.permute.xlu0 0
        %4481 = vperm.xlu0 %4480, %v4355
        %v4482 = vpop.permute.xlu0 %4481
        %4485 = vset.pattern.permute.xlu0 0
        %4486 = vperm.xlu0 %4485, %v4356
        %v4487 = vpop.permute.xlu0 %4486
        %4490 = vset.pattern.permute.xlu0 0
        %4491 = vperm.xlu0 %4490, %v4357
        %v4492 = vpop.permute.xlu0 %4491
        %4495 = vset.pattern.permute.xlu0 0
        %4496 = vperm.xlu0 %4495, %v4358
        %v4497 = vpop.permute.xlu0 %4496
        %4500 = vset.pattern.permute.xlu0 0
        %4501 = vperm.xlu0 %4500, %v4359
        %v4502 = vpop.permute.xlu0 %4501
        %4505 = vset.pattern.permute.xlu0 0
        %4506 = vperm.xlu0 %4505, %v4360
        %v4507 = vpop.permute.xlu0 %4506
        %4510 = vset.pattern.permute.xlu0 0
        %4511 = vperm.xlu0 %4510, %v4361
        %v4512 = vpop.permute.xlu0 %4511
        %4515 = vset.pattern.permute.xlu0 0
        %4516 = vperm.xlu0 %4515, %v4362
        %v4517 = vpop.permute.xlu0 %4516
        %4520 = vset.pattern.permute.xlu0 0
        %4521 = vperm.xlu0 %4520, %v4363
        %v4522 = vpop.permute.xlu0 %4521
        %v4524 = vmul.f32 %v4268, %v4367
        %v4525 = vmul.f32 %v4269, %v4372
        %v4526 = vmul.f32 %v4270, %v4377
        %v4527 = vmul.f32 %v4271, %v4382
        %v4528 = vmul.f32 %v4272, %v4387
        %v4529 = vmul.f32 %v4273, %v4392
        %v4530 = vmul.f32 %v4274, %v4397
        %v4531 = vmul.f32 %v4275, %v4402
        %v4532 = vmul.f32 %v4276, %v4407
        %v4533 = vmul.f32 %v4277, %v4412
        %v4534 = vmul.f32 %v4278, %v4417
        %v4535 = vmul.f32 %v4279, %v4422
        %v4536 = vmul.f32 %v4280, %v4427
        %v4537 = vmul.f32 %v4281, %v4432
        %v4538 = vmul.f32 %v4282, %v4437
        %v4539 = vmul.f32 %v4283, %v4442
        %v4540 = vmul.f32 %v4284, %v4447
        %v4541 = vmul.f32 %v4285, %v4452
        %v4542 = vmul.f32 %v4286, %v4457
        %v4543 = vmul.f32 %v4287, %v4462
        %v4544 = vmul.f32 %v4288, %v4467
        %v4545 = vmul.f32 %v4289, %v4472
        %v4546 = vmul.f32 %v4290, %v4477
        %v4547 = vmul.f32 %v4291, %v4482
        %v4548 = vmul.f32 %v4292, %v4487
        %v4549 = vmul.f32 %v4293, %v4492
        %v4550 = vmul.f32 %v4294, %v4497
        %v4551 = vmul.f32 %v4295, %v4502
        %v4552 = vmul.f32 %v4296, %v4507
        %v4553 = vmul.f32 %v4297, %v4512
        %v4554 = vmul.f32 %v4298, %v4517
        %v4555 = vmul.f32 %v4299, %v4522
        %v4556 = vpack.c.bf16 %v4525, %v4524
        %v4557 = vpack.c.bf16 %v4527, %v4526
        %v4558 = vpack.c.bf16 %v4529, %v4528
        %v4559 = vpack.c.bf16 %v4531, %v4530
        %v4560 = vpack.c.bf16 %v4533, %v4532
        %v4561 = vpack.c.bf16 %v4535, %v4534
        %v4562 = vpack.c.bf16 %v4537, %v4536
        %v4563 = vpack.c.bf16 %v4539, %v4538
        %v4564 = vpack.c.bf16 %v4541, %v4540
        %v4565 = vpack.c.bf16 %v4543, %v4542
        %v4566 = vpack.c.bf16 %v4545, %v4544
        %v4567 = vpack.c.bf16 %v4547, %v4546
        %v4568 = vpack.c.bf16 %v4549, %v4548
        %v4569 = vpack.c.bf16 %v4551, %v4550
        %v4570 = vpack.c.bf16 %v4553, %v4552
        %v4571 = vpack.c.bf16 %v4555, %v4554
        %v4588 = vunpack.c.l.b16 %v4556
        %v4589 = vunpack.c.h.b16 %v4556
        %v4590 = vunpack.c.l.b16 %v4557
        %v4591 = vunpack.c.h.b16 %v4557
        %v4592 = vunpack.c.l.b16 %v4558
        %v4593 = vunpack.c.h.b16 %v4558
        %v4594 = vunpack.c.l.b16 %v4559
        %v4595 = vunpack.c.h.b16 %v4559
        %v4596 = vunpack.c.l.b16 %v4560
        %v4597 = vunpack.c.h.b16 %v4560
        %v4598 = vunpack.c.l.b16 %v4561
        %v4599 = vunpack.c.h.b16 %v4561
        %v4600 = vunpack.c.l.b16 %v4562
        %v4601 = vunpack.c.h.b16 %v4562
        %v4602 = vunpack.c.l.b16 %v4563
        %v4603 = vunpack.c.h.b16 %v4563
        %v4604 = vunpack.c.l.b16 %v4564
        %v4605 = vunpack.c.h.b16 %v4564
        %v4606 = vunpack.c.l.b16 %v4565
        %v4607 = vunpack.c.h.b16 %v4565
        %v4608 = vunpack.c.l.b16 %v4566
        %v4609 = vunpack.c.h.b16 %v4566
        %v4610 = vunpack.c.l.b16 %v4567
        %v4611 = vunpack.c.h.b16 %v4567
        %v4612 = vunpack.c.l.b16 %v4568
        %v4613 = vunpack.c.h.b16 %v4568
        %v4614 = vunpack.c.l.b16 %v4569
        %v4615 = vunpack.c.h.b16 %v4569
        %v4616 = vunpack.c.l.b16 %v4570
        %v4617 = vunpack.c.h.b16 %v4570
        %v4618 = vunpack.c.l.b16 %v4571
        %v4619 = vunpack.c.h.b16 %v4571
        %v4620 = vpack.c.b16 %v4588, %v4588
        %v4621 = vpack.c.b16 %v4589, %v4589
        %v4622 = vpack.c.b16 %v4590, %v4590
        %v4623 = vpack.c.b16 %v4591, %v4591
        %v4624 = vpack.c.b16 %v4592, %v4592
        %v4625 = vpack.c.b16 %v4593, %v4593
        %v4626 = vpack.c.b16 %v4594, %v4594
        %v4627 = vpack.c.b16 %v4595, %v4595
        %v4628 = vpack.c.b16 %v4596, %v4596
        %v4629 = vpack.c.b16 %v4597, %v4597
        %v4630 = vpack.c.b16 %v4598, %v4598
        %v4631 = vpack.c.b16 %v4599, %v4599
        %v4632 = vpack.c.b16 %v4600, %v4600
        %v4633 = vpack.c.b16 %v4601, %v4601
        %v4634 = vpack.c.b16 %v4602, %v4602
        %v4635 = vpack.c.b16 %v4603, %v4603
        %v4636 = vpack.c.b16 %v4604, %v4604
        %v4637 = vpack.c.b16 %v4605, %v4605
        %v4638 = vpack.c.b16 %v4606, %v4606
        %v4639 = vpack.c.b16 %v4607, %v4607
        %v4640 = vpack.c.b16 %v4608, %v4608
        %v4641 = vpack.c.b16 %v4609, %v4609
        %v4642 = vpack.c.b16 %v4610, %v4610
        %v4643 = vpack.c.b16 %v4611, %v4611
        %v4644 = vpack.c.b16 %v4612, %v4612
        %v4645 = vpack.c.b16 %v4613, %v4613
        %v4646 = vpack.c.b16 %v4614, %v4614
        %v4647 = vpack.c.b16 %v4615, %v4615
        %v4648 = vpack.c.b16 %v4616, %v4616
        %v4649 = vpack.c.b16 %v4617, %v4617
        %v4650 = vpack.c.b16 %v4618, %v4618
        %v4651 = vpack.c.b16 %v4619, %v4619
        %4684 = vst [vmem:[%s283] sm:$0xf] %v4620
        %4685 = vst [vmem:[%s283 + $0x4] sm:$0xf] %v4621
        %4686 = vst [vmem:[%s283 + $0x8] sm:$0xf] %v4622
        %4687 = vst [vmem:[%s283 + $0xc] sm:$0xf] %v4623
        %4688 = vst [vmem:[%s283 + $0x10] sm:$0xf] %v4624
        %4689 = vst [vmem:[%s283 + $0x14] sm:$0xf] %v4625
        %4690 = vst [vmem:[%s283 + $0x18] sm:$0xf] %v4626
        %4691 = vst [vmem:[%s283 + $0x1c] sm:$0xf] %v4627
        %4692 = vst [vmem:[%s283 + $0x20] sm:$0xf] %v4628
        %4693 = vst [vmem:[%s283 + $0x24] sm:$0xf] %v4629
        %4694 = vst [vmem:[%s283 + $0x28] sm:$0xf] %v4630
        %4695 = vst [vmem:[%s283 + $0x2c] sm:$0xf] %v4631
        %4696 = vst [vmem:[%s283 + $0x30] sm:$0xf] %v4632
        %4697 = vst [vmem:[%s283 + $0x34] sm:$0xf] %v4633
        %4698 = vst [vmem:[%s283 + $0x38] sm:$0xf] %v4634
        %4699 = vst [vmem:[%s283 + $0x3c] sm:$0xf] %v4635
        %4700 = vst [vmem:[%s283 + $0x40] sm:$0xf] %v4636
        %4701 = vst [vmem:[%s283 + $0x44] sm:$0xf] %v4637
        %4702 = vst [vmem:[%s283 + $0x48] sm:$0xf] %v4638
        %4703 = vst [vmem:[%s283 + $0x4c] sm:$0xf] %v4639
        %4704 = vst [vmem:[%s283 + $0x50] sm:$0xf] %v4640
        %4705 = vst [vmem:[%s283 + $0x54] sm:$0xf] %v4641
        %4706 = vst [vmem:[%s283 + $0x58] sm:$0xf] %v4642
        %4707 = vst [vmem:[%s283 + $0x5c] sm:$0xf] %v4643
        %4708 = vst [vmem:[%s283 + $0x60] sm:$0xf] %v4644
        %4709 = vst [vmem:[%s283 + $0x64] sm:$0xf] %v4645
        %4710 = vst [vmem:[%s283 + $0x68] sm:$0xf] %v4646
        %4711 = vst [vmem:[%s283 + $0x6c] sm:$0xf] %v4647
        %4712 = vst [vmem:[%s283 + $0x70] sm:$0xf] %v4648
        %4713 = vst [vmem:[%s283 + $0x74] sm:$0xf] %v4649
        %4714 = vst [vmem:[%s283 + $0x78] sm:$0xf] %v4650
        %4715 = vst [vmem:[%s283 + $0x7c] sm:$0xf] %v4651
        %s4716 = sand.u32 %s125, 1
        %s4717 = scalar_lea.sflag [#allocation7], %s4716
        %s4718 = sand.u32 %s125, 1
        %s4719 = smul.addr %s4718, 128
        %s4720 = scalar_lea.vmem [#allocation11], %s4719
        // Predicated region
        $region52: #{tpu_custom_call.1} parent=31 // pred_check
          %p4721 = pneg %p135
        $region53: #{tpu_custom_call.1} parent=31 // pred_check_branch
          %4723 = sbr.rel (%p4721) target = $region55
        $region54: #{tpu_custom_call.1} parent=31 // pred_region
          %s4724 = smul.u32 32, %s28
          %s4726 = ssub.s32 2048, 2048
          %4727 = vsyncadd %s4717, %s4726
          %s4728 = smul.addr %s27, 64
          %s4729 = sadd.s32 %s4724, %s4728
          %s4730 = smul.addr %s4729, 64
          %s4731 = scalar_lea.hbm %s3, %s4730
          %s4732 = sshll.u32 %s4720, 4
          %s4733 = int_to_ptr.vmem [resolvable:$true] %s4732
          %4738 = dma.vmem_to_hbm [thread:$0]  %s4733, 2048, %s4731, %s4717, 64, 64, 4
        $region55: #{tpu_custom_call.1} parent=31 // pred_fallthru
          _
      $region32: #{tpu_custom_call.1} parent=5 // pred_fallthru
        _
      %p4739 = scmp.le.s32.totalorder 2, %s18
      // Predicated region
      $region56: #{tpu_custom_call.1} parent=5 // pred_check
        %p4740 = pneg %p4739
      $region57: #{tpu_custom_call.1} parent=5 // pred_check_branch
        %4742 = sbr.rel (%p4740) target = $region59
      $region58: #{tpu_custom_call.1} parent=5 // pred_region
        %s4743 = ssub.s32 %s18, 2
        // Predicated region
        $region60: #{tpu_custom_call.1} parent=58 // pred_check
          %p4744 = pneg %p141
        $region61: #{tpu_custom_call.1} parent=58 // pred_check_branch
          %4746 = sbr.rel (%p4744) target = $region63
        $region62: #{tpu_custom_call.1} parent=58 // pred_region
          %s4747 = sand.u32 %s126, 1
          %s4748 = scalar_lea.sflag [#allocation7], %s4747
          %s4749 = sand.u32 %s126, 1
          %s4750 = smul.addr %s4749, 128
          %s4751 = scalar_lea.vmem [#allocation11], %s4750
          %4752 = dma.done %s4748, 2048
        $region63: #{tpu_custom_call.1} parent=58 // pred_fallthru
          _
      $region59: #{tpu_custom_call.1} parent=5 // pred_fallthru
        _
    $region6: #{tpu_custom_call.1} parent=1 // loop_footer
      %s22 = sadd.s32 1, %s18
    $region7: #{tpu_custom_call.1} parent=1 // loop_footer_branch
      %17 = sbr.rel target = $region3
    $region8: #{tpu_custom_call.1} parent=1 // loop_exit
      _
    %4753 = vsyncpa [#allocation6], 1
    %s4754 = scalar_lea.sflag [#allocation6], 1
    %4755 = vsyncpa %s4754, 1
    %4756 = vsyncpa [#allocation9], 1
    %s4757 = scalar_lea.sflag [#allocation9], 1
    %4758 = vsyncpa %s4757, 1
    %4759 = vsyncpa [#allocation7], 1
    %s4760 = scalar_lea.sflag [#allocation7], 1
    %4761 = vsyncpa %s4760, 1

</llo_original>
